<compile_context>
chip_gen: v7x
topology: tpu7x:2x2x1
jax: 0.10.0
libtpu: 0.0.40
codegen_flags: <defaults>
</compile_context>

<pallas_src>
import functools

import jax
import jax.numpy as jnp
from jax.experimental import pallas as pl
from jax.experimental.pallas import tpu as pltpu

F32 = jnp.float32
BF16 = jnp.bfloat16
LN_EPS = 1e-5      # nn.LayerNorm / F.layer_norm default eps
DEC_PAD = 128      # decoder output padded to 128 lanes for unmasked stores


def _build_megakernel(*, n, num_features, hidden_dim, num_layers,
                      fractal_depth, heads, chaos_factor):
    H = hidden_dim
    HH = hidden_dim * heads
    HN = heads * n            # lane-stacked (head, src) axis; 8*16 = 128 lanes here

    def kernel(x_ref, adjrep_ref,
               enc_w_ref, enc_b_ref, enc_g_ref, enc_bt_ref, cmem_ref,
               t0w_ref, t0b_ref, t0g_ref, t0bt_ref,
               trw_ref, trb_ref, trg_ref, trbt_ref,
               noise_ref, awd_ref, aws_ref,
               srcsel_ref, blkones_ref, rmat_ref, hmask_ref, hsum_ref,
               ew1_ref, eb1_ref, ew2_ref, eb2_ref,
               dw_ref, db_ref,
               h_multi_ref, dec_ref,
               h_carry, res_acc):
        i = pl.program_id(0)

        def _ln(z):  # layer_norm without affine
            mu = jnp.mean(z, axis=-1, keepdims=True)
            var = jnp.mean(jnp.square(z - mu), axis=-1, keepdims=True)
            return (z - mu) * jax.lax.rsqrt(var + LN_EPS)

        # ---- encoder (Linear -> LN(affine) -> ReLU) + chaos memory, only at step 0 ------
        @pl.when(i == 0)
        def _():
            z = jnp.dot(x_ref[...], enc_w_ref[...],
                        preferred_element_type=jnp.float32) + enc_b_ref[...]
            h0 = jnp.maximum(_ln(z) * enc_g_ref[...] + enc_bt_ref[...], 0.0)
            h_carry[...] = h0 + cmem_ref[...] * chaos_factor
            res_acc[...] = jnp.zeros_like(res_acc)

        h_prev = h_carry[...]                                       # [N, H]
        cf = chaos_factor * (1.0 + 0.1 * i.astype(jnp.float32))     # per-layer chaos factor

        # ---- fractal transform stack (bf16 weights on MXU, f32 LN/noise, depth-mean) -----
        # fractal_depth is small (3); static unroll is fine (switch to fori_loop(unroll=True)
        # if depth grows and vregs start spilling).
        z = jnp.dot(h_prev.astype(BF16), t0w_ref[0],
                    preferred_element_type=jnp.float32) + t0b_ref[0]
        z = jnp.maximum(_ln(z) * t0g_ref[0] + t0bt_ref[0], 0.0)     # [N, HH]
        feat_sum = z
        cur = z + cf * noise_ref[0, 0]
        for d in range(fractal_depth - 1):
            zz = jnp.dot(cur.astype(BF16), trw_ref[0, d],
                         preferred_element_type=jnp.float32) + trb_ref[0, d]
            zz = jnp.maximum(_ln(zz) * trg_ref[0, d] + trbt_ref[0, d], 0.0)
            feat_sum = feat_sum + zz
            if d < fractal_depth - 2:
                # noise after the last depth never affects the output (h replaced by mean)
                cur = zz + cf * noise_ref[0, d + 1]
        hm = feat_sum * (1.0 / fractal_depth)                       # [N, HH]

        # ---- FractalAttention: all heads lane-stacked (N, heads*N), MXU-heavy ------------
        # logits for all heads at once via pre-expanded block weights (HH, HN):
        a_dst_rep = jnp.dot(hm, awd_ref[0],
                            preferred_element_type=jnp.float32)     # [i, k*N+j] = a_dst(i,k)
        a_src_spread = jnp.dot(hm, aws_ref[0],
                               preferred_element_type=jnp.float32)  # [i, k*N+j] = a_src(i,k)
        # select the "diagonal" src row per lane: one masked sublane reduce (vs 8 transposes)
        a_src_row = jnp.sum(a_src_spread * srcsel_ref[...],
                            axis=0, keepdims=True)                  # (1, HN): a_src(j,k)
        alpha = a_dst_rep + a_src_row                               # (N, HN)
        alpha = jnp.where(alpha >= 0, alpha, 0.2 * alpha)           # leaky_relu(0.2)
        adjrep = adjrep_ref[...]                                    # adj tiled across heads
        masked = jnp.where(adjrep > 0, alpha, jnp.float32(-1e30))
        # row-global max is a per-row constant shift -> per-head softmax unchanged (exact)
        m_row = jnp.max(masked, axis=-1, keepdims=True)
        p = jnp.exp(masked - m_row) * adjrep
        # per-head denominators broadcast back to lanes with one block-ones matmul
        denom_rep = jnp.dot(p, blkones_ref[...],
                            preferred_element_type=jnp.float32)
        wgt = p / (denom_rep + 1e-16)                               # rows w/o edges -> 0
        # head-major feature stack (HN, H) built with constant matmuls (no reshapes), then
        # one matmul gives the head-summed aggregation.
        hm_rep = jnp.dot(rmat_ref[...], hm,
                         preferred_element_type=jnp.float32)        # (HN, HH): row k*N+j = hm[j]
        x_stk = jnp.dot(hm_rep * hmask_ref[...], hsum_ref[...],
                        preferred_element_type=jnp.float32)         # (HN, H): head-k feats of j
        h_attn = jnp.dot(wgt, x_stk,
                         preferred_element_type=jnp.float32) * (1.0 / heads)   # [N, H]

        # ---- evolution gate + residual mix + layer_norm (no affine) ----------------------
        z1 = jnp.maximum(
            jnp.dot(h_attn, ew1_ref[...], preferred_element_type=jnp.float32)
            + eb1_ref[...], 0.0)
        z2 = jnp.tanh(
            jnp.dot(z1, ew2_ref[...], preferred_element_type=jnp.float32) + eb2_ref[...])
        gate = jax.nn.sigmoid(z2)
        h_res = gate * h_attn + (1.0 - gate) * h_prev
        res_acc[...] = res_acc[...] + h_res
        h_carry[...] = _ln(h_res)

        # ---- finalize: residual mean + fused (padded, lane-dense) decoders ---------------
        @pl.when(i == num_layers - 1)
        def _():
            hmulti = res_acc[...] * (1.0 / num_layers)
            h_multi_ref[...] = hmulti
            dec_ref[...] = jnp.dot(hmulti, dw_ref[...],
                                   preferred_element_type=jnp.float32) + db_ref[...]

    def const_spec(shape):               # constant (non-layer-indexed) block
        nd = len(shape)
        return pl.BlockSpec(shape, lambda i, nd=nd: (0,) * nd)

    def layer_spec(shape):               # layer-indexed block (leading axis = layer)
        nrest = len(shape) - 1
        return pl.BlockSpec(shape, lambda i, nrest=nrest: (i,) + (0,) * nrest)

    FDm1 = fractal_depth - 1
    in_specs = [
        const_spec((n, num_features)),                              # x
        const_spec((n, HN)),                                        # adj tiled across heads
        const_spec((num_features, H)), const_spec((1, H)),          # encoder W, b
        const_spec((1, H)), const_spec((1, H)),                     # encoder LN gamma, beta
        const_spec((1, H)),                                         # chaos_memory
        layer_spec((1, H, HH)),                                     # t0_w  (bf16)
        layer_spec((1, 1, HH)), layer_spec((1, 1, HH)), layer_spec((1, 1, HH)),
        layer_spec((1, FDm1, HH, HH)),                              # tr_w  (bf16)
        layer_spec((1, FDm1, 1, HH)), layer_spec((1, FDm1, 1, HH)), layer_spec((1, FDm1, 1, HH)),
        layer_spec((1, FDm1, n, HH)),                               # precomputed chaos noise
        layer_spec((1, HH, HN)),                                    # att_dst (lane-stacked)
        layer_spec((1, HH, HN)),                                    # att_src (lane-stacked)
        const_spec((n, HN)),                                        # SrcSel
        const_spec((HN, HN)),                                       # block-ones (per-head sum)
        const_spec((HN, n)),                                        # R (row replicate)
        const_spec((HN, HH)),                                       # head mask
        const_spec((HH, H)),                                        # head fold
        const_spec((H, 2 * H)), const_spec((1, 2 * H)),             # evolution MLP
        const_spec((2 * H, H)), const_spec((1, H)),
        const_spec((H, DEC_PAD)), const_spec((1, DEC_PAD)),         # fused decoders
    ]
    out_specs = (
        const_spec((n, H)),          # h_multi
        const_spec((n, DEC_PAD)),    # fused decoder output (lane-dense)
    )
    grid_spec = pltpu.PrefetchScalarGridSpec(
        num_scalar_prefetch=0,
        grid=(num_layers,),
        in_specs=in_specs,
        out_specs=out_specs,
        scratch_shapes=[pltpu.VMEM((n, H), jnp.float32),    # h carried across layers
                        pltpu.VMEM((n, H), jnp.float32)],   # residual accumulator
    )
    # Single grid axis is a sequential carry -> default ("arbitrary") semantics.
    return pl.pallas_call(
        kernel,
        out_shape=(jax.ShapeDtypeStruct((n, H), F32),
                   jax.ShapeDtypeStruct((n, DEC_PAD), F32)),
        grid_spec=grid_spec,
    )


# ----------------------------------------------------------------------------
# Parameters (deterministic init, PyTorch-Linear-style uniform), stacked per layer
# ----------------------------------------------------------------------------
def _dense(key, fan_in, fan_out):
    kw, kb = jax.random.split(key)
    bound = 1.0 / (fan_in ** 0.5)
    w = jax.random.uniform(kw, (fan_in, fan_out), F32, -bound, bound)
    b = jax.random.uniform(kb, (1, fan_out), F32, -bound, bound)
    return w, b


def init_params(key, num_features, hidden_dim, output_dim, num_layers,
                fractal_depth, heads):
    assert fractal_depth >= 2, "kernel packs depths >= 1 into a stacked tensor"
    H, HH = hidden_dim, hidden_dim * heads
    p = {}
    k_enc, k_mem, k_lay, k_evo, k_dec = jax.random.split(key, 5)

    p["enc_w"], p["enc_b"] = _dense(k_enc, num_features, H)
    p["enc_g"] = jnp.ones((1, H), F32)
    p["enc_beta"] = jnp.zeros((1, H), F32)
    p["chaos_memory"] = jax.random.normal(k_mem, (1, H), F32)

    t0w, t0b, t0g, t0bt = [], [], [], []
    trw, trb, trg, trbt = [], [], [], []
    attd, atts = [], []
    for i in range(num_layers):
        kl = jax.random.fold_in(k_lay, i)
        kd = jax.random.fold_in(kl, 0)
        w, b = _dense(kd, H, HH)
        t0w.append(w); t0b.append(b)
        t0g.append(jnp.ones((1, HH), F32)); t0bt.append(jnp.zeros((1, HH), F32))
        ws, bs, gs, bts = [], [], [], []
        for d in range(1, fractal_depth):
            kd = jax.random.fold_in(kl, d)
            w, b = _dense(kd, HH, HH)
            ws.append(w); bs.append(b)
            gs.append(jnp.ones((1, HH), F32)); bts.append(jnp.zeros((1, HH), F32))
        trw.append(jnp.stack(ws)); trb.append(jnp.stack(bs))
        trg.append(jnp.stack(gs)); trbt.append(jnp.stack(bts))
        # att parameter: [heads, 2*H]
        # TODO(synk): gain uses fan = heads + 2*H, which differs from PyG glorot on (1,heads,2H)
        ka = jax.random.fold_in(kl, 1000)
        gain = (6.0 / (heads + 2 * H)) ** 0.5
        att = jax.random.uniform(ka, (heads, 2 * H), F32, -gain, gain)
        attd.append(att[:, :H]); atts.append(att[:, H:])

    # big HHxHH fractal weights in bf16 (native MXU path, half the weight DMA);
    # biases / LN params / everything else stays f32.
    p["t0_w"] = jnp.stack(t0w).astype(BF16)
    p["t0_b"] = jnp.stack(t0b)
    p["t0_g"] = jnp.stack(t0g); p["t0_beta"] = jnp.stack(t0bt)
    p["tr_w"] = jnp.stack(trw).astype(BF16)
    p["tr_b"] = jnp.stack(trb)
    p["tr_g"] = jnp.stack(trg); p["tr_beta"] = jnp.stack(trbt)
    p["att_dst"] = jnp.stack(attd)          # (num_layers, heads, H)
    p["att_src"] = jnp.stack(atts)

    k1, k2 = jax.random.split(k_evo)
    p["ev_w1"], p["ev_b1"] = _dense(k1, H, 2 * H)
    p["ev_w2"], p["ev_b2"] = _dense(k2, 2 * H, H)

    kd = jax.random.split(k_dec, 4)
    ws, bs = [], []
    for kk, outd in zip(kd, (1, 1, 1, output_dim)):
        w, b = _dense(kk, H, outd)
        ws.append(w); bs.append(b)
    w_cat = jnp.concatenate(ws, axis=1)     # [H, 3 + output_dim]
    b_cat = jnp.concatenate(bs, axis=1)
    ncol = 3 + output_dim
    assert ncol <= DEC_PAD
    p["dec_w"] = jnp.pad(w_cat, ((0, 0), (0, DEC_PAD - ncol)))
    p["dec_b"] = jnp.pad(b_cat, ((0, 0), (0, DEC_PAD - ncol)))
    return p


# ----------------------------------------------------------------------------
# Forward pass (one fused pallas_call + trivial output slicing)
# ----------------------------------------------------------------------------
def chaotic_evolution_gnn_forward(params, x, adj, noise, *, chaos_factor, num_layers,
                                  fractal_depth, heads, hidden_dim, output_dim):
    n, num_features = x.shape
    H = hidden_dim
    HH = H * heads
    HN = heads * n

    # Structural constants for the lane-stacked head layout (constant-folded under jit).
    eye_n = jnp.eye(n, dtype=F32)
    srcsel = jnp.tile(eye_n, (1, heads))                               # (n, HN)
    rmat = jnp.tile(eye_n, (heads, 1))                                 # (HN, n)
    blkones = jnp.kron(jnp.eye(heads, dtype=F32), jnp.ones((n, n), F32))  # (HN, HN)
    lane_head = jnp.arange(HN) // n
    feat_head = jnp.arange(HH) // H
    feat_pos = jnp.arange(HH) % H
    hmask = (lane_head[:, None] == feat_head[None, :]).astype(F32)     # (HN, HH)
    hsum = (feat_pos[:, None] == jnp.arange(H)[None, :]).astype(F32)   # (HH, H)
    adj_rep = jnp.tile(adj, (1, heads))                                # (n, HN)

    # Per-layer attention weights expanded to the lane-stacked layout: (NL, HH, HN)
    att_d_flat = params["att_dst"].reshape(num_layers, HH)
    att_s_flat = params["att_src"].reshape(num_layers, HH)
    m = jnp.transpose(hmask)                                           # (HH, HN)
    awd = att_d_flat[:, :, None] * m[None]
    aws = att_s_flat[:, :, None] * m[None]

    fwd = _build_megakernel(
        n=n, num_features=num_features, hidden_dim=hidden_dim,
        num_layers=num_layers, fractal_depth=fractal_depth, heads=heads,
        chaos_factor=chaos_factor)
    h_multi, dec = fwd(
        x, adj_rep,
        params["enc_w"], params["enc_b"], params["enc_g"], params["enc_beta"],
        params["chaos_memory"],
        params["t0_w"], params["t0_b"], params["t0_g"], params["t0_beta"],
        params["tr_w"], params["tr_b"], params["tr_g"], params["tr_beta"],
        noise, awd, aws,
        srcsel, blkones, rmat, hmask, hsum,
        params["ev_w1"], params["ev_b1"], params["ev_w2"], params["ev_b2"],
        params["dec_w"], params["dec_b"])
    # batch is None in the reference -> decoders are applied per node (to h_multi)
    outputs = {
        "state": dec[:, 0:1],
        "importance": dec[:, 1:2],
        "chaos": dec[:, 2:3],
        "evolution": dec[:, 3:3 + output_dim],
    }
    return outputs, h_multi


# ----------------------------------------------------------------------------
if __name__ == "__main__":
    N, NUM_FEATURES, HIDDEN, OUT = 16, 16, 32, 8
    NUM_LAYERS, FRACTAL_DEPTH, HEADS = 3, 3, 8
    CHAOS = 0.1

    key = jax.random.PRNGKey(0)
    k_param, k_x, k_edge, k_noise = jax.random.split(key, 4)

    params = init_params(k_param, NUM_FEATURES, HIDDEN, OUT,
                         NUM_LAYERS, FRACTAL_DEPTH, HEADS)
    x = jax.random.normal(k_x, (N, NUM_FEATURES), F32)

    # deterministic graph: ring edges + random extra edges -> dense adjacency mask
    ke1, ke2 = jax.random.split(k_edge)
    src = jnp.concatenate([jnp.arange(N), jax.random.randint(ke1, (24,), 0, N)])
    dst = jnp.concatenate([(jnp.arange(N) + 1) % N, jax.random.randint(ke2, (24,), 0, N)])
    adj = jnp.zeros((N, N), F32).at[dst, src].set(1.0)   # adj[i, j] = 1 iff edge j -> i

    # precomputed chaos noise (one [N, heads*H] draw per layer per fractal depth step;
    # TODO(synk): torch.randn_like RNG stream itself is not reproducible)
    noise = jax.random.normal(
        k_noise, (NUM_LAYERS, FRACTAL_DEPTH - 1, N, HIDDEN * HEADS), F32)

    fwd = jax.jit(functools.partial(
        chaotic_evolution_gnn_forward,
        chaos_factor=CHAOS, num_layers=NUM_LAYERS, fractal_depth=FRACTAL_DEPTH,
        heads=HEADS, hidden_dim=HIDDEN, output_dim=OUT))

    outputs, h_multi = fwd(params, x, adj, noise)
    jax.block_until_ready((outputs, h_multi))

    assert h_multi.shape == (N, HIDDEN)
    assert outputs["state"].shape == (N, 1)
    assert outputs["importance"].shape == (N, 1)
    assert outputs["chaos"].shape == (N, 1)
    assert outputs["evolution"].shape == (N, OUT)
    assert bool(jnp.all(jnp.isfinite(h_multi)))
    assert bool(jnp.all(jnp.isfinite(outputs["evolution"])))
    print("KERNEL_OK")
</pallas_src>

<mosaic_0001>
module attributes {stable_mosaic.version = 11 : i64} {
  func.func @kernel(%arg0: i32, %arg1: memref<16x16xf32, #tpu.memory_space<vmem>>, %arg2: memref<16x128xf32, #tpu.memory_space<vmem>>, %arg3: memref<16x32xf32, #tpu.memory_space<vmem>>, %arg4: memref<1x32xf32, #tpu.memory_space<vmem>>, %arg5: memref<1x32xf32, #tpu.memory_space<vmem>>, %arg6: memref<1x32xf32, #tpu.memory_space<vmem>>, %arg7: memref<1x32xf32, #tpu.memory_space<vmem>>, %arg8: memref<1x32x256xbf16, #tpu.memory_space<vmem>>, %arg9: memref<1x1x256xf32, #tpu.memory_space<vmem>>, %arg10: memref<1x1x256xf32, #tpu.memory_space<vmem>>, %arg11: memref<1x1x256xf32, #tpu.memory_space<vmem>>, %arg12: memref<1x2x256x256xbf16, #tpu.memory_space<vmem>>, %arg13: memref<1x2x1x256xf32, #tpu.memory_space<vmem>>, %arg14: memref<1x2x1x256xf32, #tpu.memory_space<vmem>>, %arg15: memref<1x2x1x256xf32, #tpu.memory_space<vmem>>, %arg16: memref<1x2x16x256xf32, #tpu.memory_space<vmem>>, %arg17: memref<1x256x128xf32, #tpu.memory_space<vmem>>, %arg18: memref<1x256x128xf32, #tpu.memory_space<vmem>>, %arg19: memref<16x128xf32, #tpu.memory_space<vmem>>, %arg20: memref<128x128xf32, #tpu.memory_space<vmem>>, %arg21: memref<128x16xf32, #tpu.memory_space<vmem>>, %arg22: memref<128x256xf32, #tpu.memory_space<vmem>>, %arg23: memref<256x32xf32, #tpu.memory_space<vmem>>, %arg24: memref<32x64xf32, #tpu.memory_space<vmem>>, %arg25: memref<1x64xf32, #tpu.memory_space<vmem>>, %arg26: memref<64x32xf32, #tpu.memory_space<vmem>>, %arg27: memref<1x32xf32, #tpu.memory_space<vmem>>, %arg28: memref<32x128xf32, #tpu.memory_space<vmem>>, %arg29: memref<1x128xf32, #tpu.memory_space<vmem>>, %arg30: memref<16x32xf32, #tpu.memory_space<vmem>>, %arg31: memref<16x128xf32, #tpu.memory_space<vmem>>, %arg32: memref<16x32xf32, #tpu.memory_space<vmem>>, %arg33: memref<16x32xf32, #tpu.memory_space<vmem>>) attributes {dimension_semantics = [#tpu.dimension_semantics<arbitrary>], iteration_bounds = array<i64: 3>, scalar_prefetch = 0 : i64, scratch_operands = 2 : i64, tpu.core_type = #tpu.core_type<tc>, window_params = [{pipeline_mode = #tpu.pipeline_mode<synchronous>, transform_indices = @transform_0, window_bounds = array<i64: 16, 16>}, {pipeline_mode = #tpu.pipeline_mode<synchronous>, transform_indices = @transform_1, window_bounds = array<i64: 16, 128>}, {pipeline_mode = #tpu.pipeline_mode<synchronous>, transform_indices = @transform_2, window_bounds = array<i64: 16, 32>}, {pipeline_mode = #tpu.pipeline_mode<synchronous>, transform_indices = @transform_3, window_bounds = array<i64: 1, 32>}, {pipeline_mode = #tpu.pipeline_mode<synchronous>, transform_indices = @transform_4, window_bounds = array<i64: 1, 32>}, {pipeline_mode = #tpu.pipeline_mode<synchronous>, transform_indices = @transform_5, window_bounds = array<i64: 1, 32>}, {pipeline_mode = #tpu.pipeline_mode<synchronous>, transform_indices = @transform_6, window_bounds = array<i64: 1, 32>}, {transform_indices = @transform_7, window_bounds = array<i64: 1, 32, 256>}, {transform_indices = @transform_8, window_bounds = array<i64: 1, 1, 256>}, {transform_indices = @transform_9, window_bounds = array<i64: 1, 1, 256>}, {transform_indices = @transform_10, window_bounds = array<i64: 1, 1, 256>}, {transform_indices = @transform_11, window_bounds = array<i64: 1, 2, 256, 256>}, {transform_indices = @transform_12, window_bounds = array<i64: 1, 2, 1, 256>}, {transform_indices = @transform_13, window_bounds = array<i64: 1, 2, 1, 256>}, {transform_indices = @transform_14, window_bounds = array<i64: 1, 2, 1, 256>}, {transform_indices = @transform_15, window_bounds = array<i64: 1, 2, 16, 256>}, {transform_indices = @transform_16, window_bounds = array<i64: 1, 256, 128>}, {transform_indices = @transform_17, window_bounds = array<i64: 1, 256, 128>}, {pipeline_mode = #tpu.pipeline_mode<synchronous>, transform_indices = @transform_18, window_bounds = array<i64: 16, 128>}, {pipeline_mode = #tpu.pipeline_mode<synchronous>, transform_indices = @transform_19, window_bounds = array<i64: 128, 128>}, {pipeline_mode = #tpu.pipeline_mode<synchronous>, transform_indices = @transform_20, window_bounds = array<i64: 128, 16>}, {pipeline_mode = #tpu.pipeline_mode<synchronous>, transform_indices = @transform_21, window_bounds = array<i64: 128, 256>}, {pipeline_mode = #tpu.pipeline_mode<synchronous>, transform_indices = @transform_22, window_bounds = array<i64: 256, 32>}, {pipeline_mode = #tpu.pipeline_mode<synchronous>, transform_indices = @transform_23, window_bounds = array<i64: 32, 64>}, {pipeline_mode = #tpu.pipeline_mode<synchronous>, transform_indices = @transform_24, window_bounds = array<i64: 1, 64>}, {pipeline_mode = #tpu.pipeline_mode<synchronous>, transform_indices = @transform_25, window_bounds = array<i64: 64, 32>}, {pipeline_mode = #tpu.pipeline_mode<synchronous>, transform_indices = @transform_26, window_bounds = array<i64: 1, 32>}, {pipeline_mode = #tpu.pipeline_mode<synchronous>, transform_indices = @transform_27, window_bounds = array<i64: 32, 128>}, {pipeline_mode = #tpu.pipeline_mode<synchronous>, transform_indices = @transform_28, window_bounds = array<i64: 1, 128>}, {pipeline_mode = #tpu.pipeline_mode<synchronous>, transform_indices = @transform_29, window_bounds = array<i64: 16, 32>}, {pipeline_mode = #tpu.pipeline_mode<synchronous>, transform_indices = @transform_30, window_bounds = array<i64: 16, 128>}]} {
    %c0_i32 = arith.constant 0 : i32
    %0 = arith.cmpi eq, %arg0, %c0_i32 : i32
    %1 = arith.extui %0 : i1 to i32
    %c0_i32_0 = arith.constant 0 : i32
    %2 = arith.cmpi ne, %1, %c0_i32_0 : i32
    scf.if %2 {
      %c0_134 = arith.constant 0 : index
      %c0_135 = arith.constant 0 : index
      %220 = vector.load %arg1[%c0_134, %c0_135] : memref<16x16xf32, #tpu.memory_space<vmem>>, vector<16x16xf32>
      %c0_136 = arith.constant 0 : index
      %c0_137 = arith.constant 0 : index
      %221 = vector.load %arg3[%c0_136, %c0_137] : memref<16x32xf32, #tpu.memory_space<vmem>>, vector<16x32xf32>
      %cst_138 = arith.constant dense<0.000000e+00> : vector<16x32xf32>
      %222 = tpu.matmul %220, %221, %cst_138 {dimension_numbers = #tpu.dot_dimension_numbers<[1], [0], [0], [1], [0, 0, 1, 1], [], []>} : vector<16x16xf32>, vector<16x32xf32>, vector<16x32xf32> -> vector<16x32xf32>
      %c0_139 = arith.constant 0 : index
      %c0_140 = arith.constant 0 : index
      %223 = vector.load %arg4[%c0_139, %c0_140] : memref<1x32xf32, #tpu.memory_space<vmem>>, vector<1x32xf32>
      %224 = vector.broadcast %223 : vector<1x32xf32> to vector<16x32xf32>
      %225 = arith.addf %222, %224 : vector<16x32xf32>
      %cst_141 = arith.constant dense<0.000000e+00> : vector<16xf32>
      %226 = vector.multi_reduction <add>, %225, %cst_141 [1] : vector<16x32xf32> to vector<16xf32>
      %227 = vector.shape_cast %226 : vector<16xf32> to vector<16x1xf32>
      %cst_142 = arith.constant 3.200000e+01 : f32
      %228 = vector.broadcast %cst_142 : f32 to vector<16x1xf32>
      %229 = arith.divf %227, %228 : vector<16x1xf32>
      %230 = vector.broadcast %229 : vector<16x1xf32> to vector<16x32xf32>
      %231 = arith.subf %225, %230 : vector<16x32xf32>
      %232 = arith.mulf %231, %231 : vector<16x32xf32>
      %cst_143 = arith.constant dense<0.000000e+00> : vector<16xf32>
      %233 = vector.multi_reduction <add>, %232, %cst_143 [1] : vector<16x32xf32> to vector<16xf32>
      %234 = vector.shape_cast %233 : vector<16xf32> to vector<16x1xf32>
      %cst_144 = arith.constant 3.200000e+01 : f32
      %235 = vector.broadcast %cst_144 : f32 to vector<16x1xf32>
      %236 = arith.divf %234, %235 : vector<16x1xf32>
      %237 = vector.broadcast %229 : vector<16x1xf32> to vector<16x32xf32>
      %238 = arith.subf %225, %237 : vector<16x32xf32>
      %cst_145 = arith.constant 9.99999974E-6 : f32
      %239 = vector.broadcast %cst_145 : f32 to vector<16x1xf32>
      %240 = arith.addf %236, %239 : vector<16x1xf32>
      %241 = math.rsqrt %240 : vector<16x1xf32>
      %242 = vector.broadcast %241 : vector<16x1xf32> to vector<16x32xf32>
      %243 = arith.mulf %238, %242 : vector<16x32xf32>
      %c0_146 = arith.constant 0 : index
      %c0_147 = arith.constant 0 : index
      %244 = vector.load %arg5[%c0_146, %c0_147] : memref<1x32xf32, #tpu.memory_space<vmem>>, vector<1x32xf32>
      %245 = vector.broadcast %244 : vector<1x32xf32> to vector<16x32xf32>
      %246 = arith.mulf %243, %245 : vector<16x32xf32>
      %c0_148 = arith.constant 0 : index
      %c0_149 = arith.constant 0 : index
      %247 = vector.load %arg6[%c0_148, %c0_149] : memref<1x32xf32, #tpu.memory_space<vmem>>, vector<1x32xf32>
      %248 = vector.broadcast %247 : vector<1x32xf32> to vector<16x32xf32>
      %249 = arith.addf %246, %248 : vector<16x32xf32>
      %cst_150 = arith.constant 0.000000e+00 : f32
      %250 = vector.broadcast %cst_150 : f32 to vector<16x32xf32>
      %251 = arith.maximumf %249, %250 : vector<16x32xf32>
      %c0_151 = arith.constant 0 : index
      %c0_152 = arith.constant 0 : index
      %252 = vector.load %arg7[%c0_151, %c0_152] : memref<1x32xf32, #tpu.memory_space<vmem>>, vector<1x32xf32>
      %cst_153 = arith.constant 1.000000e-01 : f32
      %253 = vector.broadcast %cst_153 : f32 to vector<1x32xf32>
      %254 = arith.mulf %252, %253 : vector<1x32xf32>
      %255 = vector.broadcast %254 : vector<1x32xf32> to vector<16x32xf32>
      %256 = arith.addf %251, %255 : vector<16x32xf32>
      %c0_154 = arith.constant 0 : index
      %c0_155 = arith.constant 0 : index
      %257 = vector.load %arg32[%c0_154, %c0_155] : memref<16x32xf32, #tpu.memory_space<vmem>>, vector<16x32xf32>
      tpu.vector_store %arg32[%c0_154, %c0_155], %256 {strides = array<i32>} : memref<16x32xf32, #tpu.memory_space<vmem>>, vector<16x32xf32>,
      %cst_156 = arith.constant 0.000000e+00 : f32
      %258 = vector.broadcast %cst_156 : f32 to vector<16x32xf32>
      %c0_157 = arith.constant 0 : index
      %c0_158 = arith.constant 0 : index
      %259 = vector.load %arg33[%c0_157, %c0_158] : memref<16x32xf32, #tpu.memory_space<vmem>>, vector<16x32xf32>
      tpu.vector_store %arg33[%c0_157, %c0_158], %258 {strides = array<i32>} : memref<16x32xf32, #tpu.memory_space<vmem>>, vector<16x32xf32>,
    } else {
    }
    %c0 = arith.constant 0 : index
    %c0_1 = arith.constant 0 : index
    %3 = vector.load %arg32[%c0, %c0_1] : memref<16x32xf32, #tpu.memory_space<vmem>>, vector<16x32xf32>
    %4 = arith.sitofp %arg0 : i32 to f32
    %cst = arith.constant 1.000000e-01 : f32
    %5 = arith.mulf %cst, %4 : f32
    %cst_2 = arith.constant 1.000000e+00 : f32
    %6 = arith.addf %cst_2, %5 : f32
    %cst_3 = arith.constant 1.000000e-01 : f32
    %7 = arith.mulf %cst_3, %6 : f32
    %8 = arith.truncf %3 : vector<16x32xf32> to vector<16x32xbf16>
    %c0_4 = arith.constant 0 : index
    %c0_5 = arith.constant 0 : index
    %c0_6 = arith.constant 0 : index
    %9 = vector.load %arg8[%c0_4, %c0_5, %c0_6] : memref<1x32x256xbf16, #tpu.memory_space<vmem>>, vector<1x32x256xbf16>
    %10 = vector.shape_cast %9 : vector<1x32x256xbf16> to vector<32x256xbf16>
    %cst_7 = arith.constant dense<0.000000e+00> : vector<16x256xf32>
    %11 = tpu.matmul %8, %10, %cst_7 {dimension_numbers = #tpu.dot_dimension_numbers<[1], [0], [0], [1], [0, 0, 1, 1], [], []>} : vector<16x32xbf16>, vector<32x256xbf16>, vector<16x256xf32> -> vector<16x256xf32>
    %c0_8 = arith.constant 0 : index
    %c0_9 = arith.constant 0 : index
    %c0_10 = arith.constant 0 : index
    %12 = vector.load %arg9[%c0_8, %c0_9, %c0_10] : memref<1x1x256xf32, #tpu.memory_space<vmem>>, vector<1x1x256xf32>
    %13 = vector.shape_cast %12 : vector<1x1x256xf32> to vector<1x256xf32>
    %14 = vector.broadcast %13 : vector<1x256xf32> to vector<16x256xf32>
    %15 = arith.addf %11, %14 : vector<16x256xf32>
    %cst_11 = arith.constant dense<0.000000e+00> : vector<16xf32>
    %16 = vector.multi_reduction <add>, %15, %cst_11 [1] : vector<16x256xf32> to vector<16xf32>
    %17 = vector.shape_cast %16 : vector<16xf32> to vector<16x1xf32>
    %cst_12 = arith.constant 2.560000e+02 : f32
    %18 = vector.broadcast %cst_12 : f32 to vector<16x1xf32>
    %19 = arith.divf %17, %18 : vector<16x1xf32>
    %20 = vector.broadcast %19 : vector<16x1xf32> to vector<16x256xf32>
    %21 = arith.subf %15, %20 : vector<16x256xf32>
    %22 = arith.mulf %21, %21 : vector<16x256xf32>
    %cst_13 = arith.constant dense<0.000000e+00> : vector<16xf32>
    %23 = vector.multi_reduction <add>, %22, %cst_13 [1] : vector<16x256xf32> to vector<16xf32>
    %24 = vector.shape_cast %23 : vector<16xf32> to vector<16x1xf32>
    %cst_14 = arith.constant 2.560000e+02 : f32
    %25 = vector.broadcast %cst_14 : f32 to vector<16x1xf32>
    %26 = arith.divf %24, %25 : vector<16x1xf32>
    %27 = vector.broadcast %19 : vector<16x1xf32> to vector<16x256xf32>
    %28 = arith.subf %15, %27 : vector<16x256xf32>
    %cst_15 = arith.constant 9.99999974E-6 : f32
    %29 = vector.broadcast %cst_15 : f32 to vector<16x1xf32>
    %30 = arith.addf %26, %29 : vector<16x1xf32>
    %31 = math.rsqrt %30 : vector<16x1xf32>
    %32 = vector.broadcast %31 : vector<16x1xf32> to vector<16x256xf32>
    %33 = arith.mulf %28, %32 : vector<16x256xf32>
    %c0_16 = arith.constant 0 : index
    %c0_17 = arith.constant 0 : index
    %c0_18 = arith.constant 0 : index
    %34 = vector.load %arg10[%c0_16, %c0_17, %c0_18] : memref<1x1x256xf32, #tpu.memory_space<vmem>>, vector<1x1x256xf32>
    %35 = vector.shape_cast %34 : vector<1x1x256xf32> to vector<1x256xf32>
    %36 = vector.broadcast %35 : vector<1x256xf32> to vector<16x256xf32>
    %37 = arith.mulf %33, %36 : vector<16x256xf32>
    %c0_19 = arith.constant 0 : index
    %c0_20 = arith.constant 0 : index
    %c0_21 = arith.constant 0 : index
    %38 = vector.load %arg11[%c0_19, %c0_20, %c0_21] : memref<1x1x256xf32, #tpu.memory_space<vmem>>, vector<1x1x256xf32>
    %39 = vector.shape_cast %38 : vector<1x1x256xf32> to vector<1x256xf32>
    %40 = vector.broadcast %39 : vector<1x256xf32> to vector<16x256xf32>
    %41 = arith.addf %37, %40 : vector<16x256xf32>
    %cst_22 = arith.constant 0.000000e+00 : f32
    %42 = vector.broadcast %cst_22 : f32 to vector<16x256xf32>
    %43 = arith.maximumf %41, %42 : vector<16x256xf32>
    %c0_23 = arith.constant 0 : index
    %c0_24 = arith.constant 0 : index
    %c0_25 = arith.constant 0 : index
    %c0_26 = arith.constant 0 : index
    %44 = vector.load %arg16[%c0_23, %c0_24, %c0_25, %c0_26] : memref<1x2x16x256xf32, #tpu.memory_space<vmem>>, vector<1x1x16x256xf32>
    %45 = vector.shape_cast %44 : vector<1x1x16x256xf32> to vector<16x256xf32>
    %46 = vector.broadcast %7 : f32 to vector<16x256xf32>
    %47 = arith.mulf %46, %45 : vector<16x256xf32>
    %48 = arith.addf %43, %47 : vector<16x256xf32>
    %49 = arith.truncf %48 : vector<16x256xf32> to vector<16x256xbf16>
    %c0_27 = arith.constant 0 : index
    %c0_28 = arith.constant 0 : index
    %c0_29 = arith.constant 0 : index
    %c0_30 = arith.constant 0 : index
    %50 = vector.load %arg12[%c0_27, %c0_28, %c0_29, %c0_30] : memref<1x2x256x256xbf16, #tpu.memory_space<vmem>>, vector<1x1x256x256xbf16>
    %51 = vector.shape_cast %50 : vector<1x1x256x256xbf16> to vector<256x256xbf16>
    %cst_31 = arith.constant dense<0.000000e+00> : vector<16x256xf32>
    %52 = tpu.matmul %49, %51, %cst_31 {dimension_numbers = #tpu.dot_dimension_numbers<[1], [0], [0], [1], [0, 0, 1, 1], [], []>} : vector<16x256xbf16>, vector<256x256xbf16>, vector<16x256xf32> -> vector<16x256xf32>
    %c0_32 = arith.constant 0 : index
    %c0_33 = arith.constant 0 : index
    %c0_34 = arith.constant 0 : index
    %c0_35 = arith.constant 0 : index
    %53 = vector.load %arg13[%c0_32, %c0_33, %c0_34, %c0_35] : memref<1x2x1x256xf32, #tpu.memory_space<vmem>>, vector<1x1x1x256xf32>
    %54 = vector.shape_cast %53 : vector<1x1x1x256xf32> to vector<1x256xf32>
    %55 = vector.broadcast %54 : vector<1x256xf32> to vector<16x256xf32>
    %56 = arith.addf %52, %55 : vector<16x256xf32>
    %cst_36 = arith.constant dense<0.000000e+00> : vector<16xf32>
    %57 = vector.multi_reduction <add>, %56, %cst_36 [1] : vector<16x256xf32> to vector<16xf32>
    %58 = vector.shape_cast %57 : vector<16xf32> to vector<16x1xf32>
    %cst_37 = arith.constant 2.560000e+02 : f32
    %59 = vector.broadcast %cst_37 : f32 to vector<16x1xf32>
    %60 = arith.divf %58, %59 : vector<16x1xf32>
    %61 = vector.broadcast %60 : vector<16x1xf32> to vector<16x256xf32>
    %62 = arith.subf %56, %61 : vector<16x256xf32>
    %63 = arith.mulf %62, %62 : vector<16x256xf32>
    %cst_38 = arith.constant dense<0.000000e+00> : vector<16xf32>
    %64 = vector.multi_reduction <add>, %63, %cst_38 [1] : vector<16x256xf32> to vector<16xf32>
    %65 = vector.shape_cast %64 : vector<16xf32> to vector<16x1xf32>
    %cst_39 = arith.constant 2.560000e+02 : f32
    %66 = vector.broadcast %cst_39 : f32 to vector<16x1xf32>
    %67 = arith.divf %65, %66 : vector<16x1xf32>
    %68 = vector.broadcast %60 : vector<16x1xf32> to vector<16x256xf32>
    %69 = arith.subf %56, %68 : vector<16x256xf32>
    %cst_40 = arith.constant 9.99999974E-6 : f32
    %70 = vector.broadcast %cst_40 : f32 to vector<16x1xf32>
    %71 = arith.addf %67, %70 : vector<16x1xf32>
    %72 = math.rsqrt %71 : vector<16x1xf32>
    %73 = vector.broadcast %72 : vector<16x1xf32> to vector<16x256xf32>
    %74 = arith.mulf %69, %73 : vector<16x256xf32>
    %c0_41 = arith.constant 0 : index
    %c0_42 = arith.constant 0 : index
    %c0_43 = arith.constant 0 : index
    %c0_44 = arith.constant 0 : index
    %75 = vector.load %arg14[%c0_41, %c0_42, %c0_43, %c0_44] : memref<1x2x1x256xf32, #tpu.memory_space<vmem>>, vector<1x1x1x256xf32>
    %76 = vector.shape_cast %75 : vector<1x1x1x256xf32> to vector<1x256xf32>
    %77 = vector.broadcast %76 : vector<1x256xf32> to vector<16x256xf32>
    %78 = arith.mulf %74, %77 : vector<16x256xf32>
    %c0_45 = arith.constant 0 : index
    %c0_46 = arith.constant 0 : index
    %c0_47 = arith.constant 0 : index
    %c0_48 = arith.constant 0 : index
    %79 = vector.load %arg15[%c0_45, %c0_46, %c0_47, %c0_48] : memref<1x2x1x256xf32, #tpu.memory_space<vmem>>, vector<1x1x1x256xf32>
    %80 = vector.shape_cast %79 : vector<1x1x1x256xf32> to vector<1x256xf32>
    %81 = vector.broadcast %80 : vector<1x256xf32> to vector<16x256xf32>
    %82 = arith.addf %78, %81 : vector<16x256xf32>
    %cst_49 = arith.constant 0.000000e+00 : f32
    %83 = vector.broadcast %cst_49 : f32 to vector<16x256xf32>
    %84 = arith.maximumf %82, %83 : vector<16x256xf32>
    %85 = arith.addf %43, %84 : vector<16x256xf32>
    %c0_50 = arith.constant 0 : index
    %c1 = arith.constant 1 : index
    %c0_51 = arith.constant 0 : index
    %c0_52 = arith.constant 0 : index
    %86 = vector.load %arg16[%c0_50, %c1, %c0_51, %c0_52] : memref<1x2x16x256xf32, #tpu.memory_space<vmem>>, vector<1x1x16x256xf32>
    %87 = vector.shape_cast %86 : vector<1x1x16x256xf32> to vector<16x256xf32>
    %88 = vector.broadcast %7 : f32 to vector<16x256xf32>
    %89 = arith.mulf %88, %87 : vector<16x256xf32>
    %90 = arith.addf %84, %89 : vector<16x256xf32>
    %91 = arith.truncf %90 : vector<16x256xf32> to vector<16x256xbf16>
    %c0_53 = arith.constant 0 : index
    %c1_54 = arith.constant 1 : index
    %c0_55 = arith.constant 0 : index
    %c0_56 = arith.constant 0 : index
    %92 = vector.load %arg12[%c0_53, %c1_54, %c0_55, %c0_56] : memref<1x2x256x256xbf16, #tpu.memory_space<vmem>>, vector<1x1x256x256xbf16>
    %93 = vector.shape_cast %92 : vector<1x1x256x256xbf16> to vector<256x256xbf16>
    %cst_57 = arith.constant dense<0.000000e+00> : vector<16x256xf32>
    %94 = tpu.matmul %91, %93, %cst_57 {dimension_numbers = #tpu.dot_dimension_numbers<[1], [0], [0], [1], [0, 0, 1, 1], [], []>} : vector<16x256xbf16>, vector<256x256xbf16>, vector<16x256xf32> -> vector<16x256xf32>
    %c0_58 = arith.constant 0 : index
    %c1_59 = arith.constant 1 : index
    %c0_60 = arith.constant 0 : index
    %c0_61 = arith.constant 0 : index
    %95 = vector.load %arg13[%c0_58, %c1_59, %c0_60, %c0_61] : memref<1x2x1x256xf32, #tpu.memory_space<vmem>>, vector<1x1x1x256xf32>
    %96 = vector.shape_cast %95 : vector<1x1x1x256xf32> to vector<1x256xf32>
    %97 = vector.broadcast %96 : vector<1x256xf32> to vector<16x256xf32>
    %98 = arith.addf %94, %97 : vector<16x256xf32>
    %cst_62 = arith.constant dense<0.000000e+00> : vector<16xf32>
    %99 = vector.multi_reduction <add>, %98, %cst_62 [1] : vector<16x256xf32> to vector<16xf32>
    %100 = vector.shape_cast %99 : vector<16xf32> to vector<16x1xf32>
    %cst_63 = arith.constant 2.560000e+02 : f32
    %101 = vector.broadcast %cst_63 : f32 to vector<16x1xf32>
    %102 = arith.divf %100, %101 : vector<16x1xf32>
    %103 = vector.broadcast %102 : vector<16x1xf32> to vector<16x256xf32>
    %104 = arith.subf %98, %103 : vector<16x256xf32>
    %105 = arith.mulf %104, %104 : vector<16x256xf32>
    %cst_64 = arith.constant dense<0.000000e+00> : vector<16xf32>
    %106 = vector.multi_reduction <add>, %105, %cst_64 [1] : vector<16x256xf32> to vector<16xf32>
    %107 = vector.shape_cast %106 : vector<16xf32> to vector<16x1xf32>
    %cst_65 = arith.constant 2.560000e+02 : f32
    %108 = vector.broadcast %cst_65 : f32 to vector<16x1xf32>
    %109 = arith.divf %107, %108 : vector<16x1xf32>
    %110 = vector.broadcast %102 : vector<16x1xf32> to vector<16x256xf32>
    %111 = arith.subf %98, %110 : vector<16x256xf32>
    %cst_66 = arith.constant 9.99999974E-6 : f32
    %112 = vector.broadcast %cst_66 : f32 to vector<16x1xf32>
    %113 = arith.addf %109, %112 : vector<16x1xf32>
    %114 = math.rsqrt %113 : vector<16x1xf32>
    %115 = vector.broadcast %114 : vector<16x1xf32> to vector<16x256xf32>
    %116 = arith.mulf %111, %115 : vector<16x256xf32>
    %c0_67 = arith.constant 0 : index
    %c1_68 = arith.constant 1 : index
    %c0_69 = arith.constant 0 : index
    %c0_70 = arith.constant 0 : index
    %117 = vector.load %arg14[%c0_67, %c1_68, %c0_69, %c0_70] : memref<1x2x1x256xf32, #tpu.memory_space<vmem>>, vector<1x1x1x256xf32>
    %118 = vector.shape_cast %117 : vector<1x1x1x256xf32> to vector<1x256xf32>
    %119 = vector.broadcast %118 : vector<1x256xf32> to vector<16x256xf32>
    %120 = arith.mulf %116, %119 : vector<16x256xf32>
    %c0_71 = arith.constant 0 : index
    %c1_72 = arith.constant 1 : index
    %c0_73 = arith.constant 0 : index
    %c0_74 = arith.constant 0 : index
    %121 = vector.load %arg15[%c0_71, %c1_72, %c0_73, %c0_74] : memref<1x2x1x256xf32, #tpu.memory_space<vmem>>, vector<1x1x1x256xf32>
    %122 = vector.shape_cast %121 : vector<1x1x1x256xf32> to vector<1x256xf32>
    %123 = vector.broadcast %122 : vector<1x256xf32> to vector<16x256xf32>
    %124 = arith.addf %120, %123 : vector<16x256xf32>
    %cst_75 = arith.constant 0.000000e+00 : f32
    %125 = vector.broadcast %cst_75 : f32 to vector<16x256xf32>
    %126 = arith.maximumf %124, %125 : vector<16x256xf32>
    %127 = arith.addf %85, %126 : vector<16x256xf32>
    %cst_76 = arith.constant 0.333333343 : f32
    %128 = vector.broadcast %cst_76 : f32 to vector<16x256xf32>
    %129 = arith.mulf %127, %128 : vector<16x256xf32>
    %c0_77 = arith.constant 0 : index
    %c0_78 = arith.constant 0 : index
    %c0_79 = arith.constant 0 : index
    %130 = vector.load %arg17[%c0_77, %c0_78, %c0_79] : memref<1x256x128xf32, #tpu.memory_space<vmem>>, vector<1x256x128xf32>
    %131 = vector.shape_cast %130 : vector<1x256x128xf32> to vector<256x128xf32>
    %cst_80 = arith.constant dense<0.000000e+00> : vector<16x128xf32>
    %132 = tpu.matmul %129, %131, %cst_80 {dimension_numbers = #tpu.dot_dimension_numbers<[1], [0], [0], [1], [0, 0, 1, 1], [], []>} : vector<16x256xf32>, vector<256x128xf32>, vector<16x128xf32> -> vector<16x128xf32>
    %c0_81 = arith.constant 0 : index
    %c0_82 = arith.constant 0 : index
    %c0_83 = arith.constant 0 : index
    %133 = vector.load %arg18[%c0_81, %c0_82, %c0_83] : memref<1x256x128xf32, #tpu.memory_space<vmem>>, vector<1x256x128xf32>
    %134 = vector.shape_cast %133 : vector<1x256x128xf32> to vector<256x128xf32>
    %cst_84 = arith.constant dense<0.000000e+00> : vector<16x128xf32>
    %135 = tpu.matmul %129, %134, %cst_84 {dimension_numbers = #tpu.dot_dimension_numbers<[1], [0], [0], [1], [0, 0, 1, 1], [], []>} : vector<16x256xf32>, vector<256x128xf32>, vector<16x128xf32> -> vector<16x128xf32>
    %c0_85 = arith.constant 0 : index
    %c0_86 = arith.constant 0 : index
    %136 = vector.load %arg19[%c0_85, %c0_86] : memref<16x128xf32, #tpu.memory_space<vmem>>, vector<16x128xf32>
    %137 = arith.mulf %135, %136 : vector<16x128xf32>
    %cst_87 = arith.constant dense<0.000000e+00> : vector<128xf32>
    %138 = vector.multi_reduction <add>, %137, %cst_87 [0] : vector<16x128xf32> to vector<128xf32>
    %139 = vector.shape_cast %138 : vector<128xf32> to vector<1x128xf32>
    %140 = vector.broadcast %139 : vector<1x128xf32> to vector<16x128xf32>
    %141 = arith.addf %132, %140 : vector<16x128xf32>
    %cst_88 = arith.constant 0.000000e+00 : f32
    %142 = vector.broadcast %cst_88 : f32 to vector<16x128xf32>
    %143 = arith.cmpf oge, %141, %142 : vector<16x128xf32>
    %cst_89 = arith.constant 2.000000e-01 : f32
    %144 = vector.broadcast %cst_89 : f32 to vector<16x128xf32>
    %145 = arith.mulf %144, %141 : vector<16x128xf32>
    %146 = arith.select %143, %141, %145 : vector<16x128xi1>, vector<16x128xf32>
    %c0_90 = arith.constant 0 : index
    %c0_91 = arith.constant 0 : index
    %147 = vector.load %arg2[%c0_90, %c0_91] : memref<16x128xf32, #tpu.memory_space<vmem>>, vector<16x128xf32>
    %cst_92 = arith.constant 0.000000e+00 : f32
    %148 = vector.broadcast %cst_92 : f32 to vector<16x128xf32>
    %149 = arith.cmpf ogt, %147, %148 : vector<16x128xf32>
    %cst_93 = arith.constant -1.000000e+30 : f32
    %150 = vector.broadcast %cst_93 : f32 to vector<16x128xf32>
    %151 = arith.select %149, %146, %150 : vector<16x128xi1>, vector<16x128xf32>
    %cst_94 = arith.constant dense<0xFF800000> : vector<16xf32>
    %152 = vector.multi_reduction <maximumf>, %151, %cst_94 [1] : vector<16x128xf32> to vector<16xf32>
    %153 = vector.shape_cast %152 : vector<16xf32> to vector<16x1xf32>
    %154 = vector.broadcast %153 : vector<16x1xf32> to vector<16x128xf32>
    %155 = arith.subf %151, %154 : vector<16x128xf32>
    %156 = math.exp %155 : vector<16x128xf32>
    %157 = arith.mulf %156, %147 : vector<16x128xf32>
    %c0_95 = arith.constant 0 : index
    %c0_96 = arith.constant 0 : index
    %158 = vector.load %arg20[%c0_95, %c0_96] : memref<128x128xf32, #tpu.memory_space<vmem>>, vector<128x128xf32>
    %cst_97 = arith.constant dense<0.000000e+00> : vector<16x128xf32>
    %159 = tpu.matmul %157, %158, %cst_97 {dimension_numbers = #tpu.dot_dimension_numbers<[1], [0], [0], [1], [0, 0, 1, 1], [], []>} : vector<16x128xf32>, vector<128x128xf32>, vector<16x128xf32> -> vector<16x128xf32>
    %cst_98 = arith.constant 1.000000e-16 : f32
    %160 = vector.broadcast %cst_98 : f32 to vector<16x128xf32>
    %161 = arith.addf %159, %160 : vector<16x128xf32>
    %162 = arith.divf %157, %161 : vector<16x128xf32>
    %c0_99 = arith.constant 0 : index
    %c0_100 = arith.constant 0 : index
    %163 = vector.load %arg21[%c0_99, %c0_100] : memref<128x16xf32, #tpu.memory_space<vmem>>, vector<128x16xf32>
    %cst_101 = arith.constant dense<0.000000e+00> : vector<128x256xf32>
    %164 = tpu.matmul %163, %129, %cst_101 {dimension_numbers = #tpu.dot_dimension_numbers<[1], [0], [0], [1], [0, 0, 1, 1], [], []>} : vector<128x16xf32>, vector<16x256xf32>, vector<128x256xf32> -> vector<128x256xf32>
    %c0_102 = arith.constant 0 : index
    %c0_103 = arith.constant 0 : index
    %165 = vector.load %arg22[%c0_102, %c0_103] : memref<128x256xf32, #tpu.memory_space<vmem>>, vector<128x256xf32>
    %166 = arith.mulf %164, %165 : vector<128x256xf32>
    %c0_104 = arith.constant 0 : index
    %c0_105 = arith.constant 0 : index
    %167 = vector.load %arg23[%c0_104, %c0_105] : memref<256x32xf32, #tpu.memory_space<vmem>>, vector<256x32xf32>
    %cst_106 = arith.constant dense<0.000000e+00> : vector<128x32xf32>
    %168 = tpu.matmul %166, %167, %cst_106 {dimension_numbers = #tpu.dot_dimension_numbers<[1], [0], [0], [1], [0, 0, 1, 1], [], []>} : vector<128x256xf32>, vector<256x32xf32>, vector<128x32xf32> -> vector<128x32xf32>
    %cst_107 = arith.constant dense<0.000000e+00> : vector<16x32xf32>
    %169 = tpu.matmul %162, %168, %cst_107 {dimension_numbers = #tpu.dot_dimension_numbers<[1], [0], [0], [1], [0, 0, 1, 1], [], []>} : vector<16x128xf32>, vector<128x32xf32>, vector<16x32xf32> -> vector<16x32xf32>
    %cst_108 = arith.constant 1.250000e-01 : f32
    %170 = vector.broadcast %cst_108 : f32 to vector<16x32xf32>
    %171 = arith.mulf %169, %170 : vector<16x32xf32>
    %c0_109 = arith.constant 0 : index
    %c0_110 = arith.constant 0 : index
    %172 = vector.load %arg24[%c0_109, %c0_110] : memref<32x64xf32, #tpu.memory_space<vmem>>, vector<32x64xf32>
    %cst_111 = arith.constant dense<0.000000e+00> : vector<16x64xf32>
    %173 = tpu.matmul %171, %172, %cst_111 {dimension_numbers = #tpu.dot_dimension_numbers<[1], [0], [0], [1], [0, 0, 1, 1], [], []>} : vector<16x32xf32>, vector<32x64xf32>, vector<16x64xf32> -> vector<16x64xf32>
    %c0_112 = arith.constant 0 : index
    %c0_113 = arith.constant 0 : index
    %174 = vector.load %arg25[%c0_112, %c0_113] : memref<1x64xf32, #tpu.memory_space<vmem>>, vector<1x64xf32>
    %175 = vector.broadcast %174 : vector<1x64xf32> to vector<16x64xf32>
    %176 = arith.addf %173, %175 : vector<16x64xf32>
    %cst_114 = arith.constant 0.000000e+00 : f32
    %177 = vector.broadcast %cst_114 : f32 to vector<16x64xf32>
    %178 = arith.maximumf %176, %177 : vector<16x64xf32>
    %c0_115 = arith.constant 0 : index
    %c0_116 = arith.constant 0 : index
    %179 = vector.load %arg26[%c0_115, %c0_116] : memref<64x32xf32, #tpu.memory_space<vmem>>, vector<64x32xf32>
    %cst_117 = arith.constant dense<0.000000e+00> : vector<16x32xf32>
    %180 = tpu.matmul %178, %179, %cst_117 {dimension_numbers = #tpu.dot_dimension_numbers<[1], [0], [0], [1], [0, 0, 1, 1], [], []>} : vector<16x64xf32>, vector<64x32xf32>, vector<16x32xf32> -> vector<16x32xf32>
    %c0_118 = arith.constant 0 : index
    %c0_119 = arith.constant 0 : index
    %181 = vector.load %arg27[%c0_118, %c0_119] : memref<1x32xf32, #tpu.memory_space<vmem>>, vector<1x32xf32>
    %182 = vector.broadcast %181 : vector<1x32xf32> to vector<16x32xf32>
    %183 = arith.addf %180, %182 : vector<16x32xf32>
    %184 = math.tanh %183 : vector<16x32xf32>
    %185 = arith.negf %184 : vector<16x32xf32>
    %186 = math.exp %185 : vector<16x32xf32>
    %cst_120 = arith.constant 1.000000e+00 : f32
    %187 = vector.broadcast %cst_120 : f32 to vector<16x32xf32>
    %188 = arith.addf %187, %186 : vector<16x32xf32>
    %189 = arith.divf %187, %188 : vector<16x32xf32>
    %190 = arith.mulf %189, %171 : vector<16x32xf32>
    %cst_121 = arith.constant 1.000000e+00 : f32
    %191 = vector.broadcast %cst_121 : f32 to vector<16x32xf32>
    %192 = arith.subf %191, %189 : vector<16x32xf32>
    %193 = arith.mulf %192, %3 : vector<16x32xf32>
    %194 = arith.addf %190, %193 : vector<16x32xf32>
    %c0_122 = arith.constant 0 : index
    %c0_123 = arith.constant 0 : index
    %195 = vector.load %arg33[%c0_122, %c0_123] : memref<16x32xf32, #tpu.memory_space<vmem>>, vector<16x32xf32>
    %196 = arith.addf %195, %194 : vector<16x32xf32>
    %c0_124 = arith.constant 0 : index
    %c0_125 = arith.constant 0 : index
    %197 = vector.load %arg33[%c0_124, %c0_125] : memref<16x32xf32, #tpu.memory_space<vmem>>, vector<16x32xf32>
    tpu.vector_store %arg33[%c0_124, %c0_125], %196 {strides = array<i32>} : memref<16x32xf32, #tpu.memory_space<vmem>>, vector<16x32xf32>,
    %cst_126 = arith.constant dense<0.000000e+00> : vector<16xf32>
    %198 = vector.multi_reduction <add>, %194, %cst_126 [1] : vector<16x32xf32> to vector<16xf32>
    %199 = vector.shape_cast %198 : vector<16xf32> to vector<16x1xf32>
    %cst_127 = arith.constant 3.200000e+01 : f32
    %200 = vector.broadcast %cst_127 : f32 to vector<16x1xf32>
    %201 = arith.divf %199, %200 : vector<16x1xf32>
    %202 = vector.broadcast %201 : vector<16x1xf32> to vector<16x32xf32>
    %203 = arith.subf %194, %202 : vector<16x32xf32>
    %204 = arith.mulf %203, %203 : vector<16x32xf32>
    %cst_128 = arith.constant dense<0.000000e+00> : vector<16xf32>
    %205 = vector.multi_reduction <add>, %204, %cst_128 [1] : vector<16x32xf32> to vector<16xf32>
    %206 = vector.shape_cast %205 : vector<16xf32> to vector<16x1xf32>
    %cst_129 = arith.constant 3.200000e+01 : f32
    %207 = vector.broadcast %cst_129 : f32 to vector<16x1xf32>
    %208 = arith.divf %206, %207 : vector<16x1xf32>
    %209 = vector.broadcast %201 : vector<16x1xf32> to vector<16x32xf32>
    %210 = arith.subf %194, %209 : vector<16x32xf32>
    %cst_130 = arith.constant 9.99999974E-6 : f32
    %211 = vector.broadcast %cst_130 : f32 to vector<16x1xf32>
    %212 = arith.addf %208, %211 : vector<16x1xf32>
    %213 = math.rsqrt %212 : vector<16x1xf32>
    %214 = vector.broadcast %213 : vector<16x1xf32> to vector<16x32xf32>
    %215 = arith.mulf %210, %214 : vector<16x32xf32>
    %c0_131 = arith.constant 0 : index
    %c0_132 = arith.constant 0 : index
    %216 = vector.load %arg32[%c0_131, %c0_132] : memref<16x32xf32, #tpu.memory_space<vmem>>, vector<16x32xf32>
    tpu.vector_store %arg32[%c0_131, %c0_132], %215 {strides = array<i32>} : memref<16x32xf32, #tpu.memory_space<vmem>>, vector<16x32xf32>,
    %c2_i32 = arith.constant 2 : i32
    %217 = arith.cmpi eq, %arg0, %c2_i32 : i32
    %218 = arith.extui %217 : i1 to i32
    %c0_i32_133 = arith.constant 0 : i32
    %219 = arith.cmpi ne, %218, %c0_i32_133 : i32
    scf.if %219 {
      %c0_134 = arith.constant 0 : index
      %c0_135 = arith.constant 0 : index
      %220 = vector.load %arg33[%c0_134, %c0_135] : memref<16x32xf32, #tpu.memory_space<vmem>>, vector<16x32xf32>
      %cst_136 = arith.constant 0.333333343 : f32
      %221 = vector.broadcast %cst_136 : f32 to vector<16x32xf32>
      %222 = arith.mulf %220, %221 : vector<16x32xf32>
      %c0_137 = arith.constant 0 : index
      %c0_138 = arith.constant 0 : index
      %223 = vector.load %arg30[%c0_137, %c0_138] : memref<16x32xf32, #tpu.memory_space<vmem>>, vector<16x32xf32>
      tpu.vector_store %arg30[%c0_137, %c0_138], %222 {strides = array<i32>} : memref<16x32xf32, #tpu.memory_space<vmem>>, vector<16x32xf32>,
      %c0_139 = arith.constant 0 : index
      %c0_140 = arith.constant 0 : index
      %224 = vector.load %arg28[%c0_139, %c0_140] : memref<32x128xf32, #tpu.memory_space<vmem>>, vector<32x128xf32>
      %cst_141 = arith.constant dense<0.000000e+00> : vector<16x128xf32>
      %225 = tpu.matmul %222, %224, %cst_141 {dimension_numbers = #tpu.dot_dimension_numbers<[1], [0], [0], [1], [0, 0, 1, 1], [], []>} : vector<16x32xf32>, vector<32x128xf32>, vector<16x128xf32> -> vector<16x128xf32>
      %c0_142 = arith.constant 0 : index
      %c0_143 = arith.constant 0 : index
      %226 = vector.load %arg29[%c0_142, %c0_143] : memref<1x128xf32, #tpu.memory_space<vmem>>, vector<1x128xf32>
      %227 = vector.broadcast %226 : vector<1x128xf32> to vector<16x128xf32>
      %228 = arith.addf %225, %227 : vector<16x128xf32>
      %c0_144 = arith.constant 0 : index
      %c0_145 = arith.constant 0 : index
      %229 = vector.load %arg31[%c0_144, %c0_145] : memref<16x128xf32, #tpu.memory_space<vmem>>, vector<16x128xf32>
      tpu.vector_store %arg31[%c0_144, %c0_145], %228 {strides = array<i32>} : memref<16x128xf32, #tpu.memory_space<vmem>>, vector<16x128xf32>,
    } else {
    }
    return
  }
  func.func @transform_0(%arg0: i32) -> (i32, i32) {
    %c0_i32 = arith.constant 0 : i32
    %c0_i32_0 = arith.constant 0 : i32
    %c0_i32_1 = arith.constant 0 : i32
    return %c0_i32, %c0_i32_0 : i32, i32
  }
  func.func @transform_1(%arg0: i32) -> (i32, i32) {
    %c0_i32 = arith.constant 0 : i32
    %c0_i32_0 = arith.constant 0 : i32
    %c0_i32_1 = arith.constant 0 : i32
    return %c0_i32, %c0_i32_0 : i32, i32
  }
  func.func @transform_2(%arg0: i32) -> (i32, i32) {
    %c0_i32 = arith.constant 0 : i32
    %c0_i32_0 = arith.constant 0 : i32
    %c0_i32_1 = arith.constant 0 : i32
    return %c0_i32, %c0_i32_0 : i32, i32
  }
  func.func @transform_3(%arg0: i32) -> (i32, i32) {
    %c0_i32 = arith.constant 0 : i32
    %c0_i32_0 = arith.constant 0 : i32
    %c0_i32_1 = arith.constant 0 : i32
    return %c0_i32, %c0_i32_0 : i32, i32
  }
  func.func @transform_4(%arg0: i32) -> (i32, i32) {
    %c0_i32 = arith.constant 0 : i32
    %c0_i32_0 = arith.constant 0 : i32
    %c0_i32_1 = arith.constant 0 : i32
    return %c0_i32, %c0_i32_0 : i32, i32
  }
  func.func @transform_5(%arg0: i32) -> (i32, i32) {
    %c0_i32 = arith.constant 0 : i32
    %c0_i32_0 = arith.constant 0 : i32
    %c0_i32_1 = arith.constant 0 : i32
    return %c0_i32, %c0_i32_0 : i32, i32
  }
  func.func @transform_6(%arg0: i32) -> (i32, i32) {
    %c0_i32 = arith.constant 0 : i32
    %c0_i32_0 = arith.constant 0 : i32
    %c0_i32_1 = arith.constant 0 : i32
    return %c0_i32, %c0_i32_0 : i32, i32
  }
  func.func @transform_7(%arg0: i32) -> (i32, i32, i32) {
    %c0_i32 = arith.constant 0 : i32
    %c0_i32_0 = arith.constant 0 : i32
    %c0_i32_1 = arith.constant 0 : i32
    return %arg0, %c0_i32, %c0_i32_0 : i32, i32, i32
  }
  func.func @transform_8(%arg0: i32) -> (i32, i32, i32) {
    %c0_i32 = arith.constant 0 : i32
    %c0_i32_0 = arith.constant 0 : i32
    %c0_i32_1 = arith.constant 0 : i32
    return %arg0, %c0_i32, %c0_i32_0 : i32, i32, i32
  }
  func.func @transform_9(%arg0: i32) -> (i32, i32, i32) {
    %c0_i32 = arith.constant 0 : i32
    %c0_i32_0 = arith.constant 0 : i32
    %c0_i32_1 = arith.constant 0 : i32
    return %arg0, %c0_i32, %c0_i32_0 : i32, i32, i32
  }
  func.func @transform_10(%arg0: i32) -> (i32, i32, i32) {
    %c0_i32 = arith.constant 0 : i32
    %c0_i32_0 = arith.constant 0 : i32
    %c0_i32_1 = arith.constant 0 : i32
    return %arg0, %c0_i32, %c0_i32_0 : i32, i32, i32
  }
  func.func @transform_11(%arg0: i32) -> (i32, i32, i32, i32) {
    %c0_i32 = arith.constant 0 : i32
    %c0_i32_0 = arith.constant 0 : i32
    %c0_i32_1 = arith.constant 0 : i32
    %c0_i32_2 = arith.constant 0 : i32
    return %arg0, %c0_i32, %c0_i32_0, %c0_i32_1 : i32, i32, i32, i32
  }
  func.func @transform_12(%arg0: i32) -> (i32, i32, i32, i32) {
    %c0_i32 = arith.constant 0 : i32
    %c0_i32_0 = arith.constant 0 : i32
    %c0_i32_1 = arith.constant 0 : i32
    %c0_i32_2 = arith.constant 0 : i32
    return %arg0, %c0_i32, %c0_i32_0, %c0_i32_1 : i32, i32, i32, i32
  }
  func.func @transform_13(%arg0: i32) -> (i32, i32, i32, i32) {
    %c0_i32 = arith.constant 0 : i32
    %c0_i32_0 = arith.constant 0 : i32
    %c0_i32_1 = arith.constant 0 : i32
    %c0_i32_2 = arith.constant 0 : i32
    return %arg0, %c0_i32, %c0_i32_0, %c0_i32_1 : i32, i32, i32, i32
  }
  func.func @transform_14(%arg0: i32) -> (i32, i32, i32, i32) {
    %c0_i32 = arith.constant 0 : i32
    %c0_i32_0 = arith.constant 0 : i32
    %c0_i32_1 = arith.constant 0 : i32
    %c0_i32_2 = arith.constant 0 : i32
    return %arg0, %c0_i32, %c0_i32_0, %c0_i32_1 : i32, i32, i32, i32
  }
  func.func @transform_15(%arg0: i32) -> (i32, i32, i32, i32) {
    %c0_i32 = arith.constant 0 : i32
    %c0_i32_0 = arith.constant 0 : i32
    %c0_i32_1 = arith.constant 0 : i32
    %c0_i32_2 = arith.constant 0 : i32
    return %arg0, %c0_i32, %c0_i32_0, %c0_i32_1 : i32, i32, i32, i32
  }
  func.func @transform_16(%arg0: i32) -> (i32, i32, i32) {
    %c0_i32 = arith.constant 0 : i32
    %c0_i32_0 = arith.constant 0 : i32
    %c0_i32_1 = arith.constant 0 : i32
    return %arg0, %c0_i32, %c0_i32_0 : i32, i32, i32
  }
  func.func @transform_17(%arg0: i32) -> (i32, i32, i32) {
    %c0_i32 = arith.constant 0 : i32
    %c0_i32_0 = arith.constant 0 : i32
    %c0_i32_1 = arith.constant 0 : i32
    return %arg0, %c0_i32, %c0_i32_0 : i32, i32, i32
  }
  func.func @transform_18(%arg0: i32) -> (i32, i32) {
    %c0_i32 = arith.constant 0 : i32
    %c0_i32_0 = arith.constant 0 : i32
    %c0_i32_1 = arith.constant 0 : i32
    return %c0_i32, %c0_i32_0 : i32, i32
  }
  func.func @transform_19(%arg0: i32) -> (i32, i32) {
    %c0_i32 = arith.constant 0 : i32
    %c0_i32_0 = arith.constant 0 : i32
    %c0_i32_1 = arith.constant 0 : i32
    return %c0_i32, %c0_i32_0 : i32, i32
  }
  func.func @transform_20(%arg0: i32) -> (i32, i32) {
    %c0_i32 = arith.constant 0 : i32
    %c0_i32_0 = arith.constant 0 : i32
    %c0_i32_1 = arith.constant 0 : i32
    return %c0_i32, %c0_i32_0 : i32, i32
  }
  func.func @transform_21(%arg0: i32) -> (i32, i32) {
    %c0_i32 = arith.constant 0 : i32
    %c0_i32_0 = arith.constant 0 : i32
    %c0_i32_1 = arith.constant 0 : i32
    return %c0_i32, %c0_i32_0 : i32, i32
  }
  func.func @transform_22(%arg0: i32) -> (i32, i32) {
    %c0_i32 = arith.constant 0 : i32
    %c0_i32_0 = arith.constant 0 : i32
    %c0_i32_1 = arith.constant 0 : i32
    return %c0_i32, %c0_i32_0 : i32, i32
  }
  func.func @transform_23(%arg0: i32) -> (i32, i32) {
    %c0_i32 = arith.constant 0 : i32
    %c0_i32_0 = arith.constant 0 : i32
    %c0_i32_1 = arith.constant 0 : i32
    return %c0_i32, %c0_i32_0 : i32, i32
  }
  func.func @transform_24(%arg0: i32) -> (i32, i32) {
    %c0_i32 = arith.constant 0 : i32
    %c0_i32_0 = arith.constant 0 : i32
    %c0_i32_1 = arith.constant 0 : i32
    return %c0_i32, %c0_i32_0 : i32, i32
  }
  func.func @transform_25(%arg0: i32) -> (i32, i32) {
    %c0_i32 = arith.constant 0 : i32
    %c0_i32_0 = arith.constant 0 : i32
    %c0_i32_1 = arith.constant 0 : i32
    return %c0_i32, %c0_i32_0 : i32, i32
  }
  func.func @transform_26(%arg0: i32) -> (i32, i32) {
    %c0_i32 = arith.constant 0 : i32
    %c0_i32_0 = arith.constant 0 : i32
    %c0_i32_1 = arith.constant 0 : i32
    return %c0_i32, %c0_i32_0 : i32, i32
  }
  func.func @transform_27(%arg0: i32) -> (i32, i32) {
    %c0_i32 = arith.constant 0 : i32
    %c0_i32_0 = arith.constant 0 : i32
    %c0_i32_1 = arith.constant 0 : i32
    return %c0_i32, %c0_i32_0 : i32, i32
  }
  func.func @transform_28(%arg0: i32) -> (i32, i32) {
    %c0_i32 = arith.constant 0 : i32
    %c0_i32_0 = arith.constant 0 : i32
    %c0_i32_1 = arith.constant 0 : i32
    return %c0_i32, %c0_i32_0 : i32, i32
  }
  func.func @transform_29(%arg0: i32) -> (i32, i32) {
    %c0_i32 = arith.constant 0 : i32
    %c0_i32_0 = arith.constant 0 : i32
    %c0_i32_1 = arith.constant 0 : i32
    return %c0_i32, %c0_i32_0 : i32, i32
  }
  func.func @transform_30(%arg0: i32) -> (i32, i32) {
    %c0_i32 = arith.constant 0 : i32
    %c0_i32_0 = arith.constant 0 : i32
    %c0_i32_1 = arith.constant 0 : i32
    return %c0_i32, %c0_i32_0 : i32, i32
  }
}

</mosaic_0001>

<llo_original>
// kernel: mul.29
$region0: #{mul.29}
  %s0 = inlined_call_operand.hbm [shape: f32[3,8,32], index: 0, kind: input, shape index: {}]
  %s1 = inlined_call_operand.vmem [shape: f32[3,256], index: 1, kind: output, shape index: {}]
  $region1: #{mul.29} parent=0
    #allocation0 [shape = 'u8[12288]{0}', space=vmem, size = 0x3000, scoped, tag = 'operand span for operand 0']
    #allocation1 [shape = 's32[1]{0}', space=sflag, size = 0x4, scoped, tag = 'scoped memory for mul.29']
    #allocation2 [shape = 'u8[8192]{0}', space=vmem, size = 0x2000, scoped, tag = 'scoped mem for output reshape']
    %2 = vsyncpa [#allocation1], 0
    %s4 = ssub.s32 384, 384
    %5 = vsyncadd [#allocation1], %s4
    %s7 = sshll.u32 [#allocation0], 4
    %s8 = int_to_ptr.vmem [resolvable:$true] %s7
    %10 = dma.hbm_to_vmem [thread:$0]  %s0, 384, %s8, [#allocation1]
    %11 = dma.done [#allocation1], 384
    %v12 = vld [vmem:[#allocation0] ss:$4 sm:$0x3f]
    %vm13 = vcmask 261120
    %14 = vst.msk [vmem:[#allocation2] ss:$8 sm:$0x3] %vm13, %v12
    %s15 = scalar_lea.vmem [#allocation2], 4294967281
    %16 = vst.msk [vmem:[%s15] ss:$8 sm:$0xc] %vm13, %v12
    %s17 = scalar_lea.vmem [#allocation2], 4294967266
    %18 = vst.msk [vmem:[%s17] ss:$8 sm:$0x30] %vm13, %v12
    %s19 = scalar_lea.vmem [#allocation0], 3
    %v20 = vld [vmem:[%s19] ss:$8 sm:$0x7]
    %s21 = scalar_lea.vmem [#allocation0], 4294967279
    %v22 = vld [vmem:[%s21] ss:$8 sm:$0x38]
    %vm23 = vcmask 1045507
    %v24 = vsel %vm23, %v22, %v20
    %25 = vrot.lane.b32.xlu0 %v24, 96
    %v26 = vpop.permute.xlu0 %25
    %vm27 = vcmask 1048320
    %28 = vst.msk [vmem:[#allocation2] sm:$0x7] %vm27, %v26
    %s29 = scalar_lea.vmem [#allocation2], 5
    %30 = vst.msk [vmem:[%s29] sm:$0x38] %vm27, %v26
    %s31 = scalar_lea.vmem [#allocation0], 2
    %v32 = vld [vmem:[%s31] ss:$8 sm:$0x7]
    %s33 = scalar_lea.vmem [#allocation0], 4294967278
    %v34 = vld [vmem:[%s33] ss:$8 sm:$0x38]
    %vm35 = vcmask 1045507
    %v36 = vsel %vm35, %v34, %v32
    %37 = vrot.lane.b32.xlu0 %v36, 64
    %v38 = vpop.permute.xlu0 %37
    %vm39 = vcmask 785920
    %40 = vst.msk [vmem:[#allocation2] sm:$0x7] %vm39, %v38
    %s41 = scalar_lea.vmem [#allocation2], 5
    %42 = vst.msk [vmem:[%s41] sm:$0x38] %vm39, %v38
    %s43 = scalar_lea.vmem [#allocation0], 1
    %v44 = vld [vmem:[%s43] ss:$8 sm:$0x7]
    %s45 = scalar_lea.vmem [#allocation0], 4294967277
    %v46 = vld [vmem:[%s45] ss:$8 sm:$0x38]
    %vm47 = vcmask 1045507
    %v48 = vsel %vm47, %v46, %v44
    %49 = vrot.lane.b32.xlu0 %v48, 32
    %v50 = vpop.permute.xlu0 %49
    %vm51 = vcmask 523520
    %52 = vst.msk [vmem:[#allocation2] sm:$0x7] %vm51, %v50
    %s53 = scalar_lea.vmem [#allocation2], 5
    %54 = vst.msk [vmem:[%s53] sm:$0x38] %vm51, %v50
    %s56 = sshllo.u32 0, 4
    %v58 = vld [vmem:[#allocation2] sm:%s56]
    %s59 = sshllo.u32 0, 4
    %60 = vst [vmem:[%s1] sm:%s59] %v58
    %s61 = scalar_lea.vmem [#allocation2], 8
    %v62 = vld [vmem:[%s61] sm:%s56]
    %s63 = sshllo.u32 0, 4
    %s64 = scalar_lea.vmem %s1, 4
    %65 = vst [vmem:[%s64] sm:%s63] %v62
    %66 = vsyncpa [#allocation1], 1

// kernel: mul.36
$region0: #{mul.36}
  %s0 = inlined_call_operand.vmem [shape: f32[3,8,32], index: 0, kind: input, shape index: {}]
  %s1 = inlined_call_operand.vmem [shape: f32[3,256], index: 1, kind: output, shape index: {}]
  $region1: #{mul.36} parent=0
    #allocation0 [shape = 'u8[8192]{0}', space=vmem, size = 0x2000, scoped, tag = 'scoped mem for output reshape']
    %v2 = vld [vmem:[%s0] ss:$4 sm:$0x3f]
    %vm3 = vcmask 261120
    %4 = vst.msk [vmem:[#allocation0] ss:$8 sm:$0x3] %vm3, %v2
    %s5 = scalar_lea.vmem [#allocation0], 4294967281
    %6 = vst.msk [vmem:[%s5] ss:$8 sm:$0xc] %vm3, %v2
    %s7 = scalar_lea.vmem [#allocation0], 4294967266
    %8 = vst.msk [vmem:[%s7] ss:$8 sm:$0x30] %vm3, %v2
    %s9 = scalar_lea.vmem %s0, 3
    %v10 = vld [vmem:[%s9] ss:$8 sm:$0x7]
    %s11 = scalar_lea.vmem %s0, 4294967279
    %v12 = vld [vmem:[%s11] ss:$8 sm:$0x38]
    %vm13 = vcmask 1045507
    %v14 = vsel %vm13, %v12, %v10
    %15 = vrot.lane.b32.xlu0 %v14, 96
    %v16 = vpop.permute.xlu0 %15
    %vm17 = vcmask 1048320
    %18 = vst.msk [vmem:[#allocation0] sm:$0x7] %vm17, %v16
    %s19 = scalar_lea.vmem [#allocation0], 5
    %20 = vst.msk [vmem:[%s19] sm:$0x38] %vm17, %v16
    %s21 = scalar_lea.vmem %s0, 2
    %v22 = vld [vmem:[%s21] ss:$8 sm:$0x7]
    %s23 = scalar_lea.vmem %s0, 4294967278
    %v24 = vld [vmem:[%s23] ss:$8 sm:$0x38]
    %vm25 = vcmask 1045507
    %v26 = vsel %vm25, %v24, %v22
    %27 = vrot.lane.b32.xlu0 %v26, 64
    %v28 = vpop.permute.xlu0 %27
    %vm29 = vcmask 785920
    %30 = vst.msk [vmem:[#allocation0] sm:$0x7] %vm29, %v28
    %s31 = scalar_lea.vmem [#allocation0], 5
    %32 = vst.msk [vmem:[%s31] sm:$0x38] %vm29, %v28
    %s33 = scalar_lea.vmem %s0, 1
    %v34 = vld [vmem:[%s33] ss:$8 sm:$0x7]
    %s35 = scalar_lea.vmem %s0, 4294967277
    %v36 = vld [vmem:[%s35] ss:$8 sm:$0x38]
    %vm37 = vcmask 1045507
    %v38 = vsel %vm37, %v36, %v34
    %39 = vrot.lane.b32.xlu0 %v38, 32
    %v40 = vpop.permute.xlu0 %39
    %vm41 = vcmask 523520
    %42 = vst.msk [vmem:[#allocation0] sm:$0x7] %vm41, %v40
    %s43 = scalar_lea.vmem [#allocation0], 5
    %44 = vst.msk [vmem:[%s43] sm:$0x38] %vm41, %v40
    %s46 = sshllo.u32 0, 4
    %v48 = vld [vmem:[#allocation0] sm:%s46]
    %s49 = sshllo.u32 0, 4
    %50 = vst [vmem:[%s1] sm:%s49] %v48
    %s51 = scalar_lea.vmem [#allocation0], 8
    %v52 = vld [vmem:[%s51] sm:%s46]
    %s53 = sshllo.u32 0, 4
    %s54 = scalar_lea.vmem %s1, 4
    %55 = vst [vmem:[%s54] sm:%s53] %v52

// kernel: tile.19
$region0: #{tile.19}
  %s0 = inlined_call_operand.vmem [shape: f32[16,8,16], index: 0, kind: input, shape index: {}]
  %s1 = inlined_call_operand.vmem [shape: f32[16,128], index: 1, kind: output, shape index: {}]
  %v2 = vld [vmem:[%s0] ss:$8 sm:$0xf]
  %v3 = vld [vmem:[%s0] ss:$8 sm:$0xf0]
  %vm4 = vcmask 1047556
  %v5 = vsel %vm4, %v3, %v2
  %vm6 = vcmask 130048
  %7 = vst.msk [vmem:[%s1] sm:$0xff] %vm6, %v5
  %s8 = scalar_lea.vmem %s0, 64
  %v9 = vld [vmem:[%s8] ss:$8 sm:$0xf]
  %s10 = scalar_lea.vmem %s0, 64
  %v11 = vld [vmem:[%s10] ss:$8 sm:$0xf0]
  %vm12 = vcmask 1047556
  %v13 = vsel %vm12, %v11, %v9
  %vm14 = vcmask 130048
  %s15 = scalar_lea.vmem %s1, 8
  %16 = vst.msk [vmem:[%s15] sm:$0xff] %vm14, %v13
  %s17 = scalar_lea.vmem %s0, 7
  %v18 = vld [vmem:[%s17] ss:$8 sm:$0xf]
  %s19 = scalar_lea.vmem %s0, 7
  %v20 = vld [vmem:[%s19] ss:$8 sm:$0xf0]
  %vm21 = vcmask 1047556
  %v22 = vsel %vm21, %v20, %v18
  %23 = vrot.lane.b32.xlu0 %v22, 112
  %v24 = vpop.permute.xlu0 %23
  %vm25 = vcmask 1048448
  %26 = vst.msk [vmem:[%s1] sm:$0xff] %vm25, %v24
  %s27 = scalar_lea.vmem %s0, 71
  %v28 = vld [vmem:[%s27] ss:$8 sm:$0xf]
  %s29 = scalar_lea.vmem %s0, 71
  %v30 = vld [vmem:[%s29] ss:$8 sm:$0xf0]
  %vm31 = vcmask 1047556
  %v32 = vsel %vm31, %v30, %v28
  %33 = vrot.lane.b32.xlu0 %v32, 112
  %v34 = vpop.permute.xlu0 %33
  %vm35 = vcmask 1048448
  %s36 = scalar_lea.vmem %s1, 8
  %37 = vst.msk [vmem:[%s36] sm:$0xff] %vm35, %v34
  %s38 = scalar_lea.vmem %s0, 6
  %v39 = vld [vmem:[%s38] ss:$8 sm:$0xf]
  %s40 = scalar_lea.vmem %s0, 6
  %v41 = vld [vmem:[%s40] ss:$8 sm:$0xf0]
  %vm42 = vcmask 1047556
  %v43 = vsel %vm42, %v41, %v39
  %44 = vrot.lane.b32.xlu0 %v43, 96
  %v45 = vpop.permute.xlu0 %44
  %vm46 = vcmask 917248
  %47 = vst.msk [vmem:[%s1] sm:$0xff] %vm46, %v45
  %s48 = scalar_lea.vmem %s0, 70
  %v49 = vld [vmem:[%s48] ss:$8 sm:$0xf]
  %s50 = scalar_lea.vmem %s0, 70
  %v51 = vld [vmem:[%s50] ss:$8 sm:$0xf0]
  %vm52 = vcmask 1047556
  %v53 = vsel %vm52, %v51, %v49
  %54 = vrot.lane.b32.xlu0 %v53, 96
  %v55 = vpop.permute.xlu0 %54
  %vm56 = vcmask 917248
  %s57 = scalar_lea.vmem %s1, 8
  %58 = vst.msk [vmem:[%s57] sm:$0xff] %vm56, %v55
  %s59 = scalar_lea.vmem %s0, 5
  %v60 = vld [vmem:[%s59] ss:$8 sm:$0xf]
  %s61 = scalar_lea.vmem %s0, 5
  %v62 = vld [vmem:[%s61] ss:$8 sm:$0xf0]
  %vm63 = vcmask 1047556
  %v64 = vsel %vm63, %v62, %v60
  %65 = vrot.lane.b32.xlu0 %v64, 80
  %v66 = vpop.permute.xlu0 %65
  %vm67 = vcmask 786048
  %68 = vst.msk [vmem:[%s1] sm:$0xff] %vm67, %v66
  %s69 = scalar_lea.vmem %s0, 69
  %v70 = vld [vmem:[%s69] ss:$8 sm:$0xf]
  %s71 = scalar_lea.vmem %s0, 69
  %v72 = vld [vmem:[%s71] ss:$8 sm:$0xf0]
  %vm73 = vcmask 1047556
  %v74 = vsel %vm73, %v72, %v70
  %75 = vrot.lane.b32.xlu0 %v74, 80
  %v76 = vpop.permute.xlu0 %75
  %vm77 = vcmask 786048
  %s78 = scalar_lea.vmem %s1, 8
  %79 = vst.msk [vmem:[%s78] sm:$0xff] %vm77, %v76
  %s80 = scalar_lea.vmem %s0, 4
  %v81 = vld [vmem:[%s80] ss:$8 sm:$0xf]
  %s82 = scalar_lea.vmem %s0, 4
  %v83 = vld [vmem:[%s82] ss:$8 sm:$0xf0]
  %vm84 = vcmask 1047556
  %v85 = vsel %vm84, %v83, %v81
  %86 = vrot.lane.b32.xlu0 %v85, 64
  %v87 = vpop.permute.xlu0 %86
  %vm88 = vcmask 654848
  %89 = vst.msk [vmem:[%s1] sm:$0xff] %vm88, %v87
  %s90 = scalar_lea.vmem %s0, 68
  %v91 = vld [vmem:[%s90] ss:$8 sm:$0xf]
  %s92 = scalar_lea.vmem %s0, 68
  %v93 = vld [vmem:[%s92] ss:$8 sm:$0xf0]
  %vm94 = vcmask 1047556
  %v95 = vsel %vm94, %v93, %v91
  %96 = vrot.lane.b32.xlu0 %v95, 64
  %v97 = vpop.permute.xlu0 %96
  %vm98 = vcmask 654848
  %s99 = scalar_lea.vmem %s1, 8
  %100 = vst.msk [vmem:[%s99] sm:$0xff] %vm98, %v97
  %s101 = scalar_lea.vmem %s0, 3
  %v102 = vld [vmem:[%s101] ss:$8 sm:$0xf]
  %s103 = scalar_lea.vmem %s0, 3
  %v104 = vld [vmem:[%s103] ss:$8 sm:$0xf0]
  %vm105 = vcmask 1047556
  %v106 = vsel %vm105, %v104, %v102
  %107 = vrot.lane.b32.xlu0 %v106, 48
  %v108 = vpop.permute.xlu0 %107
  %vm109 = vcmask 523648
  %110 = vst.msk [vmem:[%s1] sm:$0xff] %vm109, %v108
  %s111 = scalar_lea.vmem %s0, 67
  %v112 = vld [vmem:[%s111] ss:$8 sm:$0xf]
  %s113 = scalar_lea.vmem %s0, 67
  %v114 = vld [vmem:[%s113] ss:$8 sm:$0xf0]
  %vm115 = vcmask 1047556
  %v116 = vsel %vm115, %v114, %v112
  %117 = vrot.lane.b32.xlu0 %v116, 48
  %v118 = vpop.permute.xlu0 %117
  %vm119 = vcmask 523648
  %s120 = scalar_lea.vmem %s1, 8
  %121 = vst.msk [vmem:[%s120] sm:$0xff] %vm119, %v118
  %s122 = scalar_lea.vmem %s0, 2
  %v123 = vld [vmem:[%s122] ss:$8 sm:$0xf]
  %s124 = scalar_lea.vmem %s0, 2
  %v125 = vld [vmem:[%s124] ss:$8 sm:$0xf0]
  %vm126 = vcmask 1047556
  %v127 = vsel %vm126, %v125, %v123
  %128 = vrot.lane.b32.xlu0 %v127, 32
  %v129 = vpop.permute.xlu0 %128
  %vm130 = vcmask 392448
  %131 = vst.msk [vmem:[%s1] sm:$0xff] %vm130, %v129
  %s132 = scalar_lea.vmem %s0, 66
  %v133 = vld [vmem:[%s132] ss:$8 sm:$0xf]
  %s134 = scalar_lea.vmem %s0, 66
  %v135 = vld [vmem:[%s134] ss:$8 sm:$0xf0]
  %vm136 = vcmask 1047556
  %v137 = vsel %vm136, %v135, %v133
  %138 = vrot.lane.b32.xlu0 %v137, 32
  %v139 = vpop.permute.xlu0 %138
  %vm140 = vcmask 392448
  %s141 = scalar_lea.vmem %s1, 8
  %142 = vst.msk [vmem:[%s141] sm:$0xff] %vm140, %v139
  %s143 = scalar_lea.vmem %s0, 1
  %v144 = vld [vmem:[%s143] ss:$8 sm:$0xf]
  %s145 = scalar_lea.vmem %s0, 1
  %v146 = vld [vmem:[%s145] ss:$8 sm:$0xf0]
  %vm147 = vcmask 1047556
  %v148 = vsel %vm147, %v146, %v144
  %149 = vrot.lane.b32.xlu0 %v148, 16
  %v150 = vpop.permute.xlu0 %149
  %vm151 = vcmask 261248
  %152 = vst.msk [vmem:[%s1] sm:$0xff] %vm151, %v150
  %s153 = scalar_lea.vmem %s0, 65
  %v154 = vld [vmem:[%s153] ss:$8 sm:$0xf]
  %s155 = scalar_lea.vmem %s0, 65
  %v156 = vld [vmem:[%s155] ss:$8 sm:$0xf0]
  %vm157 = vcmask 1047556
  %v158 = vsel %vm157, %v156, %v154
  %159 = vrot.lane.b32.xlu0 %v158, 16
  %v160 = vpop.permute.xlu0 %159
  %vm161 = vcmask 261248
  %s162 = scalar_lea.vmem %s1, 8
  %163 = vst.msk [vmem:[%s162] sm:$0xff] %vm161, %v160

// kernel: chaotic_evolution_gnn_forward.1
$region0: #{chaotic_evolution_gnn_forward.1}
  #allocation0 [shape = 'u32[]', space=smem, size = 0x4, offset = 0x4, fixed_abs, tag = 'smem constant byte address 0x4 - core index']
  #allocation1 [shape = 'u32[144,128]{1,0:T(1,128)}', space=vmem, size = 0x12000, scoped, tag = 'internal scratch']
  #allocation2 [shape = 'f32[16,32]{1,0:T(8,128)}', space=vmem, size = 0x2000, scoped, tag = 'scratch operand']
  #allocation3 [shape = 'f32[16,32]{1,0:T(8,128)}', space=vmem, size = 0x2000, scoped, tag = 'scratch operand']
  %s0 = inlined_call_operand.smem [shape: u32[31], index: -1, kind: input, shape index: {}]
  %s1 = sld [smem:[%s0]]
  %s2 = scalar_lea.smem %s0, 1
  %s3 = sld [smem:[%s2]]
  %s4 = scalar_lea.smem %s0, 2
  %s5 = sld [smem:[%s4]]
  %s6 = scalar_lea.smem %s0, 3
  %s7 = sld [smem:[%s6]]
  %s8 = scalar_lea.smem %s0, 4
  %s9 = sld [smem:[%s8]]
  %s10 = scalar_lea.smem %s0, 5
  %s11 = sld [smem:[%s10]]
  %s12 = scalar_lea.smem %s0, 6
  %s13 = sld [smem:[%s12]]
  %s14 = scalar_lea.smem %s0, 7
  %s15 = sld [smem:[%s14]]
  %s16 = scalar_lea.smem %s0, 8
  %s17 = sld [smem:[%s16]]
  %s18 = scalar_lea.smem %s0, 9
  %s19 = sld [smem:[%s18]]
  %s20 = scalar_lea.smem %s0, 10
  %s21 = sld [smem:[%s20]]
  %s22 = scalar_lea.smem %s0, 11
  %s23 = sld [smem:[%s22]]
  %s24 = scalar_lea.smem %s0, 12
  %s25 = sld [smem:[%s24]]
  %s26 = scalar_lea.smem %s0, 13
  %s27 = sld [smem:[%s26]]
  %s28 = scalar_lea.smem %s0, 14
  %s29 = sld [smem:[%s28]]
  %s30 = scalar_lea.smem %s0, 15
  %s31 = sld [smem:[%s30]]
  %s32 = scalar_lea.smem %s0, 16
  %s33 = sld [smem:[%s32]]
  %s34 = scalar_lea.smem %s0, 17
  %s35 = sld [smem:[%s34]]
  %s36 = scalar_lea.smem %s0, 18
  %s37 = sld [smem:[%s36]]
  %s38 = scalar_lea.smem %s0, 19
  %s39 = sld [smem:[%s38]]
  %s40 = scalar_lea.smem %s0, 20
  %s41 = sld [smem:[%s40]]
  %s42 = scalar_lea.smem %s0, 21
  %s43 = sld [smem:[%s42]]
  %s44 = scalar_lea.smem %s0, 22
  %s45 = sld [smem:[%s44]]
  %s46 = scalar_lea.smem %s0, 23
  %s47 = sld [smem:[%s46]]
  %s48 = scalar_lea.smem %s0, 24
  %s49 = sld [smem:[%s48]]
  %s50 = scalar_lea.smem %s0, 25
  %s51 = sld [smem:[%s50]]
  %s52 = scalar_lea.smem %s0, 26
  %s53 = sld [smem:[%s52]]
  %s54 = scalar_lea.smem %s0, 27
  %s55 = sld [smem:[%s54]]
  %s56 = scalar_lea.smem %s0, 28
  %s57 = sld [smem:[%s56]]
  %s58 = scalar_lea.smem %s0, 29
  %s59 = sld [smem:[%s58]]
  %s60 = scalar_lea.smem %s0, 30
  %s61 = sld [smem:[%s60]]
  %62 = xla_tuple %s59, %s61
  %s63 = sld [smem:[#allocation0]]
  $region165: #{chaotic_evolution_gnn_forward.1} parent=0
    _
  %s65 = ssub.s32 1, %s63
  %s66 = scalar_select 0, %s65, %s63
  $region1: #{chaotic_evolution_gnn_forward.1} parent=0
    #allocation4 [shape = 'u8[8192]{0}', space=vmem, size = 0x2000, scoped, tag = 'output window, operand 0, single buffered']
    #allocation5 [shape = 's32[2]{0}', space=sflag, size = 0x8, scoped, tag = 'scoped memory for chaotic_evolution_gnn_forward.1']
    %67 = vsyncpa [#allocation5], 0
    loop: start=0, step=1, limit=5
    $region2: #{chaotic_evolution_gnn_forward.1} parent=1 // loop_pre_header
      _
    $region3: #{chaotic_evolution_gnn_forward.1} parent=1 // loop_header
      %s69 = sphi 0, %s73
      %p70 = scmp.ge.s32.totalorder %s69, 5
      %s77 = sphi 0, %s77
      %s79 = sphi 0, %s77
      %s80 = sphi 0, %s79
      %s94 = sphi 0, %s80
      %s98 = sphi 0, %s98
      %s100 = sphi 0, %s98
      %s101 = sphi 0, %s100
      %s115 = sphi 0, %s101
      %s119 = sphi 0, %s119
      %s121 = sphi 0, %s119
      %s122 = sphi 0, %s121
      %s136 = sphi 0, %s122
      %s140 = sphi 0, %s140
      %s142 = sphi 0, %s140
      %s143 = sphi 0, %s142
      %s157 = sphi 0, %s143
      %s161 = sphi 0, %s161
      %s163 = sphi 0, %s161
      %s164 = sphi 0, %s163
      %s178 = sphi 0, %s164
      %s182 = sphi 0, %s182
      %s184 = sphi 0, %s182
      %s185 = sphi 0, %s184
      %s199 = sphi 0, %s185
      %s203 = sphi 0, %s203
      %s205 = sphi 0, %s203
      %s206 = sphi 0, %s205
      %s220 = sphi 0, %s206
      %s226 = sphi 0, %s228
      %s229 = sphi 0, %s226
      %s230 = sphi 0, %s229
      %s246 = sphi 0, %s230
      %s252 = sphi 0, %s254
      %s255 = sphi 0, %s252
      %s256 = sphi 0, %s255
      %s272 = sphi 0, %s256
      %s278 = sphi 0, %s280
      %s281 = sphi 0, %s278
      %s282 = sphi 0, %s281
      %s298 = sphi 0, %s282
      %s304 = sphi 0, %s306
      %s307 = sphi 0, %s304
      %s308 = sphi 0, %s307
      %s324 = sphi 0, %s308
      %s330 = sphi 0, %s332
      %s333 = sphi 0, %s330
      %s334 = sphi 0, %s333
      %s350 = sphi 0, %s334
      %s356 = sphi 0, %s358
      %s359 = sphi 0, %s356
      %s360 = sphi 0, %s359
      %s376 = sphi 0, %s360
      %s382 = sphi 0, %s384
      %s385 = sphi 0, %s382
      %s386 = sphi 0, %s385
      %s402 = sphi 0, %s386
      %s408 = sphi 0, %s410
      %s411 = sphi 0, %s408
      %s412 = sphi 0, %s411
      %s428 = sphi 0, %s412
      %s434 = sphi 0, %s436
      %s437 = sphi 0, %s434
      %s438 = sphi 0, %s437
      %s454 = sphi 0, %s438
      %s460 = sphi 0, %s462
      %s463 = sphi 0, %s460
      %s464 = sphi 0, %s463
      %s480 = sphi 0, %s464
      %s486 = sphi 0, %s488
      %s489 = sphi 0, %s486
      %s490 = sphi 0, %s489
      %s506 = sphi 0, %s490
      %s510 = sphi 0, %s510
      %s512 = sphi 0, %s510
      %s513 = sphi 0, %s512
      %s527 = sphi 0, %s513
      %s531 = sphi 0, %s531
      %s533 = sphi 0, %s531
      %s534 = sphi 0, %s533
      %s548 = sphi 0, %s534
      %s552 = sphi 0, %s552
      %s554 = sphi 0, %s552
      %s555 = sphi 0, %s554
      %s569 = sphi 0, %s555
      %s573 = sphi 0, %s573
      %s575 = sphi 0, %s573
      %s576 = sphi 0, %s575
      %s590 = sphi 0, %s576
      %s594 = sphi 0, %s594
      %s596 = sphi 0, %s594
      %s597 = sphi 0, %s596
      %s611 = sphi 0, %s597
      %s615 = sphi 0, %s615
      %s617 = sphi 0, %s615
      %s618 = sphi 0, %s617
      %s632 = sphi 0, %s618
      %s636 = sphi 0, %s636
      %s638 = sphi 0, %s636
      %s639 = sphi 0, %s638
      %s653 = sphi 0, %s639
      %s657 = sphi 0, %s657
      %s659 = sphi 0, %s657
      %s660 = sphi 0, %s659
      %s674 = sphi 0, %s660
      %s678 = sphi 0, %s678
      %s680 = sphi 0, %s678
      %s681 = sphi 0, %s680
      %s695 = sphi 0, %s681
      %s699 = sphi 0, %s699
      %s701 = sphi 0, %s699
      %s702 = sphi 0, %s701
      %s716 = sphi 0, %s702
      %s720 = sphi 0, %s720
      %s722 = sphi 0, %s720
      %s723 = sphi 0, %s722
      %s737 = sphi 0, %s723
      %s741 = sphi 0, %s741
      %s743 = sphi 0, %s741
      %s744 = sphi 0, %s743
      %s758 = sphi 0, %s744
      %s762 = sphi 0, %s762
      %s764 = sphi 0, %s762
      %s765 = sphi 0, %s764
      %s779 = sphi 0, %s765
    $region4: #{chaotic_evolution_gnn_forward.1} parent=1 // loop_header_branch
      %72 = sbr.rel (%p70) target = $region8
    $region5: #{chaotic_evolution_gnn_forward.1} parent=1 // loop_body
      %s74 = ssub.s32 %s69, 1
      %s75 = ssub.s32 %s69, 2
      %s76 = sadd.s32 %s69, 1
      %s78 = sadd.s32 %s77, 1
      %p81 = scmp.eq.s32.totalorder %s69, 2
      %p82 = scmp.ne.s32.totalorder %s77, %s79
      %p83 = scmp.eq.s32.totalorder %s69, 0
      %p84 = por %p82, %p83
      %p85 = scmp.ne.s32.totalorder %s77, %s79
      %p86 = scmp.eq.s32.totalorder %s74, 2
      %p87 = por %p85, %p86
      %p88 = scmp.ne.s32.totalorder %s79, %s80
      %p89 = scmp.eq.s32.totalorder %s74, 0
      %p90 = por %p88, %p89
      %p91 = scmp.ne.s32.totalorder %s79, %s80
      %p92 = scmp.eq.s32.totalorder %s75, 2
      %p93 = por %p91, %p92
      %p95 = scmp.ne.s32.totalorder %s80, %s94
      %p96 = scmp.eq.s32.totalorder %s75, 0
      %p97 = por %p95, %p96
      %s99 = sadd.s32 %s98, 1
      %p102 = scmp.eq.s32.totalorder %s69, 2
      %p103 = scmp.ne.s32.totalorder %s98, %s100
      %p104 = scmp.eq.s32.totalorder %s69, 0
      %p105 = por %p103, %p104
      %p106 = scmp.ne.s32.totalorder %s98, %s100
      %p107 = scmp.eq.s32.totalorder %s74, 2
      %p108 = por %p106, %p107
      %p109 = scmp.ne.s32.totalorder %s100, %s101
      %p110 = scmp.eq.s32.totalorder %s74, 0
      %p111 = por %p109, %p110
      %p112 = scmp.ne.s32.totalorder %s100, %s101
      %p113 = scmp.eq.s32.totalorder %s75, 2
      %p114 = por %p112, %p113
      %p116 = scmp.ne.s32.totalorder %s101, %s115
      %p117 = scmp.eq.s32.totalorder %s75, 0
      %p118 = por %p116, %p117
      %s120 = sadd.s32 %s119, 1
      %p123 = scmp.eq.s32.totalorder %s69, 2
      %p124 = scmp.ne.s32.totalorder %s119, %s121
      %p125 = scmp.eq.s32.totalorder %s69, 0
      %p126 = por %p124, %p125
      %p127 = scmp.ne.s32.totalorder %s119, %s121
      %p128 = scmp.eq.s32.totalorder %s74, 2
      %p129 = por %p127, %p128
      %p130 = scmp.ne.s32.totalorder %s121, %s122
      %p131 = scmp.eq.s32.totalorder %s74, 0
      %p132 = por %p130, %p131
      %p133 = scmp.ne.s32.totalorder %s121, %s122
      %p134 = scmp.eq.s32.totalorder %s75, 2
      %p135 = por %p133, %p134
      %p137 = scmp.ne.s32.totalorder %s122, %s136
      %p138 = scmp.eq.s32.totalorder %s75, 0
      %p139 = por %p137, %p138
      %s141 = sadd.s32 %s140, 1
      %p144 = scmp.eq.s32.totalorder %s69, 2
      %p145 = scmp.ne.s32.totalorder %s140, %s142
      %p146 = scmp.eq.s32.totalorder %s69, 0
      %p147 = por %p145, %p146
      %p148 = scmp.ne.s32.totalorder %s140, %s142
      %p149 = scmp.eq.s32.totalorder %s74, 2
      %p150 = por %p148, %p149
      %p151 = scmp.ne.s32.totalorder %s142, %s143
      %p152 = scmp.eq.s32.totalorder %s74, 0
      %p153 = por %p151, %p152
      %p154 = scmp.ne.s32.totalorder %s142, %s143
      %p155 = scmp.eq.s32.totalorder %s75, 2
      %p156 = por %p154, %p155
      %p158 = scmp.ne.s32.totalorder %s143, %s157
      %p159 = scmp.eq.s32.totalorder %s75, 0
      %p160 = por %p158, %p159
      %s162 = sadd.s32 %s161, 1
      %p165 = scmp.eq.s32.totalorder %s69, 2
      %p166 = scmp.ne.s32.totalorder %s161, %s163
      %p167 = scmp.eq.s32.totalorder %s69, 0
      %p168 = por %p166, %p167
      %p169 = scmp.ne.s32.totalorder %s161, %s163
      %p170 = scmp.eq.s32.totalorder %s74, 2
      %p171 = por %p169, %p170
      %p172 = scmp.ne.s32.totalorder %s163, %s164
      %p173 = scmp.eq.s32.totalorder %s74, 0
      %p174 = por %p172, %p173
      %p175 = scmp.ne.s32.totalorder %s163, %s164
      %p176 = scmp.eq.s32.totalorder %s75, 2
      %p177 = por %p175, %p176
      %p179 = scmp.ne.s32.totalorder %s164, %s178
      %p180 = scmp.eq.s32.totalorder %s75, 0
      %p181 = por %p179, %p180
      %s183 = sadd.s32 %s182, 1
      %p186 = scmp.eq.s32.totalorder %s69, 2
      %p187 = scmp.ne.s32.totalorder %s182, %s184
      %p188 = scmp.eq.s32.totalorder %s69, 0
      %p189 = por %p187, %p188
      %p190 = scmp.ne.s32.totalorder %s182, %s184
      %p191 = scmp.eq.s32.totalorder %s74, 2
      %p192 = por %p190, %p191
      %p193 = scmp.ne.s32.totalorder %s184, %s185
      %p194 = scmp.eq.s32.totalorder %s74, 0
      %p195 = por %p193, %p194
      %p196 = scmp.ne.s32.totalorder %s184, %s185
      %p197 = scmp.eq.s32.totalorder %s75, 2
      %p198 = por %p196, %p197
      %p200 = scmp.ne.s32.totalorder %s185, %s199
      %p201 = scmp.eq.s32.totalorder %s75, 0
      %p202 = por %p200, %p201
      %s204 = sadd.s32 %s203, 1
      %p207 = scmp.eq.s32.totalorder %s69, 2
      %p208 = scmp.ne.s32.totalorder %s203, %s205
      %p209 = scmp.eq.s32.totalorder %s69, 0
      %p210 = por %p208, %p209
      %p211 = scmp.ne.s32.totalorder %s203, %s205
      %p212 = scmp.eq.s32.totalorder %s74, 2
      %p213 = por %p211, %p212
      %p214 = scmp.ne.s32.totalorder %s205, %s206
      %p215 = scmp.eq.s32.totalorder %s74, 0
      %p216 = por %p214, %p215
      %p217 = scmp.ne.s32.totalorder %s205, %s206
      %p218 = scmp.eq.s32.totalorder %s75, 2
      %p219 = por %p217, %p218
      %p221 = scmp.ne.s32.totalorder %s206, %s220
      %p222 = scmp.eq.s32.totalorder %s75, 0
      %p223 = por %p221, %p222
      %s224 = ssub.s32 %s69, %s76
      %p225 = scmp.eq.s32.totalorder %s224, 0
      %s227 = sadd.s32 %s226, 1
      %s228 = scalar_select %p225, %s226, %s227
      %p231 = pneg %p225
      %p232 = scmp.eq.s32.totalorder %s69, 2
      %p233 = por %p231, %p232
      %p234 = scmp.ne.s32.totalorder %s226, %s229
      %p235 = scmp.eq.s32.totalorder %s69, 0
      %p236 = por %p234, %p235
      %p237 = scmp.ne.s32.totalorder %s226, %s229
      %p238 = scmp.eq.s32.totalorder %s74, 2
      %p239 = por %p237, %p238
      %p240 = scmp.ne.s32.totalorder %s229, %s230
      %p241 = scmp.eq.s32.totalorder %s74, 0
      %p242 = por %p240, %p241
      %p243 = scmp.ne.s32.totalorder %s229, %s230
      %p244 = scmp.eq.s32.totalorder %s75, 2
      %p245 = por %p243, %p244
      %p247 = scmp.ne.s32.totalorder %s230, %s246
      %p248 = scmp.eq.s32.totalorder %s75, 0
      %p249 = por %p247, %p248
      %s250 = ssub.s32 %s69, %s76
      %p251 = scmp.eq.s32.totalorder %s250, 0
      %s253 = sadd.s32 %s252, 1
      %s254 = scalar_select %p251, %s252, %s253
      %p257 = pneg %p251
      %p258 = scmp.eq.s32.totalorder %s69, 2
      %p259 = por %p257, %p258
      %p260 = scmp.ne.s32.totalorder %s252, %s255
      %p261 = scmp.eq.s32.totalorder %s69, 0
      %p262 = por %p260, %p261
      %p263 = scmp.ne.s32.totalorder %s252, %s255
      %p264 = scmp.eq.s32.totalorder %s74, 2
      %p265 = por %p263, %p264
      %p266 = scmp.ne.s32.totalorder %s255, %s256
      %p267 = scmp.eq.s32.totalorder %s74, 0
      %p268 = por %p266, %p267
      %p269 = scmp.ne.s32.totalorder %s255, %s256
      %p270 = scmp.eq.s32.totalorder %s75, 2
      %p271 = por %p269, %p270
      %p273 = scmp.ne.s32.totalorder %s256, %s272
      %p274 = scmp.eq.s32.totalorder %s75, 0
      %p275 = por %p273, %p274
      %s276 = ssub.s32 %s69, %s76
      %p277 = scmp.eq.s32.totalorder %s276, 0
      %s279 = sadd.s32 %s278, 1
      %s280 = scalar_select %p277, %s278, %s279
      %p283 = pneg %p277
      %p284 = scmp.eq.s32.totalorder %s69, 2
      %p285 = por %p283, %p284
      %p286 = scmp.ne.s32.totalorder %s278, %s281
      %p287 = scmp.eq.s32.totalorder %s69, 0
      %p288 = por %p286, %p287
      %p289 = scmp.ne.s32.totalorder %s278, %s281
      %p290 = scmp.eq.s32.totalorder %s74, 2
      %p291 = por %p289, %p290
      %p292 = scmp.ne.s32.totalorder %s281, %s282
      %p293 = scmp.eq.s32.totalorder %s74, 0
      %p294 = por %p292, %p293
      %p295 = scmp.ne.s32.totalorder %s281, %s282
      %p296 = scmp.eq.s32.totalorder %s75, 2
      %p297 = por %p295, %p296
      %p299 = scmp.ne.s32.totalorder %s282, %s298
      %p300 = scmp.eq.s32.totalorder %s75, 0
      %p301 = por %p299, %p300
      %s302 = ssub.s32 %s69, %s76
      %p303 = scmp.eq.s32.totalorder %s302, 0
      %s305 = sadd.s32 %s304, 1
      %s306 = scalar_select %p303, %s304, %s305
      %p309 = pneg %p303
      %p310 = scmp.eq.s32.totalorder %s69, 2
      %p311 = por %p309, %p310
      %p312 = scmp.ne.s32.totalorder %s304, %s307
      %p313 = scmp.eq.s32.totalorder %s69, 0
      %p314 = por %p312, %p313
      %p315 = scmp.ne.s32.totalorder %s304, %s307
      %p316 = scmp.eq.s32.totalorder %s74, 2
      %p317 = por %p315, %p316
      %p318 = scmp.ne.s32.totalorder %s307, %s308
      %p319 = scmp.eq.s32.totalorder %s74, 0
      %p320 = por %p318, %p319
      %p321 = scmp.ne.s32.totalorder %s307, %s308
      %p322 = scmp.eq.s32.totalorder %s75, 2
      %p323 = por %p321, %p322
      %p325 = scmp.ne.s32.totalorder %s308, %s324
      %p326 = scmp.eq.s32.totalorder %s75, 0
      %p327 = por %p325, %p326
      %s328 = ssub.s32 %s69, %s76
      %p329 = scmp.eq.s32.totalorder %s328, 0
      %s331 = sadd.s32 %s330, 1
      %s332 = scalar_select %p329, %s330, %s331
      %p335 = pneg %p329
      %p336 = scmp.eq.s32.totalorder %s69, 2
      %p337 = por %p335, %p336
      %p338 = scmp.ne.s32.totalorder %s330, %s333
      %p339 = scmp.eq.s32.totalorder %s69, 0
      %p340 = por %p338, %p339
      %p341 = scmp.ne.s32.totalorder %s330, %s333
      %p342 = scmp.eq.s32.totalorder %s74, 2
      %p343 = por %p341, %p342
      %p344 = scmp.ne.s32.totalorder %s333, %s334
      %p345 = scmp.eq.s32.totalorder %s74, 0
      %p346 = por %p344, %p345
      %p347 = scmp.ne.s32.totalorder %s333, %s334
      %p348 = scmp.eq.s32.totalorder %s75, 2
      %p349 = por %p347, %p348
      %p351 = scmp.ne.s32.totalorder %s334, %s350
      %p352 = scmp.eq.s32.totalorder %s75, 0
      %p353 = por %p351, %p352
      %s354 = ssub.s32 %s69, %s76
      %p355 = scmp.eq.s32.totalorder %s354, 0
      %s357 = sadd.s32 %s356, 1
      %s358 = scalar_select %p355, %s356, %s357
      %p361 = pneg %p355
      %p362 = scmp.eq.s32.totalorder %s69, 2
      %p363 = por %p361, %p362
      %p364 = scmp.ne.s32.totalorder %s356, %s359
      %p365 = scmp.eq.s32.totalorder %s69, 0
      %p366 = por %p364, %p365
      %p367 = scmp.ne.s32.totalorder %s356, %s359
      %p368 = scmp.eq.s32.totalorder %s74, 2
      %p369 = por %p367, %p368
      %p370 = scmp.ne.s32.totalorder %s359, %s360
      %p371 = scmp.eq.s32.totalorder %s74, 0
      %p372 = por %p370, %p371
      %p373 = scmp.ne.s32.totalorder %s359, %s360
      %p374 = scmp.eq.s32.totalorder %s75, 2
      %p375 = por %p373, %p374
      %p377 = scmp.ne.s32.totalorder %s360, %s376
      %p378 = scmp.eq.s32.totalorder %s75, 0
      %p379 = por %p377, %p378
      %s380 = ssub.s32 %s69, %s76
      %p381 = scmp.eq.s32.totalorder %s380, 0
      %s383 = sadd.s32 %s382, 1
      %s384 = scalar_select %p381, %s382, %s383
      %p387 = pneg %p381
      %p388 = scmp.eq.s32.totalorder %s69, 2
      %p389 = por %p387, %p388
      %p390 = scmp.ne.s32.totalorder %s382, %s385
      %p391 = scmp.eq.s32.totalorder %s69, 0
      %p392 = por %p390, %p391
      %p393 = scmp.ne.s32.totalorder %s382, %s385
      %p394 = scmp.eq.s32.totalorder %s74, 2
      %p395 = por %p393, %p394
      %p396 = scmp.ne.s32.totalorder %s385, %s386
      %p397 = scmp.eq.s32.totalorder %s74, 0
      %p398 = por %p396, %p397
      %p399 = scmp.ne.s32.totalorder %s385, %s386
      %p400 = scmp.eq.s32.totalorder %s75, 2
      %p401 = por %p399, %p400
      %p403 = scmp.ne.s32.totalorder %s386, %s402
      %p404 = scmp.eq.s32.totalorder %s75, 0
      %p405 = por %p403, %p404
      %s406 = ssub.s32 %s69, %s76
      %p407 = scmp.eq.s32.totalorder %s406, 0
      %s409 = sadd.s32 %s408, 1
      %s410 = scalar_select %p407, %s408, %s409
      %p413 = pneg %p407
      %p414 = scmp.eq.s32.totalorder %s69, 2
      %p415 = por %p413, %p414
      %p416 = scmp.ne.s32.totalorder %s408, %s411
      %p417 = scmp.eq.s32.totalorder %s69, 0
      %p418 = por %p416, %p417
      %p419 = scmp.ne.s32.totalorder %s408, %s411
      %p420 = scmp.eq.s32.totalorder %s74, 2
      %p421 = por %p419, %p420
      %p422 = scmp.ne.s32.totalorder %s411, %s412
      %p423 = scmp.eq.s32.totalorder %s74, 0
      %p424 = por %p422, %p423
      %p425 = scmp.ne.s32.totalorder %s411, %s412
      %p426 = scmp.eq.s32.totalorder %s75, 2
      %p427 = por %p425, %p426
      %p429 = scmp.ne.s32.totalorder %s412, %s428
      %p430 = scmp.eq.s32.totalorder %s75, 0
      %p431 = por %p429, %p430
      %s432 = ssub.s32 %s69, %s76
      %p433 = scmp.eq.s32.totalorder %s432, 0
      %s435 = sadd.s32 %s434, 1
      %s436 = scalar_select %p433, %s434, %s435
      %p439 = pneg %p433
      %p440 = scmp.eq.s32.totalorder %s69, 2
      %p441 = por %p439, %p440
      %p442 = scmp.ne.s32.totalorder %s434, %s437
      %p443 = scmp.eq.s32.totalorder %s69, 0
      %p444 = por %p442, %p443
      %p445 = scmp.ne.s32.totalorder %s434, %s437
      %p446 = scmp.eq.s32.totalorder %s74, 2
      %p447 = por %p445, %p446
      %p448 = scmp.ne.s32.totalorder %s437, %s438
      %p449 = scmp.eq.s32.totalorder %s74, 0
      %p450 = por %p448, %p449
      %p451 = scmp.ne.s32.totalorder %s437, %s438
      %p452 = scmp.eq.s32.totalorder %s75, 2
      %p453 = por %p451, %p452
      %p455 = scmp.ne.s32.totalorder %s438, %s454
      %p456 = scmp.eq.s32.totalorder %s75, 0
      %p457 = por %p455, %p456
      %s458 = ssub.s32 %s69, %s76
      %p459 = scmp.eq.s32.totalorder %s458, 0
      %s461 = sadd.s32 %s460, 1
      %s462 = scalar_select %p459, %s460, %s461
      %p465 = pneg %p459
      %p466 = scmp.eq.s32.totalorder %s69, 2
      %p467 = por %p465, %p466
      %p468 = scmp.ne.s32.totalorder %s460, %s463
      %p469 = scmp.eq.s32.totalorder %s69, 0
      %p470 = por %p468, %p469
      %p471 = scmp.ne.s32.totalorder %s460, %s463
      %p472 = scmp.eq.s32.totalorder %s74, 2
      %p473 = por %p471, %p472
      %p474 = scmp.ne.s32.totalorder %s463, %s464
      %p475 = scmp.eq.s32.totalorder %s74, 0
      %p476 = por %p474, %p475
      %p477 = scmp.ne.s32.totalorder %s463, %s464
      %p478 = scmp.eq.s32.totalorder %s75, 2
      %p479 = por %p477, %p478
      %p481 = scmp.ne.s32.totalorder %s464, %s480
      %p482 = scmp.eq.s32.totalorder %s75, 0
      %p483 = por %p481, %p482
      %s484 = ssub.s32 %s69, %s76
      %p485 = scmp.eq.s32.totalorder %s484, 0
      %s487 = sadd.s32 %s486, 1
      %s488 = scalar_select %p485, %s486, %s487
      %p491 = pneg %p485
      %p492 = scmp.eq.s32.totalorder %s69, 2
      %p493 = por %p491, %p492
      %p494 = scmp.ne.s32.totalorder %s486, %s489
      %p495 = scmp.eq.s32.totalorder %s69, 0
      %p496 = por %p494, %p495
      %p497 = scmp.ne.s32.totalorder %s486, %s489
      %p498 = scmp.eq.s32.totalorder %s74, 2
      %p499 = por %p497, %p498
      %p500 = scmp.ne.s32.totalorder %s489, %s490
      %p501 = scmp.eq.s32.totalorder %s74, 0
      %p502 = por %p500, %p501
      %p503 = scmp.ne.s32.totalorder %s489, %s490
      %p504 = scmp.eq.s32.totalorder %s75, 2
      %p505 = por %p503, %p504
      %p507 = scmp.ne.s32.totalorder %s490, %s506
      %p508 = scmp.eq.s32.totalorder %s75, 0
      %p509 = por %p507, %p508
      %s511 = sadd.s32 %s510, 1
      %p514 = scmp.eq.s32.totalorder %s69, 2
      %p515 = scmp.ne.s32.totalorder %s510, %s512
      %p516 = scmp.eq.s32.totalorder %s69, 0
      %p517 = por %p515, %p516
      %p518 = scmp.ne.s32.totalorder %s510, %s512
      %p519 = scmp.eq.s32.totalorder %s74, 2
      %p520 = por %p518, %p519
      %p521 = scmp.ne.s32.totalorder %s512, %s513
      %p522 = scmp.eq.s32.totalorder %s74, 0
      %p523 = por %p521, %p522
      %p524 = scmp.ne.s32.totalorder %s512, %s513
      %p525 = scmp.eq.s32.totalorder %s75, 2
      %p526 = por %p524, %p525
      %p528 = scmp.ne.s32.totalorder %s513, %s527
      %p529 = scmp.eq.s32.totalorder %s75, 0
      %p530 = por %p528, %p529
      %s532 = sadd.s32 %s531, 1
      %p535 = scmp.eq.s32.totalorder %s69, 2
      %p536 = scmp.ne.s32.totalorder %s531, %s533
      %p537 = scmp.eq.s32.totalorder %s69, 0
      %p538 = por %p536, %p537
      %p539 = scmp.ne.s32.totalorder %s531, %s533
      %p540 = scmp.eq.s32.totalorder %s74, 2
      %p541 = por %p539, %p540
      %p542 = scmp.ne.s32.totalorder %s533, %s534
      %p543 = scmp.eq.s32.totalorder %s74, 0
      %p544 = por %p542, %p543
      %p545 = scmp.ne.s32.totalorder %s533, %s534
      %p546 = scmp.eq.s32.totalorder %s75, 2
      %p547 = por %p545, %p546
      %p549 = scmp.ne.s32.totalorder %s534, %s548
      %p550 = scmp.eq.s32.totalorder %s75, 0
      %p551 = por %p549, %p550
      %s553 = sadd.s32 %s552, 1
      %p556 = scmp.eq.s32.totalorder %s69, 2
      %p557 = scmp.ne.s32.totalorder %s552, %s554
      %p558 = scmp.eq.s32.totalorder %s69, 0
      %p559 = por %p557, %p558
      %p560 = scmp.ne.s32.totalorder %s552, %s554
      %p561 = scmp.eq.s32.totalorder %s74, 2
      %p562 = por %p560, %p561
      %p563 = scmp.ne.s32.totalorder %s554, %s555
      %p564 = scmp.eq.s32.totalorder %s74, 0
      %p565 = por %p563, %p564
      %p566 = scmp.ne.s32.totalorder %s554, %s555
      %p567 = scmp.eq.s32.totalorder %s75, 2
      %p568 = por %p566, %p567
      %p570 = scmp.ne.s32.totalorder %s555, %s569
      %p571 = scmp.eq.s32.totalorder %s75, 0
      %p572 = por %p570, %p571
      %s574 = sadd.s32 %s573, 1
      %p577 = scmp.eq.s32.totalorder %s69, 2
      %p578 = scmp.ne.s32.totalorder %s573, %s575
      %p579 = scmp.eq.s32.totalorder %s69, 0
      %p580 = por %p578, %p579
      %p581 = scmp.ne.s32.totalorder %s573, %s575
      %p582 = scmp.eq.s32.totalorder %s74, 2
      %p583 = por %p581, %p582
      %p584 = scmp.ne.s32.totalorder %s575, %s576
      %p585 = scmp.eq.s32.totalorder %s74, 0
      %p586 = por %p584, %p585
      %p587 = scmp.ne.s32.totalorder %s575, %s576
      %p588 = scmp.eq.s32.totalorder %s75, 2
      %p589 = por %p587, %p588
      %p591 = scmp.ne.s32.totalorder %s576, %s590
      %p592 = scmp.eq.s32.totalorder %s75, 0
      %p593 = por %p591, %p592
      %s595 = sadd.s32 %s594, 1
      %p598 = scmp.eq.s32.totalorder %s69, 2
      %p599 = scmp.ne.s32.totalorder %s594, %s596
      %p600 = scmp.eq.s32.totalorder %s69, 0
      %p601 = por %p599, %p600
      %p602 = scmp.ne.s32.totalorder %s594, %s596
      %p603 = scmp.eq.s32.totalorder %s74, 2
      %p604 = por %p602, %p603
      %p605 = scmp.ne.s32.totalorder %s596, %s597
      %p606 = scmp.eq.s32.totalorder %s74, 0
      %p607 = por %p605, %p606
      %p608 = scmp.ne.s32.totalorder %s596, %s597
      %p609 = scmp.eq.s32.totalorder %s75, 2
      %p610 = por %p608, %p609
      %p612 = scmp.ne.s32.totalorder %s597, %s611
      %p613 = scmp.eq.s32.totalorder %s75, 0
      %p614 = por %p612, %p613
      %s616 = sadd.s32 %s615, 1
      %p619 = scmp.eq.s32.totalorder %s69, 2
      %p620 = scmp.ne.s32.totalorder %s615, %s617
      %p621 = scmp.eq.s32.totalorder %s69, 0
      %p622 = por %p620, %p621
      %p623 = scmp.ne.s32.totalorder %s615, %s617
      %p624 = scmp.eq.s32.totalorder %s74, 2
      %p625 = por %p623, %p624
      %p626 = scmp.ne.s32.totalorder %s617, %s618
      %p627 = scmp.eq.s32.totalorder %s74, 0
      %p628 = por %p626, %p627
      %p629 = scmp.ne.s32.totalorder %s617, %s618
      %p630 = scmp.eq.s32.totalorder %s75, 2
      %p631 = por %p629, %p630
      %p633 = scmp.ne.s32.totalorder %s618, %s632
      %p634 = scmp.eq.s32.totalorder %s75, 0
      %p635 = por %p633, %p634
      %s637 = sadd.s32 %s636, 1
      %p640 = scmp.eq.s32.totalorder %s69, 2
      %p641 = scmp.ne.s32.totalorder %s636, %s638
      %p642 = scmp.eq.s32.totalorder %s69, 0
      %p643 = por %p641, %p642
      %p644 = scmp.ne.s32.totalorder %s636, %s638
      %p645 = scmp.eq.s32.totalorder %s74, 2
      %p646 = por %p644, %p645
      %p647 = scmp.ne.s32.totalorder %s638, %s639
      %p648 = scmp.eq.s32.totalorder %s74, 0
      %p649 = por %p647, %p648
      %p650 = scmp.ne.s32.totalorder %s638, %s639
      %p651 = scmp.eq.s32.totalorder %s75, 2
      %p652 = por %p650, %p651
      %p654 = scmp.ne.s32.totalorder %s639, %s653
      %p655 = scmp.eq.s32.totalorder %s75, 0
      %p656 = por %p654, %p655
      %s658 = sadd.s32 %s657, 1
      %p661 = scmp.eq.s32.totalorder %s69, 2
      %p662 = scmp.ne.s32.totalorder %s657, %s659
      %p663 = scmp.eq.s32.totalorder %s69, 0
      %p664 = por %p662, %p663
      %p665 = scmp.ne.s32.totalorder %s657, %s659
      %p666 = scmp.eq.s32.totalorder %s74, 2
      %p667 = por %p665, %p666
      %p668 = scmp.ne.s32.totalorder %s659, %s660
      %p669 = scmp.eq.s32.totalorder %s74, 0
      %p670 = por %p668, %p669
      %p671 = scmp.ne.s32.totalorder %s659, %s660
      %p672 = scmp.eq.s32.totalorder %s75, 2
      %p673 = por %p671, %p672
      %p675 = scmp.ne.s32.totalorder %s660, %s674
      %p676 = scmp.eq.s32.totalorder %s75, 0
      %p677 = por %p675, %p676
      %s679 = sadd.s32 %s678, 1
      %p682 = scmp.eq.s32.totalorder %s69, 2
      %p683 = scmp.ne.s32.totalorder %s678, %s680
      %p684 = scmp.eq.s32.totalorder %s69, 0
      %p685 = por %p683, %p684
      %p686 = scmp.ne.s32.totalorder %s678, %s680
      %p687 = scmp.eq.s32.totalorder %s74, 2
      %p688 = por %p686, %p687
      %p689 = scmp.ne.s32.totalorder %s680, %s681
      %p690 = scmp.eq.s32.totalorder %s74, 0
      %p691 = por %p689, %p690
      %p692 = scmp.ne.s32.totalorder %s680, %s681
      %p693 = scmp.eq.s32.totalorder %s75, 2
      %p694 = por %p692, %p693
      %p696 = scmp.ne.s32.totalorder %s681, %s695
      %p697 = scmp.eq.s32.totalorder %s75, 0
      %p698 = por %p696, %p697
      %s700 = sadd.s32 %s699, 1
      %p703 = scmp.eq.s32.totalorder %s69, 2
      %p704 = scmp.ne.s32.totalorder %s699, %s701
      %p705 = scmp.eq.s32.totalorder %s69, 0
      %p706 = por %p704, %p705
      %p707 = scmp.ne.s32.totalorder %s699, %s701
      %p708 = scmp.eq.s32.totalorder %s74, 2
      %p709 = por %p707, %p708
      %p710 = scmp.ne.s32.totalorder %s701, %s702
      %p711 = scmp.eq.s32.totalorder %s74, 0
      %p712 = por %p710, %p711
      %p713 = scmp.ne.s32.totalorder %s701, %s702
      %p714 = scmp.eq.s32.totalorder %s75, 2
      %p715 = por %p713, %p714
      %p717 = scmp.ne.s32.totalorder %s702, %s716
      %p718 = scmp.eq.s32.totalorder %s75, 0
      %p719 = por %p717, %p718
      %s721 = sadd.s32 %s720, 1
      %p724 = scmp.eq.s32.totalorder %s69, 2
      %p725 = scmp.ne.s32.totalorder %s720, %s722
      %p726 = scmp.eq.s32.totalorder %s69, 0
      %p727 = por %p725, %p726
      %p728 = scmp.ne.s32.totalorder %s720, %s722
      %p729 = scmp.eq.s32.totalorder %s74, 2
      %p730 = por %p728, %p729
      %p731 = scmp.ne.s32.totalorder %s722, %s723
      %p732 = scmp.eq.s32.totalorder %s74, 0
      %p733 = por %p731, %p732
      %p734 = scmp.ne.s32.totalorder %s722, %s723
      %p735 = scmp.eq.s32.totalorder %s75, 2
      %p736 = por %p734, %p735
      %p738 = scmp.ne.s32.totalorder %s723, %s737
      %p739 = scmp.eq.s32.totalorder %s75, 0
      %p740 = por %p738, %p739
      %s742 = sadd.s32 %s741, 1
      %p745 = scmp.eq.s32.totalorder %s69, 2
      %p746 = scmp.ne.s32.totalorder %s741, %s743
      %p747 = scmp.eq.s32.totalorder %s69, 0
      %p748 = por %p746, %p747
      %p749 = scmp.ne.s32.totalorder %s741, %s743
      %p750 = scmp.eq.s32.totalorder %s74, 2
      %p751 = por %p749, %p750
      %p752 = scmp.ne.s32.totalorder %s743, %s744
      %p753 = scmp.eq.s32.totalorder %s74, 0
      %p754 = por %p752, %p753
      %p755 = scmp.ne.s32.totalorder %s743, %s744
      %p756 = scmp.eq.s32.totalorder %s75, 2
      %p757 = por %p755, %p756
      %p759 = scmp.ne.s32.totalorder %s744, %s758
      %p760 = scmp.eq.s32.totalorder %s75, 0
      %p761 = por %p759, %p760
      %s763 = sadd.s32 %s762, 1
      %p766 = scmp.eq.s32.totalorder %s69, 2
      %p767 = scmp.ne.s32.totalorder %s762, %s764
      %p768 = scmp.eq.s32.totalorder %s69, 0
      %p769 = por %p767, %p768
      %p770 = scmp.ne.s32.totalorder %s762, %s764
      %p771 = scmp.eq.s32.totalorder %s74, 2
      %p772 = por %p770, %p771
      %p773 = scmp.ne.s32.totalorder %s764, %s765
      %p774 = scmp.eq.s32.totalorder %s74, 0
      %p775 = por %p773, %p774
      %p776 = scmp.ne.s32.totalorder %s764, %s765
      %p777 = scmp.eq.s32.totalorder %s75, 2
      %p778 = por %p776, %p777
      %p780 = scmp.ne.s32.totalorder %s765, %s779
      %p781 = scmp.eq.s32.totalorder %s75, 0
      %p782 = por %p780, %p781
      %p783 = scmp.le.s32.totalorder 1, %s69
      %p784 = scmp.lt.s32.totalorder %s69, 4
      %p785 = pnand %p783, %p784
      %p786 = pneg %p785
      // Predicated region
      $region9: #{chaotic_evolution_gnn_forward.1} parent=5 // pred_check
        _
      $region10: #{chaotic_evolution_gnn_forward.1} parent=5 // pred_check_branch
        %788 = sbr.rel (%p785) target = $region12
      $region11: #{chaotic_evolution_gnn_forward.1} parent=5 // pred_region
        %s789 = ssub.s32 %s69, 1
        // Predicated region
        $region13: #{chaotic_evolution_gnn_forward.1} parent=11 // pred_check
          %p790 = pneg %p90
        $region14: #{chaotic_evolution_gnn_forward.1} parent=11 // pred_check_branch
          %792 = sbr.rel (%p790) target = $region16
        $region15: #{chaotic_evolution_gnn_forward.1} parent=11 // pred_region
          _
        $region16: #{chaotic_evolution_gnn_forward.1} parent=11 // pred_fallthru
          _
        // Predicated region
        $region17: #{chaotic_evolution_gnn_forward.1} parent=11 // pred_check
          %p793 = pneg %p111
        $region18: #{chaotic_evolution_gnn_forward.1} parent=11 // pred_check_branch
          %795 = sbr.rel (%p793) target = $region20
        $region19: #{chaotic_evolution_gnn_forward.1} parent=11 // pred_region
          _
        $region20: #{chaotic_evolution_gnn_forward.1} parent=11 // pred_fallthru
          _
        // Predicated region
        $region21: #{chaotic_evolution_gnn_forward.1} parent=11 // pred_check
          %p796 = pneg %p132
        $region22: #{chaotic_evolution_gnn_forward.1} parent=11 // pred_check_branch
          %798 = sbr.rel (%p796) target = $region24
        $region23: #{chaotic_evolution_gnn_forward.1} parent=11 // pred_region
          _
        $region24: #{chaotic_evolution_gnn_forward.1} parent=11 // pred_fallthru
          _
        // Predicated region
        $region25: #{chaotic_evolution_gnn_forward.1} parent=11 // pred_check
          %p799 = pneg %p153
        $region26: #{chaotic_evolution_gnn_forward.1} parent=11 // pred_check_branch
          %801 = sbr.rel (%p799) target = $region28
        $region27: #{chaotic_evolution_gnn_forward.1} parent=11 // pred_region
          _
        $region28: #{chaotic_evolution_gnn_forward.1} parent=11 // pred_fallthru
          _
        // Predicated region
        $region29: #{chaotic_evolution_gnn_forward.1} parent=11 // pred_check
          %p802 = pneg %p174
        $region30: #{chaotic_evolution_gnn_forward.1} parent=11 // pred_check_branch
          %804 = sbr.rel (%p802) target = $region32
        $region31: #{chaotic_evolution_gnn_forward.1} parent=11 // pred_region
          _
        $region32: #{chaotic_evolution_gnn_forward.1} parent=11 // pred_fallthru
          _
        // Predicated region
        $region33: #{chaotic_evolution_gnn_forward.1} parent=11 // pred_check
          %p805 = pneg %p195
        $region34: #{chaotic_evolution_gnn_forward.1} parent=11 // pred_check_branch
          %807 = sbr.rel (%p805) target = $region36
        $region35: #{chaotic_evolution_gnn_forward.1} parent=11 // pred_region
          _
        $region36: #{chaotic_evolution_gnn_forward.1} parent=11 // pred_fallthru
          _
        // Predicated region
        $region37: #{chaotic_evolution_gnn_forward.1} parent=11 // pred_check
          %p808 = pneg %p216
        $region38: #{chaotic_evolution_gnn_forward.1} parent=11 // pred_check_branch
          %810 = sbr.rel (%p808) target = $region40
        $region39: #{chaotic_evolution_gnn_forward.1} parent=11 // pred_region
          _
        $region40: #{chaotic_evolution_gnn_forward.1} parent=11 // pred_fallthru
          _
        // Predicated region
        $region41: #{chaotic_evolution_gnn_forward.1} parent=11 // pred_check
          %p811 = pneg %p523
        $region42: #{chaotic_evolution_gnn_forward.1} parent=11 // pred_check_branch
          %813 = sbr.rel (%p811) target = $region44
        $region43: #{chaotic_evolution_gnn_forward.1} parent=11 // pred_region
          _
        $region44: #{chaotic_evolution_gnn_forward.1} parent=11 // pred_fallthru
          _
        // Predicated region
        $region45: #{chaotic_evolution_gnn_forward.1} parent=11 // pred_check
          %p814 = pneg %p544
        $region46: #{chaotic_evolution_gnn_forward.1} parent=11 // pred_check_branch
          %816 = sbr.rel (%p814) target = $region48
        $region47: #{chaotic_evolution_gnn_forward.1} parent=11 // pred_region
          _
        $region48: #{chaotic_evolution_gnn_forward.1} parent=11 // pred_fallthru
          _
        // Predicated region
        $region49: #{chaotic_evolution_gnn_forward.1} parent=11 // pred_check
          %p817 = pneg %p565
        $region50: #{chaotic_evolution_gnn_forward.1} parent=11 // pred_check_branch
          %819 = sbr.rel (%p817) target = $region52
        $region51: #{chaotic_evolution_gnn_forward.1} parent=11 // pred_region
          _
        $region52: #{chaotic_evolution_gnn_forward.1} parent=11 // pred_fallthru
          _
        // Predicated region
        $region53: #{chaotic_evolution_gnn_forward.1} parent=11 // pred_check
          %p820 = pneg %p586
        $region54: #{chaotic_evolution_gnn_forward.1} parent=11 // pred_check_branch
          %822 = sbr.rel (%p820) target = $region56
        $region55: #{chaotic_evolution_gnn_forward.1} parent=11 // pred_region
          _
        $region56: #{chaotic_evolution_gnn_forward.1} parent=11 // pred_fallthru
          _
        // Predicated region
        $region57: #{chaotic_evolution_gnn_forward.1} parent=11 // pred_check
          %p823 = pneg %p607
        $region58: #{chaotic_evolution_gnn_forward.1} parent=11 // pred_check_branch
          %825 = sbr.rel (%p823) target = $region60
        $region59: #{chaotic_evolution_gnn_forward.1} parent=11 // pred_region
          _
        $region60: #{chaotic_evolution_gnn_forward.1} parent=11 // pred_fallthru
          _
        // Predicated region
        $region61: #{chaotic_evolution_gnn_forward.1} parent=11 // pred_check
          %p826 = pneg %p628
        $region62: #{chaotic_evolution_gnn_forward.1} parent=11 // pred_check_branch
          %828 = sbr.rel (%p826) target = $region64
        $region63: #{chaotic_evolution_gnn_forward.1} parent=11 // pred_region
          _
        $region64: #{chaotic_evolution_gnn_forward.1} parent=11 // pred_fallthru
          _
        // Predicated region
        $region65: #{chaotic_evolution_gnn_forward.1} parent=11 // pred_check
          %p829 = pneg %p649
        $region66: #{chaotic_evolution_gnn_forward.1} parent=11 // pred_check_branch
          %831 = sbr.rel (%p829) target = $region68
        $region67: #{chaotic_evolution_gnn_forward.1} parent=11 // pred_region
          _
        $region68: #{chaotic_evolution_gnn_forward.1} parent=11 // pred_fallthru
          _
        // Predicated region
        $region69: #{chaotic_evolution_gnn_forward.1} parent=11 // pred_check
          %p832 = pneg %p670
        $region70: #{chaotic_evolution_gnn_forward.1} parent=11 // pred_check_branch
          %834 = sbr.rel (%p832) target = $region72
        $region71: #{chaotic_evolution_gnn_forward.1} parent=11 // pred_region
          _
        $region72: #{chaotic_evolution_gnn_forward.1} parent=11 // pred_fallthru
          _
        // Predicated region
        $region73: #{chaotic_evolution_gnn_forward.1} parent=11 // pred_check
          %p835 = pneg %p691
        $region74: #{chaotic_evolution_gnn_forward.1} parent=11 // pred_check_branch
          %837 = sbr.rel (%p835) target = $region76
        $region75: #{chaotic_evolution_gnn_forward.1} parent=11 // pred_region
          _
        $region76: #{chaotic_evolution_gnn_forward.1} parent=11 // pred_fallthru
          _
        // Predicated region
        $region77: #{chaotic_evolution_gnn_forward.1} parent=11 // pred_check
          %p838 = pneg %p712
        $region78: #{chaotic_evolution_gnn_forward.1} parent=11 // pred_check_branch
          %840 = sbr.rel (%p838) target = $region80
        $region79: #{chaotic_evolution_gnn_forward.1} parent=11 // pred_region
          _
        $region80: #{chaotic_evolution_gnn_forward.1} parent=11 // pred_fallthru
          _
        // Predicated region
        $region81: #{chaotic_evolution_gnn_forward.1} parent=11 // pred_check
          %p841 = pneg %p733
        $region82: #{chaotic_evolution_gnn_forward.1} parent=11 // pred_check_branch
          %843 = sbr.rel (%p841) target = $region84
        $region83: #{chaotic_evolution_gnn_forward.1} parent=11 // pred_region
          _
        $region84: #{chaotic_evolution_gnn_forward.1} parent=11 // pred_fallthru
          _
      $region12: #{chaotic_evolution_gnn_forward.1} parent=5 // pred_fallthru
        _
      %p844 = scmp.lt.s32.totalorder %s69, 3
      // Predicated region
      $region85: #{chaotic_evolution_gnn_forward.1} parent=5 // pred_check
        %p845 = pneg %p844
      $region86: #{chaotic_evolution_gnn_forward.1} parent=5 // pred_check_branch
        %847 = sbr.rel (%p845) target = $region88
      $region87: #{chaotic_evolution_gnn_forward.1} parent=5 // pred_region
        // Predicated region
        $region89: #{chaotic_evolution_gnn_forward.1} parent=87 // pred_check
          %p848 = pneg %p236
        $region90: #{chaotic_evolution_gnn_forward.1} parent=87 // pred_check_branch
          %850 = sbr.rel (%p848) target = $region92
        $region91: #{chaotic_evolution_gnn_forward.1} parent=87 // pred_region
          %p851 = scmp.lt.s32.totalorder %s69, 2
          %s852 = scalar_select %p851, %s69, 2
          %s853 = smul.addr %s852, 8
          %s854 = smul.addr %s853, 4
          %s855 = scalar_lea.vmem %s15, %s854
        $region92: #{chaotic_evolution_gnn_forward.1} parent=87 // pred_fallthru
          _
        // Predicated region
        $region93: #{chaotic_evolution_gnn_forward.1} parent=87 // pred_check
          %p856 = pneg %p262
        $region94: #{chaotic_evolution_gnn_forward.1} parent=87 // pred_check_branch
          %858 = sbr.rel (%p856) target = $region96
        $region95: #{chaotic_evolution_gnn_forward.1} parent=87 // pred_region
          %p859 = scmp.lt.s32.totalorder %s69, 2
          %s860 = scalar_select %p859, %s69, 2
          %s861 = smul.addr %s860, 2
          %s862 = scalar_lea.vmem %s17, %s861
        $region96: #{chaotic_evolution_gnn_forward.1} parent=87 // pred_fallthru
          _
        // Predicated region
        $region97: #{chaotic_evolution_gnn_forward.1} parent=87 // pred_check
          %p863 = pneg %p288
        $region98: #{chaotic_evolution_gnn_forward.1} parent=87 // pred_check_branch
          %865 = sbr.rel (%p863) target = $region100
        $region99: #{chaotic_evolution_gnn_forward.1} parent=87 // pred_region
          %p866 = scmp.lt.s32.totalorder %s69, 2
          %s867 = scalar_select %p866, %s69, 2
          %s868 = smul.addr %s867, 2
          %s869 = scalar_lea.vmem %s19, %s868
        $region100: #{chaotic_evolution_gnn_forward.1} parent=87 // pred_fallthru
          _
        // Predicated region
        $region101: #{chaotic_evolution_gnn_forward.1} parent=87 // pred_check
          %p870 = pneg %p314
        $region102: #{chaotic_evolution_gnn_forward.1} parent=87 // pred_check_branch
          %872 = sbr.rel (%p870) target = $region104
        $region103: #{chaotic_evolution_gnn_forward.1} parent=87 // pred_region
          %p873 = scmp.lt.s32.totalorder %s69, 2
          %s874 = scalar_select %p873, %s69, 2
          %s875 = smul.addr %s874, 2
          %s876 = scalar_lea.vmem %s21, %s875
        $region104: #{chaotic_evolution_gnn_forward.1} parent=87 // pred_fallthru
          _
        // Predicated region
        $region105: #{chaotic_evolution_gnn_forward.1} parent=87 // pred_check
          %p877 = pneg %p340
        $region106: #{chaotic_evolution_gnn_forward.1} parent=87 // pred_check_branch
          %879 = sbr.rel (%p877) target = $region108
        $region107: #{chaotic_evolution_gnn_forward.1} parent=87 // pred_region
          %p880 = scmp.lt.s32.totalorder %s69, 2
          %s881 = scalar_select %p880, %s69, 2
          %s882 = smul.addr %s881, 128
          %s883 = smul.addr %s882, 4
          %s884 = scalar_lea.vmem %s23, %s883
        $region108: #{chaotic_evolution_gnn_forward.1} parent=87 // pred_fallthru
          _
        // Predicated region
        $region109: #{chaotic_evolution_gnn_forward.1} parent=87 // pred_check
          %p885 = pneg %p366
        $region110: #{chaotic_evolution_gnn_forward.1} parent=87 // pred_check_branch
          %887 = sbr.rel (%p885) target = $region112
        $region111: #{chaotic_evolution_gnn_forward.1} parent=87 // pred_region
          %p888 = scmp.lt.s32.totalorder %s69, 2
          %s889 = scalar_select %p888, %s69, 2
          %s890 = smul.addr %s889, 4
          %s891 = scalar_lea.vmem %s25, %s890
        $region112: #{chaotic_evolution_gnn_forward.1} parent=87 // pred_fallthru
          _
        // Predicated region
        $region113: #{chaotic_evolution_gnn_forward.1} parent=87 // pred_check
          %p892 = pneg %p392
        $region114: #{chaotic_evolution_gnn_forward.1} parent=87 // pred_check_branch
          %894 = sbr.rel (%p892) target = $region116
        $region115: #{chaotic_evolution_gnn_forward.1} parent=87 // pred_region
          %p895 = scmp.lt.s32.totalorder %s69, 2
          %s896 = scalar_select %p895, %s69, 2
          %s897 = smul.addr %s896, 4
          %s898 = scalar_lea.vmem %s27, %s897
        $region116: #{chaotic_evolution_gnn_forward.1} parent=87 // pred_fallthru
          _
        // Predicated region
        $region117: #{chaotic_evolution_gnn_forward.1} parent=87 // pred_check
          %p899 = pneg %p418
        $region118: #{chaotic_evolution_gnn_forward.1} parent=87 // pred_check_branch
          %901 = sbr.rel (%p899) target = $region120
        $region119: #{chaotic_evolution_gnn_forward.1} parent=87 // pred_region
          %p902 = scmp.lt.s32.totalorder %s69, 2
          %s903 = scalar_select %p902, %s69, 2
          %s904 = smul.addr %s903, 4
          %s905 = scalar_lea.vmem %s29, %s904
        $region120: #{chaotic_evolution_gnn_forward.1} parent=87 // pred_fallthru
          _
        // Predicated region
        $region121: #{chaotic_evolution_gnn_forward.1} parent=87 // pred_check
          %p906 = pneg %p444
        $region122: #{chaotic_evolution_gnn_forward.1} parent=87 // pred_check_branch
          %908 = sbr.rel (%p906) target = $region124
        $region123: #{chaotic_evolution_gnn_forward.1} parent=87 // pred_region
          %p909 = scmp.lt.s32.totalorder %s69, 2
          %s910 = scalar_select %p909, %s69, 2
          %s911 = smul.addr %s910, 8
          %s912 = smul.addr %s911, 8
          %s913 = scalar_lea.vmem %s31, %s912
        $region124: #{chaotic_evolution_gnn_forward.1} parent=87 // pred_fallthru
          _
        // Predicated region
        $region125: #{chaotic_evolution_gnn_forward.1} parent=87 // pred_check
          %p914 = pneg %p470
        $region126: #{chaotic_evolution_gnn_forward.1} parent=87 // pred_check_branch
          %916 = sbr.rel (%p914) target = $region128
        $region127: #{chaotic_evolution_gnn_forward.1} parent=87 // pred_region
          %p917 = scmp.lt.s32.totalorder %s69, 2
          %s918 = scalar_select %p917, %s69, 2
          %s919 = smul.addr %s918, 32
          %s920 = smul.addr %s919, 8
          %s921 = scalar_lea.vmem %s33, %s920
        $region128: #{chaotic_evolution_gnn_forward.1} parent=87 // pred_fallthru
          _
        // Predicated region
        $region129: #{chaotic_evolution_gnn_forward.1} parent=87 // pred_check
          %p922 = pneg %p496
        $region130: #{chaotic_evolution_gnn_forward.1} parent=87 // pred_check_branch
          %924 = sbr.rel (%p922) target = $region132
        $region131: #{chaotic_evolution_gnn_forward.1} parent=87 // pred_region
          %p925 = scmp.lt.s32.totalorder %s69, 2
          %s926 = scalar_select %p925, %s69, 2
          %s927 = smul.addr %s926, 32
          %s928 = smul.addr %s927, 8
          %s929 = scalar_lea.vmem %s35, %s928
        $region132: #{chaotic_evolution_gnn_forward.1} parent=87 // pred_fallthru
          _
      $region88: #{chaotic_evolution_gnn_forward.1} parent=5 // pred_fallthru
        _
      %p930 = scmp.le.s32.totalorder 1, %s69
      %p931 = scmp.lt.s32.totalorder %s69, 4
      %p932 = pnand %p930, %p931
      %p933 = pneg %p932
      // Predicated region
      $region133: #{chaotic_evolution_gnn_forward.1} parent=5 // pred_check
        _
      $region134: #{chaotic_evolution_gnn_forward.1} parent=5 // pred_check_branch
        %935 = sbr.rel (%p932) target = $region136
      $region135: #{chaotic_evolution_gnn_forward.1} parent=5 // pred_region
        %s936 = ssub.s32 %s69, 1
        %p937 = pneg %p90
        %p938 = pneg %p87
        %p939 = pneg %p111
        %p940 = pneg %p108
        %p941 = pneg %p132
        %p942 = pneg %p129
        %p943 = pneg %p153
        %p944 = pneg %p150
        %p945 = pneg %p174
        %p946 = pneg %p171
        %p947 = pneg %p195
        %p948 = pneg %p192
        %p949 = pneg %p216
        %p950 = pneg %p213
        %p951 = scmp.lt.s32.totalorder %s74, 2
        %s952 = scalar_select %p951, %s74, 2
        %s953 = smul.addr %s952, 8
        %s954 = smul.addr %s953, 4
        %s955 = scalar_lea.vmem %s15, %s954
        %p956 = pneg %p242
        %p957 = pneg %p239
        %p958 = scmp.lt.s32.totalorder %s74, 2
        %s959 = scalar_select %p958, %s74, 2
        %s960 = smul.addr %s959, 2
        %s961 = scalar_lea.vmem %s17, %s960
        %p962 = pneg %p268
        %p963 = pneg %p265
        %p964 = scmp.lt.s32.totalorder %s74, 2
        %s965 = scalar_select %p964, %s74, 2
        %s966 = smul.addr %s965, 2
        %s967 = scalar_lea.vmem %s19, %s966
        %p968 = pneg %p294
        %p969 = pneg %p291
        %p970 = scmp.lt.s32.totalorder %s74, 2
        %s971 = scalar_select %p970, %s74, 2
        %s972 = smul.addr %s971, 2
        %s973 = scalar_lea.vmem %s21, %s972
        %p974 = pneg %p320
        %p975 = pneg %p317
        %p976 = scmp.lt.s32.totalorder %s74, 2
        %s977 = scalar_select %p976, %s74, 2
        %s978 = smul.addr %s977, 128
        %s979 = smul.addr %s978, 4
        %s980 = scalar_lea.vmem %s23, %s979
        %p981 = pneg %p346
        %p982 = pneg %p343
        %p983 = scmp.lt.s32.totalorder %s74, 2
        %s984 = scalar_select %p983, %s74, 2
        %s985 = smul.addr %s984, 4
        %s986 = scalar_lea.vmem %s25, %s985
        %p987 = pneg %p372
        %p988 = pneg %p369
        %p989 = scmp.lt.s32.totalorder %s74, 2
        %s990 = scalar_select %p989, %s74, 2
        %s991 = smul.addr %s990, 4
        %s992 = scalar_lea.vmem %s27, %s991
        %p993 = pneg %p398
        %p994 = pneg %p395
        %p995 = scmp.lt.s32.totalorder %s74, 2
        %s996 = scalar_select %p995, %s74, 2
        %s997 = smul.addr %s996, 4
        %s998 = scalar_lea.vmem %s29, %s997
        %p999 = pneg %p424
        %p1000 = pneg %p421
        %p1001 = scmp.lt.s32.totalorder %s74, 2
        %s1002 = scalar_select %p1001, %s74, 2
        %s1003 = smul.addr %s1002, 8
        %s1004 = smul.addr %s1003, 8
        %s1005 = scalar_lea.vmem %s31, %s1004
        %p1006 = pneg %p450
        %p1007 = pneg %p447
        %p1008 = scmp.lt.s32.totalorder %s74, 2
        %s1009 = scalar_select %p1008, %s74, 2
        %s1010 = smul.addr %s1009, 32
        %s1011 = smul.addr %s1010, 8
        %s1012 = scalar_lea.vmem %s33, %s1011
        %p1013 = pneg %p476
        %p1014 = pneg %p473
        %p1015 = scmp.lt.s32.totalorder %s74, 2
        %s1016 = scalar_select %p1015, %s74, 2
        %s1017 = smul.addr %s1016, 32
        %s1018 = smul.addr %s1017, 8
        %s1019 = scalar_lea.vmem %s35, %s1018
        %p1020 = pneg %p502
        %p1021 = pneg %p499
        %p1022 = pneg %p523
        %p1023 = pneg %p520
        %p1024 = pneg %p544
        %p1025 = pneg %p541
        %p1026 = pneg %p565
        %p1027 = pneg %p562
        %p1028 = pneg %p586
        %p1029 = pneg %p583
        %p1030 = pneg %p607
        %p1031 = pneg %p604
        %p1032 = pneg %p628
        %p1033 = pneg %p625
        %p1034 = pneg %p649
        %p1035 = pneg %p646
        %p1036 = pneg %p670
        %p1037 = pneg %p667
        %p1038 = pneg %p691
        %p1039 = pneg %p688
        %p1040 = pneg %p712
        %p1041 = pneg %p709
        %p1042 = pneg %p733
        %p1043 = pneg %p730
        %p1044 = pneg %p754
        %p1045 = pneg %p751
        %p1046 = pneg %p775
        %p1047 = pneg %p772
        %p1048 = scmp.lt.s32.totalorder %s74, 2
        %s1049 = scalar_select %p1048, %s74, 2
        %s1050 = smul.addr %s1049, 8
        %s1051 = smul.addr %s1050, 4
        %s1052 = scalar_lea.vmem %s15, %s1051
        %p1053 = scmp.lt.s32.totalorder %s74, 2
        %s1054 = scalar_select %p1053, %s74, 2
        %s1055 = smul.addr %s1054, 2
        %s1056 = scalar_lea.vmem %s17, %s1055
        %p1057 = scmp.lt.s32.totalorder %s74, 2
        %s1058 = scalar_select %p1057, %s74, 2
        %s1059 = smul.addr %s1058, 2
        %s1060 = scalar_lea.vmem %s19, %s1059
        %p1061 = scmp.lt.s32.totalorder %s74, 2
        %s1062 = scalar_select %p1061, %s74, 2
        %s1063 = smul.addr %s1062, 2
        %s1064 = scalar_lea.vmem %s21, %s1063
        %p1065 = scmp.lt.s32.totalorder %s74, 2
        %s1066 = scalar_select %p1065, %s74, 2
        %s1067 = smul.addr %s1066, 128
        %s1068 = smul.addr %s1067, 4
        %s1069 = scalar_lea.vmem %s23, %s1068
        %p1070 = scmp.lt.s32.totalorder %s74, 2
        %s1071 = scalar_select %p1070, %s74, 2
        %s1072 = smul.addr %s1071, 4
        %s1073 = scalar_lea.vmem %s25, %s1072
        %p1074 = scmp.lt.s32.totalorder %s74, 2
        %s1075 = scalar_select %p1074, %s74, 2
        %s1076 = smul.addr %s1075, 4
        %s1077 = scalar_lea.vmem %s27, %s1076
        %p1078 = scmp.lt.s32.totalorder %s74, 2
        %s1079 = scalar_select %p1078, %s74, 2
        %s1080 = smul.addr %s1079, 4
        %s1081 = scalar_lea.vmem %s29, %s1080
        %p1082 = scmp.lt.s32.totalorder %s74, 2
        %s1083 = scalar_select %p1082, %s74, 2
        %s1084 = smul.addr %s1083, 8
        %s1085 = smul.addr %s1084, 8
        %s1086 = scalar_lea.vmem %s31, %s1085
        %p1087 = scmp.lt.s32.totalorder %s74, 2
        %s1088 = scalar_select %p1087, %s74, 2
        %s1089 = smul.addr %s1088, 32
        %s1090 = smul.addr %s1089, 8
        %s1091 = scalar_lea.vmem %s33, %s1090
        %p1092 = scmp.lt.s32.totalorder %s74, 2
        %s1093 = scalar_select %p1092, %s74, 2
        %s1094 = smul.addr %s1093, 32
        %s1095 = smul.addr %s1094, 8
        %s1096 = scalar_lea.vmem %s35, %s1095
        %p1098 = scmp.eq.s32.totalorder %s74, 0
        // Predicated region
        $region137: #{chaotic_evolution_gnn_forward.1} parent=135 // pred_check
          %p1099 = pneg %p1098
        $region138: #{chaotic_evolution_gnn_forward.1} parent=135 // pred_check_branch
          %1101 = sbr.rel (%p1099) target = $region140
        $region139: #{chaotic_evolution_gnn_forward.1} parent=135 // pred_region
          %v1102 = vld [vmem:[%s1] sm:$0xff]
          %v1103 = vld [vmem:[%s1 + $0x8] sm:$0xff]
          %v1104 = vld [vmem:[%s5] sm:$0xff]
          %v1105 = vld [vmem:[%s5 + $0x8] sm:$0xff]
          %v1106 = vld [vmem:[%s7] sm:$0x1]
          %v1108 = vlaneseq
          %v1109 = vshrl.u32 %v1108, 7
          %v1110 = vsub.s32 0, %v1109
          %v1111 = vrot.slane %v1106, %v1110
          %vm1113 = vcmask 130048
          %v1115 = vsel %vm1113, %v1102, 0
          %v1118 = vsel %vm1113, %v1103, 0
          %1120 = vmatprep.subr.mxu0 0.0
          %1121 = vmatpush1.msra.mxu0 %v1104
          %1122 = vmatprep.subr.mxu0 0.0
          %1123 = vmatpush1.msra.mxu0 %v1105
          %1124 = vmatprep.subr.mxu0 0.0
          %1125 = vmatpush1.msra.mxu0 0.0
          %1126 = vmatprep.subr.mxu0 0.0
          %1127 = vmatpush1.msra.mxu0 0.0
          %1128 = vmatprep.subr.mxu0 0.0
          %1129 = vmatpush1.msra.mxu0 0.0
          %1130 = vmatprep.subr.mxu0 0.0
          %1131 = vmatpush1.msra.mxu0 0.0
          %1132 = vmatprep.subr.mxu0 0.0
          %1133 = vmatpush1.msra.mxu0 0.0
          %1134 = vmatprep.subr.mxu0 0.0
          %1135 = vmatpush1.msra.mxu0 0.0
          %1136 = vmatprep.subr.mxu0 0.0
          %1137 = vmatpush1.msra.mxu0 0.0
          %1138 = vmatprep.subr.mxu0 0.0
          %1139 = vmatpush1.msra.mxu0 0.0
          %1140 = vmatprep.subr.mxu0 0.0
          %1141 = vmatpush1.msra.mxu0 0.0
          %1142 = vmatprep.subr.mxu0 0.0
          %1143 = vmatpush1.msra.mxu0 0.0
          %1144 = vmatprep.subr.mxu0 0.0
          %1145 = vmatpush1.msra.mxu0 0.0
          %1146 = vmatprep.subr.mxu0 0.0
          %1147 = vmatpush1.msra.mxu0 0.0
          %1148 = vmatprep.subr.mxu0 0.0
          %1149 = vmatpush1.msra.mxu0 0.0
          %1150 = vmatprep.subr.mxu0 0.0
          %1151 = vmatpush1.msra.mxu0 0.0
          %1152 = vmatprep.subr.mxu0 0.0
          %1153 = vmatpush1.msra.mxu0 0.0
          %1154 = vmatprep.subr.mxu0 0.0
          %1155 = vmatpush1.msra.mxu0 0.0
          %1156 = vmatprep.subr.mxu0 0.0
          %1157 = vmatpush1.msra.mxu0 0.0
          %1158 = vmatprep.subr.mxu0 0.0
          %1159 = vmatpush1.msra.mxu0 0.0
          %1160 = vmatprep.subr.mxu0 0.0
          %1161 = vmatpush1.msra.mxu0 0.0
          %1162 = vmatprep.subr.mxu0 0.0
          %1163 = vmatpush1.msra.mxu0 0.0
          %1164 = vmatprep.subr.mxu0 0.0
          %1165 = vmatpush1.msra.mxu0 0.0
          %1166 = vmatprep.subr.mxu0 0.0
          %1167 = vmatpush1.msra.mxu0 0.0
          %1168 = vmatprep.subr.mxu0 0.0
          %1169 = vmatpush1.msra.mxu0 0.0
          %1170 = vmatprep.subr.mxu0 0.0
          %1171 = vmatpush1.msra.mxu0 0.0
          %1172 = vmatprep.subr.mxu0 0.0
          %1173 = vmatpush1.msra.mxu0 0.0
          %1174 = vmatprep.subr.mxu0 0.0
          %1175 = vmatpush1.msra.mxu0 0.0
          %1176 = vmatprep.subr.mxu0 0.0
          %1177 = vmatpush1.msra.mxu0 0.0
          %1178 = vmatprep.subr.mxu0 0.0
          %1179 = vmatpush1.msra.mxu0 0.0
          %1180 = vmatprep.subr.mxu0 0.0
          %1181 = vmatpush1.msra.mxu0 0.0
          %1182 = vmatprep.subr.mxu0 0.0
          %1183 = vmatpush1.msra.mxu0 0.0
          %1184 = vmatprep.mubr.f32.mxu0 0.0
          %1185 = vmatmul.mubr.f32.gmra.mrb[0].mxu0 %v1115
          %v1186 = vpop.f32.mrb[0].mxu0
          %v1187 = vadd.f32 %v1111, %v1186
          %v1188 = vpop.f32.mrb[0].mxu0
          %1189 = vmatprep.mubr.f32.mxu0 0.0
          %1190 = vmatmul.mubr.f32.gmra.mrb[0].mxu0 %v1118
          %v1191 = vpop.f32.mrb[0].mxu0
          %v1192 = vadd.f32 %v1111, %v1191
          %v1193 = vpop.f32.mrb[0].mxu0
          %1194 = vdwg.mxu0
          %vm1195 = vcmask 261120
          %v1196 = vsel %vm1195, %v1187, 0.0
          %1197 = vadd.xlane.f32.xlu0 %v1196
          %v1198 = vpop.xlane.xlu0 %1197
          %v1199 = vsel %vm1195, %v1192, 0.0
          %1200 = vadd.xlane.f32.xlu0 %v1199
          %v1201 = vpop.xlane.xlu0 %1200
          %v1202 = vrcp.pop 32.0
          %v1203 = vmul.f32 %v1198, %v1202
          %v1204 = vmul.f32 %v1201, %v1202
          %v1205 = vsub.f32 %v1187, %v1203
          %v1206 = vsub.f32 %v1192, %v1204
          %v1207 = vmul.f32 %v1205, %v1205
          %v1208 = vmul.f32 %v1206, %v1206
          %v1209 = vsel %vm1195, %v1207, 0.0
          %1210 = vadd.xlane.f32.xlu0 %v1209
          %v1211 = vpop.xlane.xlu0 %1210
          %v1212 = vsel %vm1195, %v1208, 0.0
          %1213 = vadd.xlane.f32.xlu0 %v1212
          %v1214 = vpop.xlane.xlu0 %1213
          %v1215 = vmul.f32 %v1211, %v1202
          %v1216 = vmul.f32 %v1214, %v1202
          %v1217 = vadd.f32 %v1215, 1e-05
          %v1218 = vadd.f32 %v1216, 1e-05
          %v1219 = vrsqrt.pop %v1217
          %v1220 = vrsqrt.pop %v1218
          %v1221 = vmul.f32 %v1205, %v1219
          %v1222 = vmul.f32 %v1206, %v1220
          %v1223 = vld [vmem:[%s9] sm:$0x1]
          %v1225 = vlaneseq
          %v1226 = vshrl.u32 %v1225, 7
          %v1227 = vsub.s32 0, %v1226
          %v1228 = vrot.slane %v1223, %v1227
          %v1230 = vmul.f32 %v1221, %v1228
          %v1231 = vmul.f32 %v1222, %v1228
          %v1232 = vld [vmem:[%s11] sm:$0x1]
          %v1234 = vlaneseq
          %v1235 = vshrl.u32 %v1234, 7
          %v1236 = vsub.s32 0, %v1235
          %v1237 = vrot.slane %v1232, %v1236
          %v1239 = vadd.f32 %v1230, %v1237
          %v1240 = vadd.f32 %v1231, %v1237
          %v1241 = vmax.f32 %v1239, 0.0
          %v1242 = vmax.f32 %v1240, 0.0
          %v1243 = vld [vmem:[%s13] sm:$0x1]
          %v1244 = vmul.f32 %v1243, 0.1
          %v1246 = vlaneseq
          %v1247 = vshrl.u32 %v1246, 7
          %v1248 = vsub.s32 0, %v1247
          %v1249 = vrot.slane %v1244, %v1248
          %v1251 = vadd.f32 %v1241, %v1249
          %v1252 = vadd.f32 %v1242, %v1249
          %1253 = vst.msk [vmem:[#allocation2] sm:$0xff] %vm1195, %v1251
          %1254 = vst.msk [vmem:[#allocation2 + $0x8] sm:$0xff] %vm1195, %v1252
          %1255 = vst.msk [vmem:[#allocation3] sm:$0xff] %vm1195, 0.0
          %1256 = vst.msk [vmem:[#allocation3 + $0x8] sm:$0xff] %vm1195, 0.0
        $region140: #{chaotic_evolution_gnn_forward.1} parent=135 // pred_fallthru
          _
        %v1257 = vld [vmem:[#allocation2] sm:$0xff]
        %v1258 = vld [vmem:[#allocation2 + $0x8] sm:$0xff]
        %s1259 = scvt.s32.f32 %s74
        %s1260 = smul.f32 %s1259, 0.1
        %s1261 = sadd.f32 %s1260, 1.0
        %s1262 = smul.f32 %s1261, 0.1
        %v1263 = vpack.c.bf16 %v1258, %v1257
        %v1264 = vld [vmem:[%s1052] sm:$0xff]
        %v1265 = vld [vmem:[%s1052 + $0x8] sm:$0xff]
        %v1266 = vld [vmem:[%s1052 + $0x10] sm:$0xff]
        %v1267 = vld [vmem:[%s1052 + $0x18] sm:$0xff]
        %v1268 = vld [vmem:[%s1056] sm:$0x3]
        %v1270 = vlaneseq
        %v1271 = vshrl.u32 %v1270, 7
        %v1272 = vsub.s32 0, %v1271
        %v1273 = vrot.slane %v1268, %v1272
        %v1274 = vlaneseq
        %v1275 = vshrl.u32 %v1274, 7
        %v1276 = vsub.s32 1, %v1275
        %v1277 = vrot.slane %v1268, %v1276
        %v1284 = vunpack.c.l.b16 %v1264
        %v1285 = vunpack.c.h.b16 %v1264
        %v1286 = vunpack.c.l.b16 %v1265
        %v1287 = vunpack.c.h.b16 %v1265
        %v1288 = vunpack.c.l.b16 %v1266
        %v1289 = vunpack.c.h.b16 %v1266
        %v1290 = vunpack.c.l.b16 %v1267
        %v1291 = vunpack.c.h.b16 %v1267
        %v1292 = vpack.c.b16 %v1286, %v1284
        %v1293 = vpack.c.b16 %v1287, %v1285
        %v1294 = vpack.c.b16 %v1290, %v1288
        %v1295 = vpack.c.b16 %v1291, %v1289
        %vm1300 = vcmask 261120
        %v1302 = vsel %vm1300, %v1263, 0
        %1304 = vmatprep.subr.bf16.mxu0 %v1293
        %1305 = vmatpush1.bf16.msra.mxu0 %v1292
        %1306 = vmatprep.subr.bf16.mxu0 %v1295
        %1307 = vmatpush1.bf16.msra.mxu0 %v1294
        %1308 = vmatprep.subr.bf16.mxu0 0
        %1309 = vmatpush1.bf16.msra.mxu0 0
        %1310 = vmatprep.subr.bf16.mxu0 0
        %1311 = vmatpush1.bf16.msra.mxu0 0
        %1312 = vmatprep.subr.bf16.mxu0 0
        %1313 = vmatpush1.bf16.msra.mxu0 0
        %1314 = vmatprep.subr.bf16.mxu0 0
        %1315 = vmatpush1.bf16.msra.mxu0 0
        %1316 = vmatprep.subr.bf16.mxu0 0
        %1317 = vmatpush1.bf16.msra.mxu0 0
        %1318 = vmatprep.subr.bf16.mxu0 0
        %1319 = vmatpush1.bf16.msra.mxu0 0
        %1320 = vmatprep.subr.bf16.mxu0 0
        %1321 = vmatpush1.bf16.msra.mxu0 0
        %1322 = vmatprep.subr.bf16.mxu0 0
        %1323 = vmatpush1.bf16.msra.mxu0 0
        %1324 = vmatprep.subr.bf16.mxu0 0
        %1325 = vmatpush1.bf16.msra.mxu0 0
        %1326 = vmatprep.subr.bf16.mxu0 0
        %1327 = vmatpush1.bf16.msra.mxu0 0
        %1328 = vmatprep.subr.bf16.mxu0 0
        %1329 = vmatpush1.bf16.msra.mxu0 0
        %1330 = vmatprep.subr.bf16.mxu0 0
        %1331 = vmatpush1.bf16.msra.mxu0 0
        %1332 = vmatprep.subr.bf16.mxu0 0
        %1333 = vmatpush1.bf16.msra.mxu0 0
        %1334 = vmatprep.subr.bf16.mxu0 0
        %1335 = vmatpush1.bf16.msra.mxu0 0
        %1336 = vmatprep.mubr.bf16.mxu0 0
        %1337 = vmatmul.mubr.bf16.gmra.mrb[0].mxu0 %v1302
        %v1338 = vpop.f32.mrb[0].mxu0
        %v1339 = vadd.f32 %v1273, %v1338
        %v1340 = vpop.f32.mrb[0].mxu0
        %v1341 = vadd.f32 %v1277, %v1340
        %v1342 = vpop.f32.mrb[0].mxu0
        %v1343 = vadd.f32 %v1273, %v1342
        %v1344 = vpop.f32.mrb[0].mxu0
        %v1345 = vadd.f32 %v1277, %v1344
        %1346 = vdwg.mxu0
        %v1347 = vadd.f32 %v1339, %v1341
        %1348 = vadd.xlane.f32.xlu0 %v1347
        %v1349 = vpop.xlane.xlu0 %1348
        %v1350 = vadd.f32 %v1343, %v1345
        %1351 = vadd.xlane.f32.xlu0 %v1350
        %v1352 = vpop.xlane.xlu0 %1351
        %v1353 = vrcp.pop 256.0
        %v1354 = vmul.f32 %v1349, %v1353
        %v1355 = vmul.f32 %v1352, %v1353
        %v1356 = vsub.f32 %v1339, %v1354
        %v1357 = vsub.f32 %v1341, %v1354
        %v1358 = vsub.f32 %v1343, %v1355
        %v1359 = vsub.f32 %v1345, %v1355
        %v1360 = vmul.f32 %v1356, %v1356
        %v1361 = vmul.f32 %v1357, %v1357
        %v1362 = vmul.f32 %v1358, %v1358
        %v1363 = vmul.f32 %v1359, %v1359
        %v1364 = vadd.f32 %v1360, %v1361
        %1365 = vadd.xlane.f32.xlu0 %v1364
        %v1366 = vpop.xlane.xlu0 %1365
        %v1367 = vadd.f32 %v1362, %v1363
        %1368 = vadd.xlane.f32.xlu0 %v1367
        %v1369 = vpop.xlane.xlu0 %1368
        %v1370 = vmul.f32 %v1366, %v1353
        %v1371 = vmul.f32 %v1369, %v1353
        %v1372 = vadd.f32 %v1370, 1e-05
        %v1373 = vadd.f32 %v1371, 1e-05
        %v1374 = vrsqrt.pop %v1372
        %v1375 = vrsqrt.pop %v1373
        %v1376 = vmul.f32 %v1356, %v1374
        %v1377 = vmul.f32 %v1357, %v1374
        %v1378 = vmul.f32 %v1358, %v1375
        %v1379 = vmul.f32 %v1359, %v1375
        %v1380 = vld [vmem:[%s1060] sm:$0x3]
        %v1382 = vlaneseq
        %v1383 = vshrl.u32 %v1382, 7
        %v1384 = vsub.s32 0, %v1383
        %v1385 = vrot.slane %v1380, %v1384
        %v1386 = vlaneseq
        %v1387 = vshrl.u32 %v1386, 7
        %v1388 = vsub.s32 1, %v1387
        %v1389 = vrot.slane %v1380, %v1388
        %v1392 = vmul.f32 %v1376, %v1385
        %v1393 = vmul.f32 %v1377, %v1389
        %v1394 = vmul.f32 %v1378, %v1385
        %v1395 = vmul.f32 %v1379, %v1389
        %v1396 = vld [vmem:[%s1064] sm:$0x3]
        %v1398 = vlaneseq
        %v1399 = vshrl.u32 %v1398, 7
        %v1400 = vsub.s32 0, %v1399
        %v1401 = vrot.slane %v1396, %v1400
        %v1402 = vlaneseq
        %v1403 = vshrl.u32 %v1402, 7
        %v1404 = vsub.s32 1, %v1403
        %v1405 = vrot.slane %v1396, %v1404
        %v1408 = vadd.f32 %v1392, %v1401
        %v1409 = vadd.f32 %v1393, %v1405
        %v1410 = vadd.f32 %v1394, %v1401
        %v1411 = vadd.f32 %v1395, %v1405
        %v1412 = vmax.f32 %v1408, 0.0
        %v1413 = vmax.f32 %v1409, 0.0
        %v1414 = vmax.f32 %v1410, 0.0
        %v1415 = vmax.f32 %v1411, 0.0
        %v1416 = vld [vmem:[%s1086] sm:$0xff]
        %v1417 = vld [vmem:[%s1086 + $0x8] sm:$0xff]
        %v1418 = vld [vmem:[%s1086 + $0x10] sm:$0xff]
        %v1419 = vld [vmem:[%s1086 + $0x18] sm:$0xff]
        %v1420 = vstv %s1262
        %v1421 = vmul.f32 %v1420, %v1416
        %v1422 = vmul.f32 %v1420, %v1417
        %v1423 = vmul.f32 %v1420, %v1418
        %v1424 = vmul.f32 %v1420, %v1419
        %v1425 = vadd.f32 %v1412, %v1421
        %v1426 = vadd.f32 %v1413, %v1422
        %v1427 = vadd.f32 %v1414, %v1423
        %v1428 = vadd.f32 %v1415, %v1424
        %v1429 = vpack.c.bf16 %v1427, %v1425
        %v1430 = vpack.c.bf16 %v1428, %v1426
        %v1431 = vld [vmem:[%s1069] sm:$0xff]
        %v1432 = vld [vmem:[%s1069 + $0x8] sm:$0xff]
        %v1433 = vld [vmem:[%s1069 + $0x10] sm:$0xff]
        %v1434 = vld [vmem:[%s1069 + $0x18] sm:$0xff]
        %v1435 = vld [vmem:[%s1069 + $0x20] sm:$0xff]
        %v1436 = vld [vmem:[%s1069 + $0x28] sm:$0xff]
        %v1437 = vld [vmem:[%s1069 + $0x30] sm:$0xff]
        %v1438 = vld [vmem:[%s1069 + $0x38] sm:$0xff]
        %v1439 = vld [vmem:[%s1069 + $0x40] sm:$0xff]
        %v1440 = vld [vmem:[%s1069 + $0x48] sm:$0xff]
        %v1441 = vld [vmem:[%s1069 + $0x50] sm:$0xff]
        %v1442 = vld [vmem:[%s1069 + $0x58] sm:$0xff]
        %v1443 = vld [vmem:[%s1069 + $0x60] sm:$0xff]
        %v1444 = vld [vmem:[%s1069 + $0x68] sm:$0xff]
        %v1445 = vld [vmem:[%s1069 + $0x70] sm:$0xff]
        %v1446 = vld [vmem:[%s1069 + $0x78] sm:$0xff]
        %v1447 = vld [vmem:[%s1069 + $0x80] sm:$0xff]
        %v1448 = vld [vmem:[%s1069 + $0x88] sm:$0xff]
        %v1449 = vld [vmem:[%s1069 + $0x90] sm:$0xff]
        %v1450 = vld [vmem:[%s1069 + $0x98] sm:$0xff]
        %v1451 = vld [vmem:[%s1069 + $0xa0] sm:$0xff]
        %v1452 = vld [vmem:[%s1069 + $0xa8] sm:$0xff]
        %v1453 = vld [vmem:[%s1069 + $0xb0] sm:$0xff]
        %v1454 = vld [vmem:[%s1069 + $0xb8] sm:$0xff]
        %v1455 = vld [vmem:[%s1069 + $0xc0] sm:$0xff]
        %v1456 = vld [vmem:[%s1069 + $0xc8] sm:$0xff]
        %v1457 = vld [vmem:[%s1069 + $0xd0] sm:$0xff]
        %v1458 = vld [vmem:[%s1069 + $0xd8] sm:$0xff]
        %v1459 = vld [vmem:[%s1069 + $0xe0] sm:$0xff]
        %v1460 = vld [vmem:[%s1069 + $0xe8] sm:$0xff]
        %v1461 = vld [vmem:[%s1069 + $0xf0] sm:$0xff]
        %v1462 = vld [vmem:[%s1069 + $0xf8] sm:$0xff]
        %v1463 = vld [vmem:[%s1073] sm:$0x3]
        %v1465 = vlaneseq
        %v1466 = vshrl.u32 %v1465, 7
        %v1467 = vsub.s32 0, %v1466
        %v1468 = vrot.slane %v1463, %v1467
        %v1469 = vlaneseq
        %v1470 = vshrl.u32 %v1469, 7
        %v1471 = vsub.s32 1, %v1470
        %v1472 = vrot.slane %v1463, %v1471
        %v1507 = vunpack.c.l.b16 %v1431
        %v1508 = vunpack.c.h.b16 %v1431
        %v1509 = vunpack.c.l.b16 %v1432
        %v1510 = vunpack.c.h.b16 %v1432
        %v1511 = vunpack.c.l.b16 %v1433
        %v1512 = vunpack.c.h.b16 %v1433
        %v1513 = vunpack.c.l.b16 %v1434
        %v1514 = vunpack.c.h.b16 %v1434
        %v1515 = vunpack.c.l.b16 %v1435
        %v1516 = vunpack.c.h.b16 %v1435
        %v1517 = vunpack.c.l.b16 %v1436
        %v1518 = vunpack.c.h.b16 %v1436
        %v1519 = vunpack.c.l.b16 %v1437
        %v1520 = vunpack.c.h.b16 %v1437
        %v1521 = vunpack.c.l.b16 %v1438
        %v1522 = vunpack.c.h.b16 %v1438
        %v1523 = vunpack.c.l.b16 %v1439
        %v1524 = vunpack.c.h.b16 %v1439
        %v1525 = vunpack.c.l.b16 %v1440
        %v1526 = vunpack.c.h.b16 %v1440
        %v1527 = vunpack.c.l.b16 %v1441
        %v1528 = vunpack.c.h.b16 %v1441
        %v1529 = vunpack.c.l.b16 %v1442
        %v1530 = vunpack.c.h.b16 %v1442
        %v1531 = vunpack.c.l.b16 %v1443
        %v1532 = vunpack.c.h.b16 %v1443
        %v1533 = vunpack.c.l.b16 %v1444
        %v1534 = vunpack.c.h.b16 %v1444
        %v1535 = vunpack.c.l.b16 %v1445
        %v1536 = vunpack.c.h.b16 %v1445
        %v1537 = vunpack.c.l.b16 %v1446
        %v1538 = vunpack.c.h.b16 %v1446
        %v1539 = vunpack.c.l.b16 %v1447
        %v1540 = vunpack.c.h.b16 %v1447
        %v1541 = vunpack.c.l.b16 %v1448
        %v1542 = vunpack.c.h.b16 %v1448
        %v1543 = vunpack.c.l.b16 %v1449
        %v1544 = vunpack.c.h.b16 %v1449
        %v1545 = vunpack.c.l.b16 %v1450
        %v1546 = vunpack.c.h.b16 %v1450
        %v1547 = vunpack.c.l.b16 %v1451
        %v1548 = vunpack.c.h.b16 %v1451
        %v1549 = vunpack.c.l.b16 %v1452
        %v1550 = vunpack.c.h.b16 %v1452
        %v1551 = vunpack.c.l.b16 %v1453
        %v1552 = vunpack.c.h.b16 %v1453
        %v1553 = vunpack.c.l.b16 %v1454
        %v1554 = vunpack.c.h.b16 %v1454
        %v1555 = vunpack.c.l.b16 %v1455
        %v1556 = vunpack.c.h.b16 %v1455
        %v1557 = vunpack.c.l.b16 %v1456
        %v1558 = vunpack.c.h.b16 %v1456
        %v1559 = vunpack.c.l.b16 %v1457
        %v1560 = vunpack.c.h.b16 %v1457
        %v1561 = vunpack.c.l.b16 %v1458
        %v1562 = vunpack.c.h.b16 %v1458
        %v1563 = vunpack.c.l.b16 %v1459
        %v1564 = vunpack.c.h.b16 %v1459
        %v1565 = vunpack.c.l.b16 %v1460
        %v1566 = vunpack.c.h.b16 %v1460
        %v1567 = vunpack.c.l.b16 %v1461
        %v1568 = vunpack.c.h.b16 %v1461
        %v1569 = vunpack.c.l.b16 %v1462
        %v1570 = vunpack.c.h.b16 %v1462
        %v1571 = vpack.c.b16 %v1509, %v1507
        %v1572 = vpack.c.b16 %v1510, %v1508
        %v1573 = vpack.c.b16 %v1513, %v1511
        %v1574 = vpack.c.b16 %v1514, %v1512
        %v1575 = vpack.c.b16 %v1517, %v1515
        %v1576 = vpack.c.b16 %v1518, %v1516
        %v1577 = vpack.c.b16 %v1521, %v1519
        %v1578 = vpack.c.b16 %v1522, %v1520
        %v1579 = vpack.c.b16 %v1525, %v1523
        %v1580 = vpack.c.b16 %v1526, %v1524
        %v1581 = vpack.c.b16 %v1529, %v1527
        %v1582 = vpack.c.b16 %v1530, %v1528
        %v1583 = vpack.c.b16 %v1533, %v1531
        %v1584 = vpack.c.b16 %v1534, %v1532
        %v1585 = vpack.c.b16 %v1537, %v1535
        %v1586 = vpack.c.b16 %v1538, %v1536
        %v1587 = vpack.c.b16 %v1541, %v1539
        %v1588 = vpack.c.b16 %v1542, %v1540
        %v1589 = vpack.c.b16 %v1545, %v1543
        %v1590 = vpack.c.b16 %v1546, %v1544
        %v1591 = vpack.c.b16 %v1549, %v1547
        %v1592 = vpack.c.b16 %v1550, %v1548
        %v1593 = vpack.c.b16 %v1553, %v1551
        %v1594 = vpack.c.b16 %v1554, %v1552
        %v1595 = vpack.c.b16 %v1557, %v1555
        %v1596 = vpack.c.b16 %v1558, %v1556
        %v1597 = vpack.c.b16 %v1561, %v1559
        %v1598 = vpack.c.b16 %v1562, %v1560
        %v1599 = vpack.c.b16 %v1565, %v1563
        %v1600 = vpack.c.b16 %v1566, %v1564
        %v1601 = vpack.c.b16 %v1569, %v1567
        %v1602 = vpack.c.b16 %v1570, %v1568
        %1635 = vmatprep.subr.bf16.mxu0 %v1572
        %1636 = vmatpush1.bf16.msra.mxu0 %v1571
        %1637 = vmatprep.subr.bf16.mxu0 %v1574
        %1638 = vmatpush1.bf16.msra.mxu0 %v1573
        %1639 = vmatprep.subr.bf16.mxu0 %v1576
        %1640 = vmatpush1.bf16.msra.mxu0 %v1575
        %1641 = vmatprep.subr.bf16.mxu0 %v1578
        %1642 = vmatpush1.bf16.msra.mxu0 %v1577
        %1643 = vmatprep.subr.bf16.mxu0 %v1580
        %1644 = vmatpush1.bf16.msra.mxu0 %v1579
        %1645 = vmatprep.subr.bf16.mxu0 %v1582
        %1646 = vmatpush1.bf16.msra.mxu0 %v1581
        %1647 = vmatprep.subr.bf16.mxu0 %v1584
        %1648 = vmatpush1.bf16.msra.mxu0 %v1583
        %1649 = vmatprep.subr.bf16.mxu0 %v1586
        %1650 = vmatpush1.bf16.msra.mxu0 %v1585
        %1651 = vmatprep.subr.bf16.mxu0 %v1588
        %1652 = vmatpush1.bf16.msra.mxu0 %v1587
        %1653 = vmatprep.subr.bf16.mxu0 %v1590
        %1654 = vmatpush1.bf16.msra.mxu0 %v1589
        %1655 = vmatprep.subr.bf16.mxu0 %v1592
        %1656 = vmatpush1.bf16.msra.mxu0 %v1591
        %1657 = vmatprep.subr.bf16.mxu0 %v1594
        %1658 = vmatpush1.bf16.msra.mxu0 %v1593
        %1659 = vmatprep.subr.bf16.mxu0 %v1596
        %1660 = vmatpush1.bf16.msra.mxu0 %v1595
        %1661 = vmatprep.subr.bf16.mxu0 %v1598
        %1662 = vmatpush1.bf16.msra.mxu0 %v1597
        %1663 = vmatprep.subr.bf16.mxu0 %v1600
        %1664 = vmatpush1.bf16.msra.mxu0 %v1599
        %1665 = vmatprep.subr.bf16.mxu0 %v1602
        %1666 = vmatpush1.bf16.msra.mxu0 %v1601
        %1667 = vmatprep.mubr.bf16.mxu0 %v1430
        %1668 = vmatmul.mubr.bf16.gmra.mrb[0].mxu0 %v1429
        %v1669 = vpop.f32.mrb[0].mxu0
        %v1670 = vadd.f32 %v1468, %v1669
        %v1671 = vpop.f32.mrb[0].mxu0
        %v1672 = vadd.f32 %v1472, %v1671
        %v1673 = vpop.f32.mrb[0].mxu0
        %v1674 = vadd.f32 %v1468, %v1673
        %v1675 = vpop.f32.mrb[0].mxu0
        %v1676 = vadd.f32 %v1472, %v1675
        %1677 = vdwg.mxu0
        %v1678 = vadd.f32 %v1670, %v1672
        %1679 = vadd.xlane.f32.xlu0 %v1678
        %v1680 = vpop.xlane.xlu0 %1679
        %v1681 = vadd.f32 %v1674, %v1676
        %1682 = vadd.xlane.f32.xlu0 %v1681
        %v1683 = vpop.xlane.xlu0 %1682
        %v1684 = vmul.f32 %v1680, %v1353
        %v1685 = vmul.f32 %v1683, %v1353
        %v1686 = vsub.f32 %v1670, %v1684
        %v1687 = vsub.f32 %v1672, %v1684
        %v1688 = vsub.f32 %v1674, %v1685
        %v1689 = vsub.f32 %v1676, %v1685
        %v1690 = vmul.f32 %v1686, %v1686
        %v1691 = vmul.f32 %v1687, %v1687
        %v1692 = vmul.f32 %v1688, %v1688
        %v1693 = vmul.f32 %v1689, %v1689
        %v1694 = vadd.f32 %v1690, %v1691
        %1695 = vadd.xlane.f32.xlu0 %v1694
        %v1696 = vpop.xlane.xlu0 %1695
        %v1697 = vadd.f32 %v1692, %v1693
        %1698 = vadd.xlane.f32.xlu0 %v1697
        %v1699 = vpop.xlane.xlu0 %1698
        %v1700 = vmul.f32 %v1696, %v1353
        %v1701 = vmul.f32 %v1699, %v1353
        %v1702 = vadd.f32 %v1700, 1e-05
        %v1703 = vadd.f32 %v1701, 1e-05
        %v1704 = vrsqrt.pop %v1702
        %v1705 = vrsqrt.pop %v1703
        %v1706 = vmul.f32 %v1686, %v1704
        %v1707 = vmul.f32 %v1687, %v1704
        %v1708 = vmul.f32 %v1688, %v1705
        %v1709 = vmul.f32 %v1689, %v1705
        %v1710 = vld [vmem:[%s1077] sm:$0x3]
        %v1712 = vlaneseq
        %v1713 = vshrl.u32 %v1712, 7
        %v1714 = vsub.s32 0, %v1713
        %v1715 = vrot.slane %v1710, %v1714
        %v1716 = vlaneseq
        %v1717 = vshrl.u32 %v1716, 7
        %v1718 = vsub.s32 1, %v1717
        %v1719 = vrot.slane %v1710, %v1718
        %v1722 = vmul.f32 %v1706, %v1715
        %v1723 = vmul.f32 %v1707, %v1719
        %v1724 = vmul.f32 %v1708, %v1715
        %v1725 = vmul.f32 %v1709, %v1719
        %v1726 = vld [vmem:[%s1081] sm:$0x3]
        %v1728 = vlaneseq
        %v1729 = vshrl.u32 %v1728, 7
        %v1730 = vsub.s32 0, %v1729
        %v1731 = vrot.slane %v1726, %v1730
        %v1732 = vlaneseq
        %v1733 = vshrl.u32 %v1732, 7
        %v1734 = vsub.s32 1, %v1733
        %v1735 = vrot.slane %v1726, %v1734
        %v1738 = vadd.f32 %v1722, %v1731
        %v1739 = vadd.f32 %v1723, %v1735
        %v1740 = vadd.f32 %v1724, %v1731
        %v1741 = vadd.f32 %v1725, %v1735
        %v1742 = vmax.f32 %v1738, 0.0
        %v1743 = vmax.f32 %v1739, 0.0
        %v1744 = vmax.f32 %v1740, 0.0
        %v1745 = vmax.f32 %v1741, 0.0
        %v1746 = vadd.f32 %v1412, %v1742
        %v1747 = vadd.f32 %v1413, %v1743
        %v1748 = vadd.f32 %v1414, %v1744
        %v1749 = vadd.f32 %v1415, %v1745
        %s1750 = scalar_lea.vmem %s1086, 32
        %v1751 = vld [vmem:[%s1750] sm:$0xff]
        %v1752 = vld [vmem:[%s1750 + $0x8] sm:$0xff]
        %v1753 = vld [vmem:[%s1750 + $0x10] sm:$0xff]
        %v1754 = vld [vmem:[%s1750 + $0x18] sm:$0xff]
        %v1755 = vmul.f32 %v1420, %v1751
        %v1756 = vmul.f32 %v1420, %v1752
        %v1757 = vmul.f32 %v1420, %v1753
        %v1758 = vmul.f32 %v1420, %v1754
        %v1759 = vadd.f32 %v1742, %v1755
        %v1760 = vadd.f32 %v1743, %v1756
        %v1761 = vadd.f32 %v1744, %v1757
        %v1762 = vadd.f32 %v1745, %v1758
        %v1763 = vpack.c.bf16 %v1761, %v1759
        %v1764 = vpack.c.bf16 %v1762, %v1760
        %s1765 = scalar_lea.vmem %s1069, 256
        %v1766 = vld [vmem:[%s1765] sm:$0xff]
        %v1767 = vld [vmem:[%s1765 + $0x8] sm:$0xff]
        %v1768 = vld [vmem:[%s1765 + $0x10] sm:$0xff]
        %v1769 = vld [vmem:[%s1765 + $0x18] sm:$0xff]
        %v1770 = vld [vmem:[%s1765 + $0x20] sm:$0xff]
        %v1771 = vld [vmem:[%s1765 + $0x28] sm:$0xff]
        %v1772 = vld [vmem:[%s1765 + $0x30] sm:$0xff]
        %v1773 = vld [vmem:[%s1765 + $0x38] sm:$0xff]
        %v1774 = vld [vmem:[%s1765 + $0x40] sm:$0xff]
        %v1775 = vld [vmem:[%s1765 + $0x48] sm:$0xff]
        %v1776 = vld [vmem:[%s1765 + $0x50] sm:$0xff]
        %v1777 = vld [vmem:[%s1765 + $0x58] sm:$0xff]
        %v1778 = vld [vmem:[%s1765 + $0x60] sm:$0xff]
        %v1779 = vld [vmem:[%s1765 + $0x68] sm:$0xff]
        %v1780 = vld [vmem:[%s1765 + $0x70] sm:$0xff]
        %v1781 = vld [vmem:[%s1765 + $0x78] sm:$0xff]
        %v1782 = vld [vmem:[%s1765 + $0x80] sm:$0xff]
        %v1783 = vld [vmem:[%s1765 + $0x88] sm:$0xff]
        %v1784 = vld [vmem:[%s1765 + $0x90] sm:$0xff]
        %v1785 = vld [vmem:[%s1765 + $0x98] sm:$0xff]
        %v1786 = vld [vmem:[%s1765 + $0xa0] sm:$0xff]
        %v1787 = vld [vmem:[%s1765 + $0xa8] sm:$0xff]
        %v1788 = vld [vmem:[%s1765 + $0xb0] sm:$0xff]
        %v1789 = vld [vmem:[%s1765 + $0xb8] sm:$0xff]
        %v1790 = vld [vmem:[%s1765 + $0xc0] sm:$0xff]
        %v1791 = vld [vmem:[%s1765 + $0xc8] sm:$0xff]
        %v1792 = vld [vmem:[%s1765 + $0xd0] sm:$0xff]
        %v1793 = vld [vmem:[%s1765 + $0xd8] sm:$0xff]
        %v1794 = vld [vmem:[%s1765 + $0xe0] sm:$0xff]
        %v1795 = vld [vmem:[%s1765 + $0xe8] sm:$0xff]
        %v1796 = vld [vmem:[%s1765 + $0xf0] sm:$0xff]
        %v1797 = vld [vmem:[%s1765 + $0xf8] sm:$0xff]
        %s1798 = scalar_lea.vmem %s1073, 2
        %v1799 = vld [vmem:[%s1798] sm:$0x3]
        %v1801 = vlaneseq
        %v1802 = vshrl.u32 %v1801, 7
        %v1803 = vsub.s32 0, %v1802
        %v1804 = vrot.slane %v1799, %v1803
        %v1805 = vlaneseq
        %v1806 = vshrl.u32 %v1805, 7
        %v1807 = vsub.s32 1, %v1806
        %v1808 = vrot.slane %v1799, %v1807
        %v1843 = vunpack.c.l.b16 %v1766
        %v1844 = vunpack.c.h.b16 %v1766
        %v1845 = vunpack.c.l.b16 %v1767
        %v1846 = vunpack.c.h.b16 %v1767
        %v1847 = vunpack.c.l.b16 %v1768
        %v1848 = vunpack.c.h.b16 %v1768
        %v1849 = vunpack.c.l.b16 %v1769
        %v1850 = vunpack.c.h.b16 %v1769
        %v1851 = vunpack.c.l.b16 %v1770
        %v1852 = vunpack.c.h.b16 %v1770
        %v1853 = vunpack.c.l.b16 %v1771
        %v1854 = vunpack.c.h.b16 %v1771
        %v1855 = vunpack.c.l.b16 %v1772
        %v1856 = vunpack.c.h.b16 %v1772
        %v1857 = vunpack.c.l.b16 %v1773
        %v1858 = vunpack.c.h.b16 %v1773
        %v1859 = vunpack.c.l.b16 %v1774
        %v1860 = vunpack.c.h.b16 %v1774
        %v1861 = vunpack.c.l.b16 %v1775
        %v1862 = vunpack.c.h.b16 %v1775
        %v1863 = vunpack.c.l.b16 %v1776
        %v1864 = vunpack.c.h.b16 %v1776
        %v1865 = vunpack.c.l.b16 %v1777
        %v1866 = vunpack.c.h.b16 %v1777
        %v1867 = vunpack.c.l.b16 %v1778
        %v1868 = vunpack.c.h.b16 %v1778
        %v1869 = vunpack.c.l.b16 %v1779
        %v1870 = vunpack.c.h.b16 %v1779
        %v1871 = vunpack.c.l.b16 %v1780
        %v1872 = vunpack.c.h.b16 %v1780
        %v1873 = vunpack.c.l.b16 %v1781
        %v1874 = vunpack.c.h.b16 %v1781
        %v1875 = vunpack.c.l.b16 %v1782
        %v1876 = vunpack.c.h.b16 %v1782
        %v1877 = vunpack.c.l.b16 %v1783
        %v1878 = vunpack.c.h.b16 %v1783
        %v1879 = vunpack.c.l.b16 %v1784
        %v1880 = vunpack.c.h.b16 %v1784
        %v1881 = vunpack.c.l.b16 %v1785
        %v1882 = vunpack.c.h.b16 %v1785
        %v1883 = vunpack.c.l.b16 %v1786
        %v1884 = vunpack.c.h.b16 %v1786
        %v1885 = vunpack.c.l.b16 %v1787
        %v1886 = vunpack.c.h.b16 %v1787
        %v1887 = vunpack.c.l.b16 %v1788
        %v1888 = vunpack.c.h.b16 %v1788
        %v1889 = vunpack.c.l.b16 %v1789
        %v1890 = vunpack.c.h.b16 %v1789
        %v1891 = vunpack.c.l.b16 %v1790
        %v1892 = vunpack.c.h.b16 %v1790
        %v1893 = vunpack.c.l.b16 %v1791
        %v1894 = vunpack.c.h.b16 %v1791
        %v1895 = vunpack.c.l.b16 %v1792
        %v1896 = vunpack.c.h.b16 %v1792
        %v1897 = vunpack.c.l.b16 %v1793
        %v1898 = vunpack.c.h.b16 %v1793
        %v1899 = vunpack.c.l.b16 %v1794
        %v1900 = vunpack.c.h.b16 %v1794
        %v1901 = vunpack.c.l.b16 %v1795
        %v1902 = vunpack.c.h.b16 %v1795
        %v1903 = vunpack.c.l.b16 %v1796
        %v1904 = vunpack.c.h.b16 %v1796
        %v1905 = vunpack.c.l.b16 %v1797
        %v1906 = vunpack.c.h.b16 %v1797
        %v1907 = vpack.c.b16 %v1845, %v1843
        %v1908 = vpack.c.b16 %v1846, %v1844
        %v1909 = vpack.c.b16 %v1849, %v1847
        %v1910 = vpack.c.b16 %v1850, %v1848
        %v1911 = vpack.c.b16 %v1853, %v1851
        %v1912 = vpack.c.b16 %v1854, %v1852
        %v1913 = vpack.c.b16 %v1857, %v1855
        %v1914 = vpack.c.b16 %v1858, %v1856
        %v1915 = vpack.c.b16 %v1861, %v1859
        %v1916 = vpack.c.b16 %v1862, %v1860
        %v1917 = vpack.c.b16 %v1865, %v1863
        %v1918 = vpack.c.b16 %v1866, %v1864
        %v1919 = vpack.c.b16 %v1869, %v1867
        %v1920 = vpack.c.b16 %v1870, %v1868
        %v1921 = vpack.c.b16 %v1873, %v1871
        %v1922 = vpack.c.b16 %v1874, %v1872
        %v1923 = vpack.c.b16 %v1877, %v1875
        %v1924 = vpack.c.b16 %v1878, %v1876
        %v1925 = vpack.c.b16 %v1881, %v1879
        %v1926 = vpack.c.b16 %v1882, %v1880
        %v1927 = vpack.c.b16 %v1885, %v1883
        %v1928 = vpack.c.b16 %v1886, %v1884
        %v1929 = vpack.c.b16 %v1889, %v1887
        %v1930 = vpack.c.b16 %v1890, %v1888
        %v1931 = vpack.c.b16 %v1893, %v1891
        %v1932 = vpack.c.b16 %v1894, %v1892
        %v1933 = vpack.c.b16 %v1897, %v1895
        %v1934 = vpack.c.b16 %v1898, %v1896
        %v1935 = vpack.c.b16 %v1901, %v1899
        %v1936 = vpack.c.b16 %v1902, %v1900
        %v1937 = vpack.c.b16 %v1905, %v1903
        %v1938 = vpack.c.b16 %v1906, %v1904
        %1971 = vmatprep.subr.bf16.mxu0 %v1908
        %1972 = vmatpush1.bf16.msra.mxu0 %v1907
        %1973 = vmatprep.subr.bf16.mxu0 %v1910
        %1974 = vmatpush1.bf16.msra.mxu0 %v1909
        %1975 = vmatprep.subr.bf16.mxu0 %v1912
        %1976 = vmatpush1.bf16.msra.mxu0 %v1911
        %1977 = vmatprep.subr.bf16.mxu0 %v1914
        %1978 = vmatpush1.bf16.msra.mxu0 %v1913
        %1979 = vmatprep.subr.bf16.mxu0 %v1916
        %1980 = vmatpush1.bf16.msra.mxu0 %v1915
        %1981 = vmatprep.subr.bf16.mxu0 %v1918
        %1982 = vmatpush1.bf16.msra.mxu0 %v1917
        %1983 = vmatprep.subr.bf16.mxu0 %v1920
        %1984 = vmatpush1.bf16.msra.mxu0 %v1919
        %1985 = vmatprep.subr.bf16.mxu0 %v1922
        %1986 = vmatpush1.bf16.msra.mxu0 %v1921
        %1987 = vmatprep.subr.bf16.mxu0 %v1924
        %1988 = vmatpush1.bf16.msra.mxu0 %v1923
        %1989 = vmatprep.subr.bf16.mxu0 %v1926
        %1990 = vmatpush1.bf16.msra.mxu0 %v1925
        %1991 = vmatprep.subr.bf16.mxu0 %v1928
        %1992 = vmatpush1.bf16.msra.mxu0 %v1927
        %1993 = vmatprep.subr.bf16.mxu0 %v1930
        %1994 = vmatpush1.bf16.msra.mxu0 %v1929
        %1995 = vmatprep.subr.bf16.mxu0 %v1932
        %1996 = vmatpush1.bf16.msra.mxu0 %v1931
        %1997 = vmatprep.subr.bf16.mxu0 %v1934
        %1998 = vmatpush1.bf16.msra.mxu0 %v1933
        %1999 = vmatprep.subr.bf16.mxu0 %v1936
        %2000 = vmatpush1.bf16.msra.mxu0 %v1935
        %2001 = vmatprep.subr.bf16.mxu0 %v1938
        %2002 = vmatpush1.bf16.msra.mxu0 %v1937
        %2003 = vmatprep.mubr.bf16.mxu0 %v1764
        %2004 = vmatmul.mubr.bf16.gmra.mrb[0].mxu0 %v1763
        %v2005 = vpop.f32.mrb[0].mxu0
        %v2006 = vadd.f32 %v1804, %v2005
        %v2007 = vpop.f32.mrb[0].mxu0
        %v2008 = vadd.f32 %v1808, %v2007
        %v2009 = vpop.f32.mrb[0].mxu0
        %v2010 = vadd.f32 %v1804, %v2009
        %v2011 = vpop.f32.mrb[0].mxu0
        %v2012 = vadd.f32 %v1808, %v2011
        %2013 = vdwg.mxu0
        %v2014 = vadd.f32 %v2006, %v2008
        %2015 = vadd.xlane.f32.xlu0 %v2014
        %v2016 = vpop.xlane.xlu0 %2015
        %v2017 = vadd.f32 %v2010, %v2012
        %2018 = vadd.xlane.f32.xlu0 %v2017
        %v2019 = vpop.xlane.xlu0 %2018
        %v2020 = vmul.f32 %v2016, %v1353
        %v2021 = vmul.f32 %v2019, %v1353
        %v2022 = vsub.f32 %v2006, %v2020
        %v2023 = vsub.f32 %v2008, %v2020
        %v2024 = vsub.f32 %v2010, %v2021
        %v2025 = vsub.f32 %v2012, %v2021
        %v2026 = vmul.f32 %v2022, %v2022
        %v2027 = vmul.f32 %v2023, %v2023
        %v2028 = vmul.f32 %v2024, %v2024
        %v2029 = vmul.f32 %v2025, %v2025
        %v2030 = vadd.f32 %v2026, %v2027
        %2031 = vadd.xlane.f32.xlu0 %v2030
        %v2032 = vpop.xlane.xlu0 %2031
        %v2033 = vadd.f32 %v2028, %v2029
        %2034 = vadd.xlane.f32.xlu0 %v2033
        %v2035 = vpop.xlane.xlu0 %2034
        %v2036 = vmul.f32 %v2032, %v1353
        %v2037 = vmul.f32 %v2035, %v1353
        %v2038 = vadd.f32 %v2036, 1e-05
        %v2039 = vadd.f32 %v2037, 1e-05
        %v2040 = vrsqrt.pop %v2038
        %v2041 = vrsqrt.pop %v2039
        %v2042 = vmul.f32 %v2022, %v2040
        %v2043 = vmul.f32 %v2023, %v2040
        %v2044 = vmul.f32 %v2024, %v2041
        %v2045 = vmul.f32 %v2025, %v2041
        %s2046 = scalar_lea.vmem %s1077, 2
        %v2047 = vld [vmem:[%s2046] sm:$0x3]
        %v2049 = vlaneseq
        %v2050 = vshrl.u32 %v2049, 7
        %v2051 = vsub.s32 0, %v2050
        %v2052 = vrot.slane %v2047, %v2051
        %v2053 = vlaneseq
        %v2054 = vshrl.u32 %v2053, 7
        %v2055 = vsub.s32 1, %v2054
        %v2056 = vrot.slane %v2047, %v2055
        %v2059 = vmul.f32 %v2042, %v2052
        %v2060 = vmul.f32 %v2043, %v2056
        %v2061 = vmul.f32 %v2044, %v2052
        %v2062 = vmul.f32 %v2045, %v2056
        %s2063 = scalar_lea.vmem %s1081, 2
        %v2064 = vld [vmem:[%s2063] sm:$0x3]
        %v2066 = vlaneseq
        %v2067 = vshrl.u32 %v2066, 7
        %v2068 = vsub.s32 0, %v2067
        %v2069 = vrot.slane %v2064, %v2068
        %v2070 = vlaneseq
        %v2071 = vshrl.u32 %v2070, 7
        %v2072 = vsub.s32 1, %v2071
        %v2073 = vrot.slane %v2064, %v2072
        %v2076 = vadd.f32 %v2059, %v2069
        %v2077 = vadd.f32 %v2060, %v2073
        %v2078 = vadd.f32 %v2061, %v2069
        %v2079 = vadd.f32 %v2062, %v2073
        %v2080 = vmax.f32 %v2076, 0.0
        %v2081 = vmax.f32 %v2077, 0.0
        %v2082 = vmax.f32 %v2078, 0.0
        %v2083 = vmax.f32 %v2079, 0.0
        %v2084 = vadd.f32 %v1746, %v2080
        %v2085 = vadd.f32 %v1747, %v2081
        %v2086 = vadd.f32 %v1748, %v2082
        %v2087 = vadd.f32 %v1749, %v2083
        %v2088 = vmul.f32 %v2084, 0.33333334
        %v2089 = vmul.f32 %v2085, 0.33333334
        %v2090 = vmul.f32 %v2086, 0.33333334
        %v2091 = vmul.f32 %v2087, 0.33333334
        %v2092 = vld [vmem:[%s1091] sm:$0xff]
        %v2093 = vld [vmem:[%s1091 + $0x8] sm:$0xff]
        %v2094 = vld [vmem:[%s1091 + $0x10] sm:$0xff]
        %v2095 = vld [vmem:[%s1091 + $0x18] sm:$0xff]
        %v2096 = vld [vmem:[%s1091 + $0x20] sm:$0xff]
        %v2097 = vld [vmem:[%s1091 + $0x28] sm:$0xff]
        %v2098 = vld [vmem:[%s1091 + $0x30] sm:$0xff]
        %v2099 = vld [vmem:[%s1091 + $0x38] sm:$0xff]
        %v2100 = vld [vmem:[%s1091 + $0x40] sm:$0xff]
        %v2101 = vld [vmem:[%s1091 + $0x48] sm:$0xff]
        %v2102 = vld [vmem:[%s1091 + $0x50] sm:$0xff]
        %v2103 = vld [vmem:[%s1091 + $0x58] sm:$0xff]
        %v2104 = vld [vmem:[%s1091 + $0x60] sm:$0xff]
        %v2105 = vld [vmem:[%s1091 + $0x68] sm:$0xff]
        %v2106 = vld [vmem:[%s1091 + $0x70] sm:$0xff]
        %v2107 = vld [vmem:[%s1091 + $0x78] sm:$0xff]
        %v2108 = vld [vmem:[%s1091 + $0x80] sm:$0xff]
        %v2109 = vld [vmem:[%s1091 + $0x88] sm:$0xff]
        %v2110 = vld [vmem:[%s1091 + $0x90] sm:$0xff]
        %v2111 = vld [vmem:[%s1091 + $0x98] sm:$0xff]
        %v2112 = vld [vmem:[%s1091 + $0xa0] sm:$0xff]
        %v2113 = vld [vmem:[%s1091 + $0xa8] sm:$0xff]
        %v2114 = vld [vmem:[%s1091 + $0xb0] sm:$0xff]
        %v2115 = vld [vmem:[%s1091 + $0xb8] sm:$0xff]
        %v2116 = vld [vmem:[%s1091 + $0xc0] sm:$0xff]
        %v2117 = vld [vmem:[%s1091 + $0xc8] sm:$0xff]
        %v2118 = vld [vmem:[%s1091 + $0xd0] sm:$0xff]
        %v2119 = vld [vmem:[%s1091 + $0xd8] sm:$0xff]
        %v2120 = vld [vmem:[%s1091 + $0xe0] sm:$0xff]
        %v2121 = vld [vmem:[%s1091 + $0xe8] sm:$0xff]
        %v2122 = vld [vmem:[%s1091 + $0xf0] sm:$0xff]
        %v2123 = vld [vmem:[%s1091 + $0xf8] sm:$0xff]
        %v2124 = vld [vmem:[%s1096] sm:$0xff]
        %v2125 = vld [vmem:[%s1096 + $0x8] sm:$0xff]
        %v2126 = vld [vmem:[%s1096 + $0x10] sm:$0xff]
        %v2127 = vld [vmem:[%s1096 + $0x18] sm:$0xff]
        %v2128 = vld [vmem:[%s1096 + $0x20] sm:$0xff]
        %v2129 = vld [vmem:[%s1096 + $0x28] sm:$0xff]
        %v2130 = vld [vmem:[%s1096 + $0x30] sm:$0xff]
        %v2131 = vld [vmem:[%s1096 + $0x38] sm:$0xff]
        %v2132 = vld [vmem:[%s1096 + $0x40] sm:$0xff]
        %v2133 = vld [vmem:[%s1096 + $0x48] sm:$0xff]
        %v2134 = vld [vmem:[%s1096 + $0x50] sm:$0xff]
        %v2135 = vld [vmem:[%s1096 + $0x58] sm:$0xff]
        %v2136 = vld [vmem:[%s1096 + $0x60] sm:$0xff]
        %v2137 = vld [vmem:[%s1096 + $0x68] sm:$0xff]
        %v2138 = vld [vmem:[%s1096 + $0x70] sm:$0xff]
        %v2139 = vld [vmem:[%s1096 + $0x78] sm:$0xff]
        %v2140 = vld [vmem:[%s1096 + $0x80] sm:$0xff]
        %v2141 = vld [vmem:[%s1096 + $0x88] sm:$0xff]
        %v2142 = vld [vmem:[%s1096 + $0x90] sm:$0xff]
        %v2143 = vld [vmem:[%s1096 + $0x98] sm:$0xff]
        %v2144 = vld [vmem:[%s1096 + $0xa0] sm:$0xff]
        %v2145 = vld [vmem:[%s1096 + $0xa8] sm:$0xff]
        %v2146 = vld [vmem:[%s1096 + $0xb0] sm:$0xff]
        %v2147 = vld [vmem:[%s1096 + $0xb8] sm:$0xff]
        %v2148 = vld [vmem:[%s1096 + $0xc0] sm:$0xff]
        %v2149 = vld [vmem:[%s1096 + $0xc8] sm:$0xff]
        %v2150 = vld [vmem:[%s1096 + $0xd0] sm:$0xff]
        %v2151 = vld [vmem:[%s1096 + $0xd8] sm:$0xff]
        %v2152 = vld [vmem:[%s1096 + $0xe0] sm:$0xff]
        %v2153 = vld [vmem:[%s1096 + $0xe8] sm:$0xff]
        %v2154 = vld [vmem:[%s1096 + $0xf0] sm:$0xff]
        %v2155 = vld [vmem:[%s1096 + $0xf8] sm:$0xff]
        %2156 = vmatprep.subr.mxu0 0.0
        %2157 = vmatpush1.msra.mxu0 %v2124
        %2158 = vmatprep.subr.mxu0 0.0
        %2159 = vmatpush1.msra.mxu0 %v2125
        %2160 = vmatprep.subr.mxu0 0.0
        %2161 = vmatpush1.msra.mxu0 %v2126
        %2162 = vmatprep.subr.mxu0 0.0
        %2163 = vmatpush1.msra.mxu0 %v2127
        %2164 = vmatprep.subr.mxu0 0.0
        %2165 = vmatpush1.msra.mxu0 %v2128
        %2166 = vmatprep.subr.mxu0 0.0
        %2167 = vmatpush1.msra.mxu0 %v2129
        %2168 = vmatprep.subr.mxu0 0.0
        %2169 = vmatpush1.msra.mxu0 %v2130
        %2170 = vmatprep.subr.mxu0 0.0
        %2171 = vmatpush1.msra.mxu0 %v2131
        %2172 = vmatprep.subr.mxu0 0.0
        %2173 = vmatpush1.msra.mxu0 %v2132
        %2174 = vmatprep.subr.mxu0 0.0
        %2175 = vmatpush1.msra.mxu0 %v2133
        %2176 = vmatprep.subr.mxu0 0.0
        %2177 = vmatpush1.msra.mxu0 %v2134
        %2178 = vmatprep.subr.mxu0 0.0
        %2179 = vmatpush1.msra.mxu0 %v2135
        %2180 = vmatprep.subr.mxu0 0.0
        %2181 = vmatpush1.msra.mxu0 %v2136
        %2182 = vmatprep.subr.mxu0 0.0
        %2183 = vmatpush1.msra.mxu0 %v2137
        %2184 = vmatprep.subr.mxu0 0.0
        %2185 = vmatpush1.msra.mxu0 %v2138
        %2186 = vmatprep.subr.mxu0 0.0
        %2187 = vmatpush1.msra.mxu0 %v2139
        %2188 = vmatprep.subr.mxu0 0.0
        %2189 = vmatpush1.msra.mxu0 %v2140
        %2190 = vmatprep.subr.mxu0 0.0
        %2191 = vmatpush1.msra.mxu0 %v2141
        %2192 = vmatprep.subr.mxu0 0.0
        %2193 = vmatpush1.msra.mxu0 %v2142
        %2194 = vmatprep.subr.mxu0 0.0
        %2195 = vmatpush1.msra.mxu0 %v2143
        %2196 = vmatprep.subr.mxu0 0.0
        %2197 = vmatpush1.msra.mxu0 %v2144
        %2198 = vmatprep.subr.mxu0 0.0
        %2199 = vmatpush1.msra.mxu0 %v2145
        %2200 = vmatprep.subr.mxu0 0.0
        %2201 = vmatpush1.msra.mxu0 %v2146
        %2202 = vmatprep.subr.mxu0 0.0
        %2203 = vmatpush1.msra.mxu0 %v2147
        %2204 = vmatprep.subr.mxu0 0.0
        %2205 = vmatpush1.msra.mxu0 %v2148
        %2206 = vmatprep.subr.mxu0 0.0
        %2207 = vmatpush1.msra.mxu0 %v2149
        %2208 = vmatprep.subr.mxu0 0.0
        %2209 = vmatpush1.msra.mxu0 %v2150
        %2210 = vmatprep.subr.mxu0 0.0
        %2211 = vmatpush1.msra.mxu0 %v2151
        %2212 = vmatprep.subr.mxu0 0.0
        %2213 = vmatpush1.msra.mxu0 %v2152
        %2214 = vmatprep.subr.mxu0 0.0
        %2215 = vmatpush1.msra.mxu0 %v2153
        %2216 = vmatprep.subr.mxu0 0.0
        %2217 = vmatpush1.msra.mxu0 %v2154
        %2218 = vmatprep.subr.mxu0 0.0
        %2219 = vmatpush1.msra.mxu0 %v2155
        %2220 = vmatprep.mubr.f32.mxu0 %v2089
        %2221 = vmatmul.mubr.f32.gmra.mrb[0].mxu0 %v2088
        %v2222 = vpop.f32.mrb[0].mxu0
        %v2223 = vadd.f32 0.0, %v2222
        %v2224 = vpop.f32.mrb[0].mxu0
        %2225 = vmatprep.mubr.f32.mxu0 %v2091
        %2226 = vmatmul.mubr.f32.gmra.mrb[0].mxu0 %v2090
        %v2227 = vpop.f32.mrb[0].mxu0
        %v2228 = vadd.f32 0.0, %v2227
        %v2229 = vpop.f32.mrb[0].mxu0
        %2230 = vdwg.mxu0
        %v2231 = vld [vmem:[%s37] sm:$0xff]
        %v2232 = vld [vmem:[%s37 + $0x8] sm:$0xff]
        %v2233 = vmul.f32 %v2223, %v2231
        %v2234 = vmul.f32 %v2228, %v2232
        %v2235 = vadd.f32 %v2233, %v2234
        %v2236 = vrot.slane %v2235, 4
        %v2237 = vadd.f32 %v2235, %v2236
        %v2238 = vrot.slane %v2237, 2
        %v2239 = vadd.f32 %v2237, %v2238
        %v2240 = vrot.slane %v2239, 1
        %v2241 = vadd.f32 %v2239, %v2240
        %2242 = vmatprep.subr.mxu0 0.0
        %2243 = vmatpush1.msra.mxu0 %v2092
        %2244 = vmatprep.subr.mxu0 0.0
        %2245 = vmatpush1.msra.mxu0 %v2093
        %2246 = vmatprep.subr.mxu0 0.0
        %2247 = vmatpush1.msra.mxu0 %v2094
        %2248 = vmatprep.subr.mxu0 0.0
        %2249 = vmatpush1.msra.mxu0 %v2095
        %2250 = vmatprep.subr.mxu0 0.0
        %2251 = vmatpush1.msra.mxu0 %v2096
        %2252 = vmatprep.subr.mxu0 0.0
        %2253 = vmatpush1.msra.mxu0 %v2097
        %2254 = vmatprep.subr.mxu0 0.0
        %2255 = vmatpush1.msra.mxu0 %v2098
        %2256 = vmatprep.subr.mxu0 0.0
        %2257 = vmatpush1.msra.mxu0 %v2099
        %2258 = vmatprep.subr.mxu0 0.0
        %2259 = vmatpush1.msra.mxu0 %v2100
        %2260 = vmatprep.subr.mxu0 0.0
        %2261 = vmatpush1.msra.mxu0 %v2101
        %2262 = vmatprep.subr.mxu0 0.0
        %2263 = vmatpush1.msra.mxu0 %v2102
        %2264 = vmatprep.subr.mxu0 0.0
        %2265 = vmatpush1.msra.mxu0 %v2103
        %2266 = vmatprep.subr.mxu0 0.0
        %2267 = vmatpush1.msra.mxu0 %v2104
        %2268 = vmatprep.subr.mxu0 0.0
        %2269 = vmatpush1.msra.mxu0 %v2105
        %2270 = vmatprep.subr.mxu0 0.0
        %2271 = vmatpush1.msra.mxu0 %v2106
        %2272 = vmatprep.subr.mxu0 0.0
        %2273 = vmatpush1.msra.mxu0 %v2107
        %2274 = vmatprep.subr.mxu0 0.0
        %2275 = vmatpush1.msra.mxu0 %v2108
        %2276 = vmatprep.subr.mxu0 0.0
        %2277 = vmatpush1.msra.mxu0 %v2109
        %2278 = vmatprep.subr.mxu0 0.0
        %2279 = vmatpush1.msra.mxu0 %v2110
        %2280 = vmatprep.subr.mxu0 0.0
        %2281 = vmatpush1.msra.mxu0 %v2111
        %2282 = vmatprep.subr.mxu0 0.0
        %2283 = vmatpush1.msra.mxu0 %v2112
        %2284 = vmatprep.subr.mxu0 0.0
        %2285 = vmatpush1.msra.mxu0 %v2113
        %2286 = vmatprep.subr.mxu0 0.0
        %2287 = vmatpush1.msra.mxu0 %v2114
        %2288 = vmatprep.subr.mxu0 0.0
        %2289 = vmatpush1.msra.mxu0 %v2115
        %2290 = vmatprep.subr.mxu0 0.0
        %2291 = vmatpush1.msra.mxu0 %v2116
        %2292 = vmatprep.subr.mxu0 0.0
        %2293 = vmatpush1.msra.mxu0 %v2117
        %2294 = vmatprep.subr.mxu0 0.0
        %2295 = vmatpush1.msra.mxu0 %v2118
        %2296 = vmatprep.subr.mxu0 0.0
        %2297 = vmatpush1.msra.mxu0 %v2119
        %2298 = vmatprep.subr.mxu0 0.0
        %2299 = vmatpush1.msra.mxu0 %v2120
        %2300 = vmatprep.subr.mxu0 0.0
        %2301 = vmatpush1.msra.mxu0 %v2121
        %2302 = vmatprep.subr.mxu0 0.0
        %2303 = vmatpush1.msra.mxu0 %v2122
        %2304 = vmatprep.subr.mxu0 0.0
        %2305 = vmatpush1.msra.mxu0 %v2123
        %2306 = vmatprep.mubr.f32.mxu0 %v2089
        %2307 = vmatmul.mubr.f32.gmra.mrb[0].mxu0 %v2088
        %v2308 = vpop.f32.mrb[0].mxu0
        %v2309 = vadd.f32 %v2241, %v2308
        %v2310 = vpop.f32.mrb[0].mxu0
        %2311 = vmatprep.mubr.f32.mxu0 %v2091
        %2312 = vmatmul.mubr.f32.gmra.mrb[0].mxu0 %v2090
        %v2313 = vpop.f32.mrb[0].mxu0
        %v2314 = vadd.f32 %v2241, %v2313
        %v2315 = vpop.f32.mrb[0].mxu0
        %2316 = vdwg.mxu0
        %vm2317 = vcmp.ge.f32.partialorder %v2309, 0.0
        %vm2318 = vcmp.ge.f32.partialorder %v2314, 0.0
        %v2319 = vmul.f32 %v2309, 0.2
        %v2320 = vmul.f32 %v2314, 0.2
        %v2321 = vsel %vm2317, %v2309, %v2319
        %v2322 = vsel %vm2318, %v2314, %v2320
        %v2323 = vld [vmem:[%s3] sm:$0xff]
        %v2324 = vld [vmem:[%s3 + $0x8] sm:$0xff]
        %vm2325 = vcmp.gt.f32.partialorder %v2323, 0.0
        %vm2326 = vcmp.gt.f32.partialorder %v2324, 0.0
        %v2327 = vsel %vm2325, %v2321, -1e+30
        %v2328 = vsel %vm2326, %v2322, -1e+30
        %2329 = vmax.xlane.f32.xlu0 %v2327
        %v2330 = vpop.xlane.xlu0 %2329
        %2331 = vmax.xlane.f32.xlu0 %v2328
        %v2332 = vpop.xlane.xlu0 %2331
        %v2333 = vsub.f32 %v2327, %v2330
        %v2334 = vsub.f32 %v2328, %v2332
        %v2335 = vmul.f32 %v2333, 1.442695
        %v2336 = vpow.pop %v2335
        %v2337 = vmul.f32 %v2334, 1.442695
        %v2338 = vpow.pop %v2337
        %v2339 = vmul.f32 %v2336, %v2323
        %v2340 = vmul.f32 %v2338, %v2324
        %v2341 = vld [vmem:[%s39] sm:$0xff]
        %v2342 = vld [vmem:[%s39 + $0x8] sm:$0xff]
        %v2343 = vld [vmem:[%s39 + $0x10] sm:$0xff]
        %v2344 = vld [vmem:[%s39 + $0x18] sm:$0xff]
        %v2345 = vld [vmem:[%s39 + $0x20] sm:$0xff]
        %v2346 = vld [vmem:[%s39 + $0x28] sm:$0xff]
        %v2347 = vld [vmem:[%s39 + $0x30] sm:$0xff]
        %v2348 = vld [vmem:[%s39 + $0x38] sm:$0xff]
        %v2349 = vld [vmem:[%s39 + $0x40] sm:$0xff]
        %v2350 = vld [vmem:[%s39 + $0x48] sm:$0xff]
        %v2351 = vld [vmem:[%s39 + $0x50] sm:$0xff]
        %v2352 = vld [vmem:[%s39 + $0x58] sm:$0xff]
        %v2353 = vld [vmem:[%s39 + $0x60] sm:$0xff]
        %v2354 = vld [vmem:[%s39 + $0x68] sm:$0xff]
        %v2355 = vld [vmem:[%s39 + $0x70] sm:$0xff]
        %v2356 = vld [vmem:[%s39 + $0x78] sm:$0xff]
        %2357 = vmatprep.subr.mxu0 0.0
        %2358 = vmatpush1.msra.mxu0 %v2341
        %2359 = vmatprep.subr.mxu0 0.0
        %2360 = vmatpush1.msra.mxu0 %v2342
        %2361 = vmatprep.subr.mxu0 0.0
        %2362 = vmatpush1.msra.mxu0 %v2343
        %2363 = vmatprep.subr.mxu0 0.0
        %2364 = vmatpush1.msra.mxu0 %v2344
        %2365 = vmatprep.subr.mxu0 0.0
        %2366 = vmatpush1.msra.mxu0 %v2345
        %2367 = vmatprep.subr.mxu0 0.0
        %2368 = vmatpush1.msra.mxu0 %v2346
        %2369 = vmatprep.subr.mxu0 0.0
        %2370 = vmatpush1.msra.mxu0 %v2347
        %2371 = vmatprep.subr.mxu0 0.0
        %2372 = vmatpush1.msra.mxu0 %v2348
        %2373 = vmatprep.subr.mxu0 0.0
        %2374 = vmatpush1.msra.mxu0 %v2349
        %2375 = vmatprep.subr.mxu0 0.0
        %2376 = vmatpush1.msra.mxu0 %v2350
        %2377 = vmatprep.subr.mxu0 0.0
        %2378 = vmatpush1.msra.mxu0 %v2351
        %2379 = vmatprep.subr.mxu0 0.0
        %2380 = vmatpush1.msra.mxu0 %v2352
        %2381 = vmatprep.subr.mxu0 0.0
        %2382 = vmatpush1.msra.mxu0 %v2353
        %2383 = vmatprep.subr.mxu0 0.0
        %2384 = vmatpush1.msra.mxu0 %v2354
        %2385 = vmatprep.subr.mxu0 0.0
        %2386 = vmatpush1.msra.mxu0 %v2355
        %2387 = vmatprep.subr.mxu0 0.0
        %2388 = vmatpush1.msra.mxu0 %v2356
        %2389 = vmatprep.subr.mxu0 0.0
        %2390 = vmatpush1.msra.mxu0 0.0
        %2391 = vmatprep.subr.mxu0 0.0
        %2392 = vmatpush1.msra.mxu0 0.0
        %2393 = vmatprep.subr.mxu0 0.0
        %2394 = vmatpush1.msra.mxu0 0.0
        %2395 = vmatprep.subr.mxu0 0.0
        %2396 = vmatpush1.msra.mxu0 0.0
        %2397 = vmatprep.subr.mxu0 0.0
        %2398 = vmatpush1.msra.mxu0 0.0
        %2399 = vmatprep.subr.mxu0 0.0
        %2400 = vmatpush1.msra.mxu0 0.0
        %2401 = vmatprep.subr.mxu0 0.0
        %2402 = vmatpush1.msra.mxu0 0.0
        %2403 = vmatprep.subr.mxu0 0.0
        %2404 = vmatpush1.msra.mxu0 0.0
        %2405 = vmatprep.subr.mxu0 0.0
        %2406 = vmatpush1.msra.mxu0 0.0
        %2407 = vmatprep.subr.mxu0 0.0
        %2408 = vmatpush1.msra.mxu0 0.0
        %2409 = vmatprep.subr.mxu0 0.0
        %2410 = vmatpush1.msra.mxu0 0.0
        %2411 = vmatprep.subr.mxu0 0.0
        %2412 = vmatpush1.msra.mxu0 0.0
        %2413 = vmatprep.subr.mxu0 0.0
        %2414 = vmatpush1.msra.mxu0 0.0
        %2415 = vmatprep.subr.mxu0 0.0
        %2416 = vmatpush1.msra.mxu0 0.0
        %2417 = vmatprep.subr.mxu0 0.0
        %2418 = vmatpush1.msra.mxu0 0.0
        %2419 = vmatprep.subr.mxu0 0.0
        %2420 = vmatpush1.msra.mxu0 0.0
        %2421 = vmatprep.mubr.f32.mxu0 0.0
        %2422 = vmatmul.mubr.f32.gmra.mrb[0].mxu0 %v2339
        %v2423 = vpop.f32.mrb[0].mxu0
        %v2424 = vadd.f32 1e-16, %v2423
        %v2425 = vpop.f32.mrb[0].mxu0
        %2426 = vmatprep.mubr.f32.mxu0 0.0
        %2427 = vmatmul.mubr.f32.gmra.mrb[0].mxu0 %v2340
        %v2428 = vpop.f32.mrb[0].mxu0
        %v2429 = vadd.f32 1e-16, %v2428
        %v2430 = vpop.f32.mrb[0].mxu0
        %2431 = vdwg.mxu0
        %v2432 = vrcp.pop %v2424
        %v2433 = vmul.f32 %v2339, %v2432
        %v2434 = vrcp.pop %v2429
        %v2435 = vmul.f32 %v2340, %v2434
        %v2436 = vld [vmem:[%s41] sm:$0xff]
        %v2437 = vld [vmem:[%s41 + $0x8] sm:$0xff]
        %v2438 = vld [vmem:[%s41 + $0x10] sm:$0xff]
        %v2439 = vld [vmem:[%s41 + $0x18] sm:$0xff]
        %v2440 = vld [vmem:[%s41 + $0x20] sm:$0xff]
        %v2441 = vld [vmem:[%s41 + $0x28] sm:$0xff]
        %v2442 = vld [vmem:[%s41 + $0x30] sm:$0xff]
        %v2443 = vld [vmem:[%s41 + $0x38] sm:$0xff]
        %v2444 = vld [vmem:[%s41 + $0x40] sm:$0xff]
        %v2445 = vld [vmem:[%s41 + $0x48] sm:$0xff]
        %v2446 = vld [vmem:[%s41 + $0x50] sm:$0xff]
        %v2447 = vld [vmem:[%s41 + $0x58] sm:$0xff]
        %v2448 = vld [vmem:[%s41 + $0x60] sm:$0xff]
        %v2449 = vld [vmem:[%s41 + $0x68] sm:$0xff]
        %v2450 = vld [vmem:[%s41 + $0x70] sm:$0xff]
        %v2451 = vld [vmem:[%s41 + $0x78] sm:$0xff]
        %vm2452 = vcmask 130048
        %v2454 = vsel %vm2452, %v2436, 0
        %v2457 = vsel %vm2452, %v2437, 0
        %v2460 = vsel %vm2452, %v2438, 0
        %v2463 = vsel %vm2452, %v2439, 0
        %v2466 = vsel %vm2452, %v2440, 0
        %v2469 = vsel %vm2452, %v2441, 0
        %v2472 = vsel %vm2452, %v2442, 0
        %v2475 = vsel %vm2452, %v2443, 0
        %v2478 = vsel %vm2452, %v2444, 0
        %v2481 = vsel %vm2452, %v2445, 0
        %v2484 = vsel %vm2452, %v2446, 0
        %v2487 = vsel %vm2452, %v2447, 0
        %v2490 = vsel %vm2452, %v2448, 0
        %v2493 = vsel %vm2452, %v2449, 0
        %v2496 = vsel %vm2452, %v2450, 0
        %v2499 = vsel %vm2452, %v2451, 0
        %2501 = vmatprep.subr.mxu0 %v2089
        %2502 = vmatpush1.msra.mxu0 %v2088
        %2503 = vmatprep.subr.mxu0 %v2091
        %2504 = vmatpush1.msra.mxu0 %v2090
        %2505 = vmatprep.subr.mxu0 0.0
        %2506 = vmatpush1.msra.mxu0 0.0
        %2507 = vmatprep.subr.mxu0 0.0
        %2508 = vmatpush1.msra.mxu0 0.0
        %2509 = vmatprep.subr.mxu0 0.0
        %2510 = vmatpush1.msra.mxu0 0.0
        %2511 = vmatprep.subr.mxu0 0.0
        %2512 = vmatpush1.msra.mxu0 0.0
        %2513 = vmatprep.subr.mxu0 0.0
        %2514 = vmatpush1.msra.mxu0 0.0
        %2515 = vmatprep.subr.mxu0 0.0
        %2516 = vmatpush1.msra.mxu0 0.0
        %2517 = vmatprep.subr.mxu0 0.0
        %2518 = vmatpush1.msra.mxu0 0.0
        %2519 = vmatprep.subr.mxu0 0.0
        %2520 = vmatpush1.msra.mxu0 0.0
        %2521 = vmatprep.subr.mxu0 0.0
        %2522 = vmatpush1.msra.mxu0 0.0
        %2523 = vmatprep.subr.mxu0 0.0
        %2524 = vmatpush1.msra.mxu0 0.0
        %2525 = vmatprep.subr.mxu0 0.0
        %2526 = vmatpush1.msra.mxu0 0.0
        %2527 = vmatprep.subr.mxu0 0.0
        %2528 = vmatpush1.msra.mxu0 0.0
        %2529 = vmatprep.subr.mxu0 0.0
        %2530 = vmatpush1.msra.mxu0 0.0
        %2531 = vmatprep.subr.mxu0 0.0
        %2532 = vmatpush1.msra.mxu0 0.0
        %2533 = vmatprep.subr.mxu0 0.0
        %2534 = vmatpush1.msra.mxu0 0.0
        %2535 = vmatprep.subr.mxu0 0.0
        %2536 = vmatpush1.msra.mxu0 0.0
        %2537 = vmatprep.subr.mxu0 0.0
        %2538 = vmatpush1.msra.mxu0 0.0
        %2539 = vmatprep.subr.mxu0 0.0
        %2540 = vmatpush1.msra.mxu0 0.0
        %2541 = vmatprep.subr.mxu0 0.0
        %2542 = vmatpush1.msra.mxu0 0.0
        %2543 = vmatprep.subr.mxu0 0.0
        %2544 = vmatpush1.msra.mxu0 0.0
        %2545 = vmatprep.subr.mxu0 0.0
        %2546 = vmatpush1.msra.mxu0 0.0
        %2547 = vmatprep.subr.mxu0 0.0
        %2548 = vmatpush1.msra.mxu0 0.0
        %2549 = vmatprep.subr.mxu0 0.0
        %2550 = vmatpush1.msra.mxu0 0.0
        %2551 = vmatprep.subr.mxu0 0.0
        %2552 = vmatpush1.msra.mxu0 0.0
        %2553 = vmatprep.subr.mxu0 0.0
        %2554 = vmatpush1.msra.mxu0 0.0
        %2555 = vmatprep.subr.mxu0 0.0
        %2556 = vmatpush1.msra.mxu0 0.0
        %2557 = vmatprep.subr.mxu0 0.0
        %2558 = vmatpush1.msra.mxu0 0.0
        %2559 = vmatprep.subr.mxu0 0.0
        %2560 = vmatpush1.msra.mxu0 0.0
        %2561 = vmatprep.subr.mxu0 0.0
        %2562 = vmatpush1.msra.mxu0 0.0
        %2563 = vmatprep.subr.mxu0 0.0
        %2564 = vmatpush1.msra.mxu0 0.0
        %2565 = vmatprep.mubr.f32.mxu0 0.0
        %2566 = vmatmul.mubr.f32.gmra.mrb[0].mxu0 %v2454
        %v2567 = vpop.f32.mrb[0].mxu0
        %v2568 = vadd.f32 0.0, %v2567
        %v2569 = vpop.f32.mrb[0].mxu0
        %v2570 = vadd.f32 0.0, %v2569
        %2571 = vmatprep.mubr.f32.mxu0 0.0
        %2572 = vmatmul.mubr.f32.gmra.mrb[0].mxu0 %v2457
        %v2573 = vpop.f32.mrb[0].mxu0
        %v2574 = vadd.f32 0.0, %v2573
        %v2575 = vpop.f32.mrb[0].mxu0
        %v2576 = vadd.f32 0.0, %v2575
        %2577 = vmatprep.mubr.f32.mxu0 0.0
        %2578 = vmatmul.mubr.f32.gmra.mrb[0].mxu0 %v2460
        %v2579 = vpop.f32.mrb[0].mxu0
        %v2580 = vadd.f32 0.0, %v2579
        %v2581 = vpop.f32.mrb[0].mxu0
        %v2582 = vadd.f32 0.0, %v2581
        %2583 = vmatprep.mubr.f32.mxu0 0.0
        %2584 = vmatmul.mubr.f32.gmra.mrb[0].mxu0 %v2463
        %v2585 = vpop.f32.mrb[0].mxu0
        %v2586 = vadd.f32 0.0, %v2585
        %v2587 = vpop.f32.mrb[0].mxu0
        %v2588 = vadd.f32 0.0, %v2587
        %2589 = vmatprep.mubr.f32.mxu0 0.0
        %2590 = vmatmul.mubr.f32.gmra.mrb[0].mxu0 %v2466
        %v2591 = vpop.f32.mrb[0].mxu0
        %v2592 = vadd.f32 0.0, %v2591
        %v2593 = vpop.f32.mrb[0].mxu0
        %v2594 = vadd.f32 0.0, %v2593
        %2595 = vmatprep.mubr.f32.mxu0 0.0
        %2596 = vmatmul.mubr.f32.gmra.mrb[0].mxu0 %v2469
        %v2597 = vpop.f32.mrb[0].mxu0
        %v2598 = vadd.f32 0.0, %v2597
        %v2599 = vpop.f32.mrb[0].mxu0
        %v2600 = vadd.f32 0.0, %v2599
        %2601 = vmatprep.mubr.f32.mxu0 0.0
        %2602 = vmatmul.mubr.f32.gmra.mrb[0].mxu0 %v2472
        %v2603 = vpop.f32.mrb[0].mxu0
        %v2604 = vadd.f32 0.0, %v2603
        %v2605 = vpop.f32.mrb[0].mxu0
        %v2606 = vadd.f32 0.0, %v2605
        %2607 = vmatprep.mubr.f32.mxu0 0.0
        %2608 = vmatmul.mubr.f32.gmra.mrb[0].mxu0 %v2475
        %v2609 = vpop.f32.mrb[0].mxu0
        %v2610 = vadd.f32 0.0, %v2609
        %v2611 = vpop.f32.mrb[0].mxu0
        %v2612 = vadd.f32 0.0, %v2611
        %2613 = vmatprep.mubr.f32.mxu0 0.0
        %2614 = vmatmul.mubr.f32.gmra.mrb[0].mxu0 %v2478
        %v2615 = vpop.f32.mrb[0].mxu0
        %v2616 = vadd.f32 0.0, %v2615
        %v2617 = vpop.f32.mrb[0].mxu0
        %v2618 = vadd.f32 0.0, %v2617
        %2619 = vmatprep.mubr.f32.mxu0 0.0
        %2620 = vmatmul.mubr.f32.gmra.mrb[0].mxu0 %v2481
        %v2621 = vpop.f32.mrb[0].mxu0
        %v2622 = vadd.f32 0.0, %v2621
        %v2623 = vpop.f32.mrb[0].mxu0
        %v2624 = vadd.f32 0.0, %v2623
        %2625 = vmatprep.mubr.f32.mxu0 0.0
        %2626 = vmatmul.mubr.f32.gmra.mrb[0].mxu0 %v2484
        %v2627 = vpop.f32.mrb[0].mxu0
        %v2628 = vadd.f32 0.0, %v2627
        %v2629 = vpop.f32.mrb[0].mxu0
        %v2630 = vadd.f32 0.0, %v2629
        %2631 = vmatprep.mubr.f32.mxu0 0.0
        %2632 = vmatmul.mubr.f32.gmra.mrb[0].mxu0 %v2487
        %v2633 = vpop.f32.mrb[0].mxu0
        %v2634 = vadd.f32 0.0, %v2633
        %v2635 = vpop.f32.mrb[0].mxu0
        %v2636 = vadd.f32 0.0, %v2635
        %2637 = vmatprep.mubr.f32.mxu0 0.0
        %2638 = vmatmul.mubr.f32.gmra.mrb[0].mxu0 %v2490
        %v2639 = vpop.f32.mrb[0].mxu0
        %v2640 = vadd.f32 0.0, %v2639
        %v2641 = vpop.f32.mrb[0].mxu0
        %v2642 = vadd.f32 0.0, %v2641
        %2643 = vmatprep.mubr.f32.mxu0 0.0
        %2644 = vmatmul.mubr.f32.gmra.mrb[0].mxu0 %v2493
        %v2645 = vpop.f32.mrb[0].mxu0
        %v2646 = vadd.f32 0.0, %v2645
        %v2647 = vpop.f32.mrb[0].mxu0
        %v2648 = vadd.f32 0.0, %v2647
        %2649 = vmatprep.mubr.f32.mxu0 0.0
        %2650 = vmatmul.mubr.f32.gmra.mrb[0].mxu0 %v2496
        %v2651 = vpop.f32.mrb[0].mxu0
        %v2652 = vadd.f32 0.0, %v2651
        %v2653 = vpop.f32.mrb[0].mxu0
        %v2654 = vadd.f32 0.0, %v2653
        %2655 = vmatprep.mubr.f32.mxu0 0.0
        %2656 = vmatmul.mubr.f32.gmra.mrb[0].mxu0 %v2499
        %v2657 = vpop.f32.mrb[0].mxu0
        %v2658 = vadd.f32 0.0, %v2657
        %v2659 = vpop.f32.mrb[0].mxu0
        %v2660 = vadd.f32 0.0, %v2659
        %2661 = vdwg.mxu0
        %v2662 = vld [vmem:[%s43] sm:$0xff]
        %v2663 = vld [vmem:[%s43 + $0x8] sm:$0xff]
        %v2664 = vld [vmem:[%s43 + $0x10] sm:$0xff]
        %v2665 = vld [vmem:[%s43 + $0x18] sm:$0xff]
        %v2666 = vld [vmem:[%s43 + $0x20] sm:$0xff]
        %v2667 = vld [vmem:[%s43 + $0x28] sm:$0xff]
        %v2668 = vld [vmem:[%s43 + $0x30] sm:$0xff]
        %v2669 = vld [vmem:[%s43 + $0x38] sm:$0xff]
        %v2670 = vld [vmem:[%s43 + $0x40] sm:$0xff]
        %v2671 = vld [vmem:[%s43 + $0x48] sm:$0xff]
        %v2672 = vld [vmem:[%s43 + $0x50] sm:$0xff]
        %v2673 = vld [vmem:[%s43 + $0x58] sm:$0xff]
        %v2674 = vld [vmem:[%s43 + $0x60] sm:$0xff]
        %v2675 = vld [vmem:[%s43 + $0x68] sm:$0xff]
        %v2676 = vld [vmem:[%s43 + $0x70] sm:$0xff]
        %v2677 = vld [vmem:[%s43 + $0x78] sm:$0xff]
        %v2678 = vld [vmem:[%s43 + $0x80] sm:$0xff]
        %v2679 = vld [vmem:[%s43 + $0x88] sm:$0xff]
        %v2680 = vld [vmem:[%s43 + $0x90] sm:$0xff]
        %v2681 = vld [vmem:[%s43 + $0x98] sm:$0xff]
        %v2682 = vld [vmem:[%s43 + $0xa0] sm:$0xff]
        %v2683 = vld [vmem:[%s43 + $0xa8] sm:$0xff]
        %v2684 = vld [vmem:[%s43 + $0xb0] sm:$0xff]
        %v2685 = vld [vmem:[%s43 + $0xb8] sm:$0xff]
        %v2686 = vld [vmem:[%s43 + $0xc0] sm:$0xff]
        %v2687 = vld [vmem:[%s43 + $0xc8] sm:$0xff]
        %v2688 = vld [vmem:[%s43 + $0xd0] sm:$0xff]
        %v2689 = vld [vmem:[%s43 + $0xd8] sm:$0xff]
        %v2690 = vld [vmem:[%s43 + $0xe0] sm:$0xff]
        %v2691 = vld [vmem:[%s43 + $0xe8] sm:$0xff]
        %v2692 = vld [vmem:[%s43 + $0xf0] sm:$0xff]
        %v2693 = vld [vmem:[%s43 + $0xf8] sm:$0xff]
        %v2694 = vmul.f32 %v2568, %v2662
        %v2695 = vmul.f32 %v2570, %v2663
        %v2696 = vmul.f32 %v2574, %v2664
        %v2697 = vmul.f32 %v2576, %v2665
        %v2698 = vmul.f32 %v2580, %v2666
        %v2699 = vmul.f32 %v2582, %v2667
        %v2700 = vmul.f32 %v2586, %v2668
        %v2701 = vmul.f32 %v2588, %v2669
        %v2702 = vmul.f32 %v2592, %v2670
        %v2703 = vmul.f32 %v2594, %v2671
        %v2704 = vmul.f32 %v2598, %v2672
        %v2705 = vmul.f32 %v2600, %v2673
        %v2706 = vmul.f32 %v2604, %v2674
        %v2707 = vmul.f32 %v2606, %v2675
        %v2708 = vmul.f32 %v2610, %v2676
        %v2709 = vmul.f32 %v2612, %v2677
        %v2710 = vmul.f32 %v2616, %v2678
        %v2711 = vmul.f32 %v2618, %v2679
        %v2712 = vmul.f32 %v2622, %v2680
        %v2713 = vmul.f32 %v2624, %v2681
        %v2714 = vmul.f32 %v2628, %v2682
        %v2715 = vmul.f32 %v2630, %v2683
        %v2716 = vmul.f32 %v2634, %v2684
        %v2717 = vmul.f32 %v2636, %v2685
        %v2718 = vmul.f32 %v2640, %v2686
        %v2719 = vmul.f32 %v2642, %v2687
        %v2720 = vmul.f32 %v2646, %v2688
        %v2721 = vmul.f32 %v2648, %v2689
        %v2722 = vmul.f32 %v2652, %v2690
        %v2723 = vmul.f32 %v2654, %v2691
        %v2724 = vmul.f32 %v2658, %v2692
        %v2725 = vmul.f32 %v2660, %v2693
        %v2726 = vld [vmem:[%s45] sm:$0xff]
        %v2727 = vld [vmem:[%s45 + $0x8] sm:$0xff]
        %v2728 = vld [vmem:[%s45 + $0x10] sm:$0xff]
        %v2729 = vld [vmem:[%s45 + $0x18] sm:$0xff]
        %v2730 = vld [vmem:[%s45 + $0x20] sm:$0xff]
        %v2731 = vld [vmem:[%s45 + $0x28] sm:$0xff]
        %v2732 = vld [vmem:[%s45 + $0x30] sm:$0xff]
        %v2733 = vld [vmem:[%s45 + $0x38] sm:$0xff]
        %v2734 = vld [vmem:[%s45 + $0x40] sm:$0xff]
        %v2735 = vld [vmem:[%s45 + $0x48] sm:$0xff]
        %v2736 = vld [vmem:[%s45 + $0x50] sm:$0xff]
        %v2737 = vld [vmem:[%s45 + $0x58] sm:$0xff]
        %v2738 = vld [vmem:[%s45 + $0x60] sm:$0xff]
        %v2739 = vld [vmem:[%s45 + $0x68] sm:$0xff]
        %v2740 = vld [vmem:[%s45 + $0x70] sm:$0xff]
        %v2741 = vld [vmem:[%s45 + $0x78] sm:$0xff]
        %v2742 = vld [vmem:[%s45 + $0x80] sm:$0xff]
        %v2743 = vld [vmem:[%s45 + $0x88] sm:$0xff]
        %v2744 = vld [vmem:[%s45 + $0x90] sm:$0xff]
        %v2745 = vld [vmem:[%s45 + $0x98] sm:$0xff]
        %v2746 = vld [vmem:[%s45 + $0xa0] sm:$0xff]
        %v2747 = vld [vmem:[%s45 + $0xa8] sm:$0xff]
        %v2748 = vld [vmem:[%s45 + $0xb0] sm:$0xff]
        %v2749 = vld [vmem:[%s45 + $0xb8] sm:$0xff]
        %v2750 = vld [vmem:[%s45 + $0xc0] sm:$0xff]
        %v2751 = vld [vmem:[%s45 + $0xc8] sm:$0xff]
        %v2752 = vld [vmem:[%s45 + $0xd0] sm:$0xff]
        %v2753 = vld [vmem:[%s45 + $0xd8] sm:$0xff]
        %v2754 = vld [vmem:[%s45 + $0xe0] sm:$0xff]
        %v2755 = vld [vmem:[%s45 + $0xe8] sm:$0xff]
        %v2756 = vld [vmem:[%s45 + $0xf0] sm:$0xff]
        %v2757 = vld [vmem:[%s45 + $0xf8] sm:$0xff]
        %2758 = vmatprep.subr.mxu0 0.0
        %2759 = vmatpush1.msra.mxu0 %v2726
        %2760 = vmatprep.subr.mxu0 0.0
        %2761 = vmatpush1.msra.mxu0 %v2727
        %2762 = vmatprep.subr.mxu0 0.0
        %2763 = vmatpush1.msra.mxu0 %v2728
        %2764 = vmatprep.subr.mxu0 0.0
        %2765 = vmatpush1.msra.mxu0 %v2729
        %2766 = vmatprep.subr.mxu0 0.0
        %2767 = vmatpush1.msra.mxu0 %v2730
        %2768 = vmatprep.subr.mxu0 0.0
        %2769 = vmatpush1.msra.mxu0 %v2731
        %2770 = vmatprep.subr.mxu0 0.0
        %2771 = vmatpush1.msra.mxu0 %v2732
        %2772 = vmatprep.subr.mxu0 0.0
        %2773 = vmatpush1.msra.mxu0 %v2733
        %2774 = vmatprep.subr.mxu0 0.0
        %2775 = vmatpush1.msra.mxu0 %v2734
        %2776 = vmatprep.subr.mxu0 0.0
        %2777 = vmatpush1.msra.mxu0 %v2735
        %2778 = vmatprep.subr.mxu0 0.0
        %2779 = vmatpush1.msra.mxu0 %v2736
        %2780 = vmatprep.subr.mxu0 0.0
        %2781 = vmatpush1.msra.mxu0 %v2737
        %2782 = vmatprep.subr.mxu0 0.0
        %2783 = vmatpush1.msra.mxu0 %v2738
        %2784 = vmatprep.subr.mxu0 0.0
        %2785 = vmatpush1.msra.mxu0 %v2739
        %2786 = vmatprep.subr.mxu0 0.0
        %2787 = vmatpush1.msra.mxu0 %v2740
        %2788 = vmatprep.subr.mxu0 0.0
        %2789 = vmatpush1.msra.mxu0 %v2741
        %2790 = vmatprep.subr.mxu0 0.0
        %2791 = vmatpush1.msra.mxu0 %v2742
        %2792 = vmatprep.subr.mxu0 0.0
        %2793 = vmatpush1.msra.mxu0 %v2743
        %2794 = vmatprep.subr.mxu0 0.0
        %2795 = vmatpush1.msra.mxu0 %v2744
        %2796 = vmatprep.subr.mxu0 0.0
        %2797 = vmatpush1.msra.mxu0 %v2745
        %2798 = vmatprep.subr.mxu0 0.0
        %2799 = vmatpush1.msra.mxu0 %v2746
        %2800 = vmatprep.subr.mxu0 0.0
        %2801 = vmatpush1.msra.mxu0 %v2747
        %2802 = vmatprep.subr.mxu0 0.0
        %2803 = vmatpush1.msra.mxu0 %v2748
        %2804 = vmatprep.subr.mxu0 0.0
        %2805 = vmatpush1.msra.mxu0 %v2749
        %2806 = vmatprep.subr.mxu0 0.0
        %2807 = vmatpush1.msra.mxu0 %v2750
        %2808 = vmatprep.subr.mxu0 0.0
        %2809 = vmatpush1.msra.mxu0 %v2751
        %2810 = vmatprep.subr.mxu0 0.0
        %2811 = vmatpush1.msra.mxu0 %v2752
        %2812 = vmatprep.subr.mxu0 0.0
        %2813 = vmatpush1.msra.mxu0 %v2753
        %2814 = vmatprep.subr.mxu0 0.0
        %2815 = vmatpush1.msra.mxu0 %v2754
        %2816 = vmatprep.subr.mxu0 0.0
        %2817 = vmatpush1.msra.mxu0 %v2755
        %2818 = vmatprep.subr.mxu0 0.0
        %2819 = vmatpush1.msra.mxu0 %v2756
        %2820 = vmatprep.subr.mxu0 0.0
        %2821 = vmatpush1.msra.mxu0 %v2757
        %2822 = vmatprep.mubr.f32.mxu0 %v2695
        %2823 = vmatmul.mubr.f32.gmra.mrb[0].mxu0 %v2694
        %v2824 = vpop.f32.mrb[0].mxu0
        %v2825 = vadd.f32 0.0, %v2824
        %v2826 = vpop.f32.mrb[0].mxu0
        %2827 = vmatprep.mubr.f32.mxu0 %v2697
        %2828 = vmatmul.mubr.f32.gmra.mrb[0].mxu0 %v2696
        %v2829 = vpop.f32.mrb[0].mxu0
        %v2830 = vadd.f32 0.0, %v2829
        %v2831 = vpop.f32.mrb[0].mxu0
        %2832 = vmatprep.mubr.f32.mxu0 %v2699
        %2833 = vmatmul.mubr.f32.gmra.mrb[0].mxu0 %v2698
        %v2834 = vpop.f32.mrb[0].mxu0
        %v2835 = vadd.f32 0.0, %v2834
        %v2836 = vpop.f32.mrb[0].mxu0
        %2837 = vmatprep.mubr.f32.mxu0 %v2701
        %2838 = vmatmul.mubr.f32.gmra.mrb[0].mxu0 %v2700
        %v2839 = vpop.f32.mrb[0].mxu0
        %v2840 = vadd.f32 0.0, %v2839
        %v2841 = vpop.f32.mrb[0].mxu0
        %2842 = vmatprep.mubr.f32.mxu0 %v2703
        %2843 = vmatmul.mubr.f32.gmra.mrb[0].mxu0 %v2702
        %v2844 = vpop.f32.mrb[0].mxu0
        %v2845 = vadd.f32 0.0, %v2844
        %v2846 = vpop.f32.mrb[0].mxu0
        %2847 = vmatprep.mubr.f32.mxu0 %v2705
        %2848 = vmatmul.mubr.f32.gmra.mrb[0].mxu0 %v2704
        %v2849 = vpop.f32.mrb[0].mxu0
        %v2850 = vadd.f32 0.0, %v2849
        %v2851 = vpop.f32.mrb[0].mxu0
        %2852 = vmatprep.mubr.f32.mxu0 %v2707
        %2853 = vmatmul.mubr.f32.gmra.mrb[0].mxu0 %v2706
        %v2854 = vpop.f32.mrb[0].mxu0
        %v2855 = vadd.f32 0.0, %v2854
        %v2856 = vpop.f32.mrb[0].mxu0
        %2857 = vmatprep.mubr.f32.mxu0 %v2709
        %2858 = vmatmul.mubr.f32.gmra.mrb[0].mxu0 %v2708
        %v2859 = vpop.f32.mrb[0].mxu0
        %v2860 = vadd.f32 0.0, %v2859
        %v2861 = vpop.f32.mrb[0].mxu0
        %2862 = vmatprep.mubr.f32.mxu0 %v2711
        %2863 = vmatmul.mubr.f32.gmra.mrb[0].mxu0 %v2710
        %v2864 = vpop.f32.mrb[0].mxu0
        %v2865 = vadd.f32 0.0, %v2864
        %v2866 = vpop.f32.mrb[0].mxu0
        %2867 = vmatprep.mubr.f32.mxu0 %v2713
        %2868 = vmatmul.mubr.f32.gmra.mrb[0].mxu0 %v2712
        %v2869 = vpop.f32.mrb[0].mxu0
        %v2870 = vadd.f32 0.0, %v2869
        %v2871 = vpop.f32.mrb[0].mxu0
        %2872 = vmatprep.mubr.f32.mxu0 %v2715
        %2873 = vmatmul.mubr.f32.gmra.mrb[0].mxu0 %v2714
        %v2874 = vpop.f32.mrb[0].mxu0
        %v2875 = vadd.f32 0.0, %v2874
        %v2876 = vpop.f32.mrb[0].mxu0
        %2877 = vmatprep.mubr.f32.mxu0 %v2717
        %2878 = vmatmul.mubr.f32.gmra.mrb[0].mxu0 %v2716
        %v2879 = vpop.f32.mrb[0].mxu0
        %v2880 = vadd.f32 0.0, %v2879
        %v2881 = vpop.f32.mrb[0].mxu0
        %2882 = vmatprep.mubr.f32.mxu0 %v2719
        %2883 = vmatmul.mubr.f32.gmra.mrb[0].mxu0 %v2718
        %v2884 = vpop.f32.mrb[0].mxu0
        %v2885 = vadd.f32 0.0, %v2884
        %v2886 = vpop.f32.mrb[0].mxu0
        %2887 = vmatprep.mubr.f32.mxu0 %v2721
        %2888 = vmatmul.mubr.f32.gmra.mrb[0].mxu0 %v2720
        %v2889 = vpop.f32.mrb[0].mxu0
        %v2890 = vadd.f32 0.0, %v2889
        %v2891 = vpop.f32.mrb[0].mxu0
        %2892 = vmatprep.mubr.f32.mxu0 %v2723
        %2893 = vmatmul.mubr.f32.gmra.mrb[0].mxu0 %v2722
        %v2894 = vpop.f32.mrb[0].mxu0
        %v2895 = vadd.f32 0.0, %v2894
        %v2896 = vpop.f32.mrb[0].mxu0
        %2897 = vmatprep.mubr.f32.mxu0 %v2725
        %2898 = vmatmul.mubr.f32.gmra.mrb[0].mxu0 %v2724
        %v2899 = vpop.f32.mrb[0].mxu0
        %v2900 = vadd.f32 0.0, %v2899
        %v2901 = vpop.f32.mrb[0].mxu0
        %2902 = vdwg.mxu0
        %2903 = vmatprep.subr.mxu0 0.0
        %2904 = vmatpush1.msra.mxu0 %v2825
        %2905 = vmatprep.subr.mxu0 0.0
        %2906 = vmatpush1.msra.mxu0 %v2830
        %2907 = vmatprep.subr.mxu0 0.0
        %2908 = vmatpush1.msra.mxu0 %v2835
        %2909 = vmatprep.subr.mxu0 0.0
        %2910 = vmatpush1.msra.mxu0 %v2840
        %2911 = vmatprep.subr.mxu0 0.0
        %2912 = vmatpush1.msra.mxu0 %v2845
        %2913 = vmatprep.subr.mxu0 0.0
        %2914 = vmatpush1.msra.mxu0 %v2850
        %2915 = vmatprep.subr.mxu0 0.0
        %2916 = vmatpush1.msra.mxu0 %v2855
        %2917 = vmatprep.subr.mxu0 0.0
        %2918 = vmatpush1.msra.mxu0 %v2860
        %2919 = vmatprep.subr.mxu0 0.0
        %2920 = vmatpush1.msra.mxu0 %v2865
        %2921 = vmatprep.subr.mxu0 0.0
        %2922 = vmatpush1.msra.mxu0 %v2870
        %2923 = vmatprep.subr.mxu0 0.0
        %2924 = vmatpush1.msra.mxu0 %v2875
        %2925 = vmatprep.subr.mxu0 0.0
        %2926 = vmatpush1.msra.mxu0 %v2880
        %2927 = vmatprep.subr.mxu0 0.0
        %2928 = vmatpush1.msra.mxu0 %v2885
        %2929 = vmatprep.subr.mxu0 0.0
        %2930 = vmatpush1.msra.mxu0 %v2890
        %2931 = vmatprep.subr.mxu0 0.0
        %2932 = vmatpush1.msra.mxu0 %v2895
        %2933 = vmatprep.subr.mxu0 0.0
        %2934 = vmatpush1.msra.mxu0 %v2900
        %2935 = vmatprep.subr.mxu0 0.0
        %2936 = vmatpush1.msra.mxu0 0.0
        %2937 = vmatprep.subr.mxu0 0.0
        %2938 = vmatpush1.msra.mxu0 0.0
        %2939 = vmatprep.subr.mxu0 0.0
        %2940 = vmatpush1.msra.mxu0 0.0
        %2941 = vmatprep.subr.mxu0 0.0
        %2942 = vmatpush1.msra.mxu0 0.0
        %2943 = vmatprep.subr.mxu0 0.0
        %2944 = vmatpush1.msra.mxu0 0.0
        %2945 = vmatprep.subr.mxu0 0.0
        %2946 = vmatpush1.msra.mxu0 0.0
        %2947 = vmatprep.subr.mxu0 0.0
        %2948 = vmatpush1.msra.mxu0 0.0
        %2949 = vmatprep.subr.mxu0 0.0
        %2950 = vmatpush1.msra.mxu0 0.0
        %2951 = vmatprep.subr.mxu0 0.0
        %2952 = vmatpush1.msra.mxu0 0.0
        %2953 = vmatprep.subr.mxu0 0.0
        %2954 = vmatpush1.msra.mxu0 0.0
        %2955 = vmatprep.subr.mxu0 0.0
        %2956 = vmatpush1.msra.mxu0 0.0
        %2957 = vmatprep.subr.mxu0 0.0
        %2958 = vmatpush1.msra.mxu0 0.0
        %2959 = vmatprep.subr.mxu0 0.0
        %2960 = vmatpush1.msra.mxu0 0.0
        %2961 = vmatprep.subr.mxu0 0.0
        %2962 = vmatpush1.msra.mxu0 0.0
        %2963 = vmatprep.subr.mxu0 0.0
        %2964 = vmatpush1.msra.mxu0 0.0
        %2965 = vmatprep.subr.mxu0 0.0
        %2966 = vmatpush1.msra.mxu0 0.0
        %2967 = vmatprep.mubr.f32.mxu0 0.0
        %2968 = vmatmul.mubr.f32.gmra.mrb[0].mxu0 %v2433
        %v2969 = vpop.f32.mrb[0].mxu0
        %v2970 = vadd.f32 0.0, %v2969
        %v2971 = vpop.f32.mrb[0].mxu0
        %2972 = vmatprep.mubr.f32.mxu0 0.0
        %2973 = vmatmul.mubr.f32.gmra.mrb[0].mxu0 %v2435
        %v2974 = vpop.f32.mrb[0].mxu0
        %v2975 = vadd.f32 0.0, %v2974
        %v2976 = vpop.f32.mrb[0].mxu0
        %2977 = vdwg.mxu0
        %v2978 = vmul.f32 %v2970, 0.125
        %v2979 = vmul.f32 %v2975, 0.125
        %v2980 = vld [vmem:[%s47] sm:$0xff]
        %v2981 = vld [vmem:[%s47 + $0x8] sm:$0xff]
        %v2982 = vld [vmem:[%s47 + $0x10] sm:$0xff]
        %v2983 = vld [vmem:[%s47 + $0x18] sm:$0xff]
        %v2984 = vld [vmem:[%s49] sm:$0x1]
        %v2986 = vlaneseq
        %v2987 = vshrl.u32 %v2986, 7
        %v2988 = vsub.s32 0, %v2987
        %v2989 = vrot.slane %v2984, %v2988
        %v2992 = vsel %vm1300, %v2978, 0
        %v2995 = vsel %vm1300, %v2979, 0
        %2997 = vmatprep.subr.mxu0 0.0
        %2998 = vmatpush1.msra.mxu0 %v2980
        %2999 = vmatprep.subr.mxu0 0.0
        %3000 = vmatpush1.msra.mxu0 %v2981
        %3001 = vmatprep.subr.mxu0 0.0
        %3002 = vmatpush1.msra.mxu0 %v2982
        %3003 = vmatprep.subr.mxu0 0.0
        %3004 = vmatpush1.msra.mxu0 %v2983
        %3005 = vmatprep.subr.mxu0 0.0
        %3006 = vmatpush1.msra.mxu0 0.0
        %3007 = vmatprep.subr.mxu0 0.0
        %3008 = vmatpush1.msra.mxu0 0.0
        %3009 = vmatprep.subr.mxu0 0.0
        %3010 = vmatpush1.msra.mxu0 0.0
        %3011 = vmatprep.subr.mxu0 0.0
        %3012 = vmatpush1.msra.mxu0 0.0
        %3013 = vmatprep.subr.mxu0 0.0
        %3014 = vmatpush1.msra.mxu0 0.0
        %3015 = vmatprep.subr.mxu0 0.0
        %3016 = vmatpush1.msra.mxu0 0.0
        %3017 = vmatprep.subr.mxu0 0.0
        %3018 = vmatpush1.msra.mxu0 0.0
        %3019 = vmatprep.subr.mxu0 0.0
        %3020 = vmatpush1.msra.mxu0 0.0
        %3021 = vmatprep.subr.mxu0 0.0
        %3022 = vmatpush1.msra.mxu0 0.0
        %3023 = vmatprep.subr.mxu0 0.0
        %3024 = vmatpush1.msra.mxu0 0.0
        %3025 = vmatprep.subr.mxu0 0.0
        %3026 = vmatpush1.msra.mxu0 0.0
        %3027 = vmatprep.subr.mxu0 0.0
        %3028 = vmatpush1.msra.mxu0 0.0
        %3029 = vmatprep.subr.mxu0 0.0
        %3030 = vmatpush1.msra.mxu0 0.0
        %3031 = vmatprep.subr.mxu0 0.0
        %3032 = vmatpush1.msra.mxu0 0.0
        %3033 = vmatprep.subr.mxu0 0.0
        %3034 = vmatpush1.msra.mxu0 0.0
        %3035 = vmatprep.subr.mxu0 0.0
        %3036 = vmatpush1.msra.mxu0 0.0
        %3037 = vmatprep.subr.mxu0 0.0
        %3038 = vmatpush1.msra.mxu0 0.0
        %3039 = vmatprep.subr.mxu0 0.0
        %3040 = vmatpush1.msra.mxu0 0.0
        %3041 = vmatprep.subr.mxu0 0.0
        %3042 = vmatpush1.msra.mxu0 0.0
        %3043 = vmatprep.subr.mxu0 0.0
        %3044 = vmatpush1.msra.mxu0 0.0
        %3045 = vmatprep.subr.mxu0 0.0
        %3046 = vmatpush1.msra.mxu0 0.0
        %3047 = vmatprep.subr.mxu0 0.0
        %3048 = vmatpush1.msra.mxu0 0.0
        %3049 = vmatprep.subr.mxu0 0.0
        %3050 = vmatpush1.msra.mxu0 0.0
        %3051 = vmatprep.subr.mxu0 0.0
        %3052 = vmatpush1.msra.mxu0 0.0
        %3053 = vmatprep.subr.mxu0 0.0
        %3054 = vmatpush1.msra.mxu0 0.0
        %3055 = vmatprep.subr.mxu0 0.0
        %3056 = vmatpush1.msra.mxu0 0.0
        %3057 = vmatprep.subr.mxu0 0.0
        %3058 = vmatpush1.msra.mxu0 0.0
        %3059 = vmatprep.subr.mxu0 0.0
        %3060 = vmatpush1.msra.mxu0 0.0
        %3061 = vmatprep.mubr.f32.mxu0 0.0
        %3062 = vmatmul.mubr.f32.gmra.mrb[0].mxu0 %v2992
        %v3063 = vpop.f32.mrb[0].mxu0
        %v3064 = vadd.f32 %v2989, %v3063
        %v3065 = vpop.f32.mrb[0].mxu0
        %3066 = vmatprep.mubr.f32.mxu0 0.0
        %3067 = vmatmul.mubr.f32.gmra.mrb[0].mxu0 %v2995
        %v3068 = vpop.f32.mrb[0].mxu0
        %v3069 = vadd.f32 %v2989, %v3068
        %v3070 = vpop.f32.mrb[0].mxu0
        %3071 = vdwg.mxu0
        %v3072 = vmax.f32 %v3064, 0.0
        %v3073 = vmax.f32 %v3069, 0.0
        %v3074 = vld [vmem:[%s51] sm:$0xff]
        %v3075 = vld [vmem:[%s51 + $0x8] sm:$0xff]
        %v3076 = vld [vmem:[%s51 + $0x10] sm:$0xff]
        %v3077 = vld [vmem:[%s51 + $0x18] sm:$0xff]
        %v3078 = vld [vmem:[%s51 + $0x20] sm:$0xff]
        %v3079 = vld [vmem:[%s51 + $0x28] sm:$0xff]
        %v3080 = vld [vmem:[%s51 + $0x30] sm:$0xff]
        %v3081 = vld [vmem:[%s51 + $0x38] sm:$0xff]
        %v3082 = vld [vmem:[%s53] sm:$0x1]
        %v3084 = vlaneseq
        %v3085 = vshrl.u32 %v3084, 7
        %v3086 = vsub.s32 0, %v3085
        %v3087 = vrot.slane %v3082, %v3086
        %vm3089 = vcmask 523264
        %v3091 = vsel %vm3089, %v3072, 0
        %v3094 = vsel %vm3089, %v3073, 0
        %3096 = vmatprep.subr.mxu0 0.0
        %3097 = vmatpush1.msra.mxu0 %v3074
        %3098 = vmatprep.subr.mxu0 0.0
        %3099 = vmatpush1.msra.mxu0 %v3075
        %3100 = vmatprep.subr.mxu0 0.0
        %3101 = vmatpush1.msra.mxu0 %v3076
        %3102 = vmatprep.subr.mxu0 0.0
        %3103 = vmatpush1.msra.mxu0 %v3077
        %3104 = vmatprep.subr.mxu0 0.0
        %3105 = vmatpush1.msra.mxu0 %v3078
        %3106 = vmatprep.subr.mxu0 0.0
        %3107 = vmatpush1.msra.mxu0 %v3079
        %3108 = vmatprep.subr.mxu0 0.0
        %3109 = vmatpush1.msra.mxu0 %v3080
        %3110 = vmatprep.subr.mxu0 0.0
        %3111 = vmatpush1.msra.mxu0 %v3081
        %3112 = vmatprep.subr.mxu0 0.0
        %3113 = vmatpush1.msra.mxu0 0.0
        %3114 = vmatprep.subr.mxu0 0.0
        %3115 = vmatpush1.msra.mxu0 0.0
        %3116 = vmatprep.subr.mxu0 0.0
        %3117 = vmatpush1.msra.mxu0 0.0
        %3118 = vmatprep.subr.mxu0 0.0
        %3119 = vmatpush1.msra.mxu0 0.0
        %3120 = vmatprep.subr.mxu0 0.0
        %3121 = vmatpush1.msra.mxu0 0.0
        %3122 = vmatprep.subr.mxu0 0.0
        %3123 = vmatpush1.msra.mxu0 0.0
        %3124 = vmatprep.subr.mxu0 0.0
        %3125 = vmatpush1.msra.mxu0 0.0
        %3126 = vmatprep.subr.mxu0 0.0
        %3127 = vmatpush1.msra.mxu0 0.0
        %3128 = vmatprep.subr.mxu0 0.0
        %3129 = vmatpush1.msra.mxu0 0.0
        %3130 = vmatprep.subr.mxu0 0.0
        %3131 = vmatpush1.msra.mxu0 0.0
        %3132 = vmatprep.subr.mxu0 0.0
        %3133 = vmatpush1.msra.mxu0 0.0
        %3134 = vmatprep.subr.mxu0 0.0
        %3135 = vmatpush1.msra.mxu0 0.0
        %3136 = vmatprep.subr.mxu0 0.0
        %3137 = vmatpush1.msra.mxu0 0.0
        %3138 = vmatprep.subr.mxu0 0.0
        %3139 = vmatpush1.msra.mxu0 0.0
        %3140 = vmatprep.subr.mxu0 0.0
        %3141 = vmatpush1.msra.mxu0 0.0
        %3142 = vmatprep.subr.mxu0 0.0
        %3143 = vmatpush1.msra.mxu0 0.0
        %3144 = vmatprep.subr.mxu0 0.0
        %3145 = vmatpush1.msra.mxu0 0.0
        %3146 = vmatprep.subr.mxu0 0.0
        %3147 = vmatpush1.msra.mxu0 0.0
        %3148 = vmatprep.subr.mxu0 0.0
        %3149 = vmatpush1.msra.mxu0 0.0
        %3150 = vmatprep.subr.mxu0 0.0
        %3151 = vmatpush1.msra.mxu0 0.0
        %3152 = vmatprep.subr.mxu0 0.0
        %3153 = vmatpush1.msra.mxu0 0.0
        %3154 = vmatprep.subr.mxu0 0.0
        %3155 = vmatpush1.msra.mxu0 0.0
        %3156 = vmatprep.subr.mxu0 0.0
        %3157 = vmatpush1.msra.mxu0 0.0
        %3158 = vmatprep.subr.mxu0 0.0
        %3159 = vmatpush1.msra.mxu0 0.0
        %3160 = vmatprep.mubr.f32.mxu0 0.0
        %3161 = vmatmul.mubr.f32.gmra.mrb[0].mxu0 %v3091
        %v3162 = vpop.f32.mrb[0].mxu0
        %v3163 = vadd.f32 %v3087, %v3162
        %v3164 = vpop.f32.mrb[0].mxu0
        %3165 = vmatprep.mubr.f32.mxu0 0.0
        %3166 = vmatmul.mubr.f32.gmra.mrb[0].mxu0 %v3094
        %v3167 = vpop.f32.mrb[0].mxu0
        %v3168 = vadd.f32 %v3087, %v3167
        %v3169 = vpop.f32.mrb[0].mxu0
        %3170 = vdwg.mxu0
        %v3171 = vtanh.pop %v3163
        %v3172 = vtanh.pop %v3168
        %v3173 = vxor.u32 %v3171, 2147483648
        %v3174 = vxor.u32 %v3172, 2147483648
        %v3175 = vmul.f32 %v3173, 1.442695
        %v3176 = vpow.pop %v3175
        %v3177 = vmul.f32 %v3174, 1.442695
        %v3178 = vpow.pop %v3177
        %v3179 = vadd.f32 %v3176, 1.0
        %v3180 = vadd.f32 %v3178, 1.0
        %v3181 = vrcp.pop %v3179
        %v3182 = vmul.f32 1.0, %v3181
        %v3183 = vrcp.pop %v3180
        %v3184 = vmul.f32 1.0, %v3183
        %v3185 = vmul.f32 %v3182, %v2978
        %v3186 = vmul.f32 %v3184, %v2979
        %v3187 = vsub.f32 1.0, %v3182
        %v3188 = vsub.f32 1.0, %v3184
        %v3189 = vmul.f32 %v3187, %v1257
        %v3190 = vmul.f32 %v3188, %v1258
        %v3191 = vadd.f32 %v3185, %v3189
        %v3192 = vadd.f32 %v3186, %v3190
        %v3193 = vld [vmem:[#allocation3] sm:$0xff]
        %v3194 = vld [vmem:[#allocation3 + $0x8] sm:$0xff]
        %v3195 = vadd.f32 %v3193, %v3191
        %v3196 = vadd.f32 %v3194, %v3192
        %3197 = vst.msk [vmem:[#allocation3] sm:$0xff] %vm1300, %v3195
        %3198 = vst.msk [vmem:[#allocation3 + $0x8] sm:$0xff] %vm1300, %v3196
        %v3199 = vsel %vm1300, %v3191, 0.0
        %3200 = vadd.xlane.f32.xlu0 %v3199
        %v3201 = vpop.xlane.xlu0 %3200
        %v3202 = vsel %vm1300, %v3192, 0.0
        %3203 = vadd.xlane.f32.xlu0 %v3202
        %v3204 = vpop.xlane.xlu0 %3203
        %v3205 = vrcp.pop 32.0
        %v3206 = vmul.f32 %v3201, %v3205
        %v3207 = vmul.f32 %v3204, %v3205
        %v3208 = vsub.f32 %v3191, %v3206
        %v3209 = vsub.f32 %v3192, %v3207
        %v3210 = vmul.f32 %v3208, %v3208
        %v3211 = vmul.f32 %v3209, %v3209
        %v3212 = vsel %vm1300, %v3210, 0.0
        %3213 = vadd.xlane.f32.xlu0 %v3212
        %v3214 = vpop.xlane.xlu0 %3213
        %v3215 = vsel %vm1300, %v3211, 0.0
        %3216 = vadd.xlane.f32.xlu0 %v3215
        %v3217 = vpop.xlane.xlu0 %3216
        %v3218 = vmul.f32 %v3214, %v3205
        %v3219 = vmul.f32 %v3217, %v3205
        %v3220 = vadd.f32 %v3218, 1e-05
        %v3221 = vadd.f32 %v3219, 1e-05
        %v3222 = vrsqrt.pop %v3220
        %v3223 = vrsqrt.pop %v3221
        %v3224 = vmul.f32 %v3208, %v3222
        %v3225 = vmul.f32 %v3209, %v3223
        %3226 = vst.msk [vmem:[#allocation2] sm:$0xff] %vm1300, %v3224
        %3227 = vst.msk [vmem:[#allocation2 + $0x8] sm:$0xff] %vm1300, %v3225
        %p3228 = scmp.eq.s32.totalorder %s74, 2
        // Predicated region
        $region141: #{chaotic_evolution_gnn_forward.1} parent=135 // pred_check
          %p3229 = pneg %p3228
        $region142: #{chaotic_evolution_gnn_forward.1} parent=135 // pred_check_branch
          %3231 = sbr.rel (%p3229) target = $region144
        $region143: #{chaotic_evolution_gnn_forward.1} parent=135 // pred_region
          %v3232 = vld [vmem:[#allocation3] sm:$0xff]
          %v3233 = vld [vmem:[#allocation3 + $0x8] sm:$0xff]
          %v3234 = vmul.f32 %v3232, 0.33333334
          %v3235 = vmul.f32 %v3233, 0.33333334
          %3236 = vst.msk [vmem:[#allocation4] sm:$0xff] %vm1300, %v3234
          %3237 = vst.msk [vmem:[#allocation4 + $0x8] sm:$0xff] %vm1300, %v3235
          %v3238 = vld [vmem:[%s55] sm:$0xff]
          %v3239 = vld [vmem:[%s55 + $0x8] sm:$0xff]
          %v3240 = vld [vmem:[%s55 + $0x10] sm:$0xff]
          %v3241 = vld [vmem:[%s55 + $0x18] sm:$0xff]
          %v3242 = vld [vmem:[%s57] sm:$0x1]
          %v3244 = vlaneseq
          %v3245 = vshrl.u32 %v3244, 7
          %v3246 = vsub.s32 0, %v3245
          %v3247 = vrot.slane %v3242, %v3246
          %v3250 = vsel %vm1300, %v3234, 0
          %v3253 = vsel %vm1300, %v3235, 0
          %3255 = vmatprep.subr.mxu0 0.0
          %3256 = vmatpush1.msra.mxu0 %v3238
          %3257 = vmatprep.subr.mxu0 0.0
          %3258 = vmatpush1.msra.mxu0 %v3239
          %3259 = vmatprep.subr.mxu0 0.0
          %3260 = vmatpush1.msra.mxu0 %v3240
          %3261 = vmatprep.subr.mxu0 0.0
          %3262 = vmatpush1.msra.mxu0 %v3241
          %3263 = vmatprep.subr.mxu0 0.0
          %3264 = vmatpush1.msra.mxu0 0.0
          %3265 = vmatprep.subr.mxu0 0.0
          %3266 = vmatpush1.msra.mxu0 0.0
          %3267 = vmatprep.subr.mxu0 0.0
          %3268 = vmatpush1.msra.mxu0 0.0
          %3269 = vmatprep.subr.mxu0 0.0
          %3270 = vmatpush1.msra.mxu0 0.0
          %3271 = vmatprep.subr.mxu0 0.0
          %3272 = vmatpush1.msra.mxu0 0.0
          %3273 = vmatprep.subr.mxu0 0.0
          %3274 = vmatpush1.msra.mxu0 0.0
          %3275 = vmatprep.subr.mxu0 0.0
          %3276 = vmatpush1.msra.mxu0 0.0
          %3277 = vmatprep.subr.mxu0 0.0
          %3278 = vmatpush1.msra.mxu0 0.0
          %3279 = vmatprep.subr.mxu0 0.0
          %3280 = vmatpush1.msra.mxu0 0.0
          %3281 = vmatprep.subr.mxu0 0.0
          %3282 = vmatpush1.msra.mxu0 0.0
          %3283 = vmatprep.subr.mxu0 0.0
          %3284 = vmatpush1.msra.mxu0 0.0
          %3285 = vmatprep.subr.mxu0 0.0
          %3286 = vmatpush1.msra.mxu0 0.0
          %3287 = vmatprep.subr.mxu0 0.0
          %3288 = vmatpush1.msra.mxu0 0.0
          %3289 = vmatprep.subr.mxu0 0.0
          %3290 = vmatpush1.msra.mxu0 0.0
          %3291 = vmatprep.subr.mxu0 0.0
          %3292 = vmatpush1.msra.mxu0 0.0
          %3293 = vmatprep.subr.mxu0 0.0
          %3294 = vmatpush1.msra.mxu0 0.0
          %3295 = vmatprep.subr.mxu0 0.0
          %3296 = vmatpush1.msra.mxu0 0.0
          %3297 = vmatprep.subr.mxu0 0.0
          %3298 = vmatpush1.msra.mxu0 0.0
          %3299 = vmatprep.subr.mxu0 0.0
          %3300 = vmatpush1.msra.mxu0 0.0
          %3301 = vmatprep.subr.mxu0 0.0
          %3302 = vmatpush1.msra.mxu0 0.0
          %3303 = vmatprep.subr.mxu0 0.0
          %3304 = vmatpush1.msra.mxu0 0.0
          %3305 = vmatprep.subr.mxu0 0.0
          %3306 = vmatpush1.msra.mxu0 0.0
          %3307 = vmatprep.subr.mxu0 0.0
          %3308 = vmatpush1.msra.mxu0 0.0
          %3309 = vmatprep.subr.mxu0 0.0
          %3310 = vmatpush1.msra.mxu0 0.0
          %3311 = vmatprep.subr.mxu0 0.0
          %3312 = vmatpush1.msra.mxu0 0.0
          %3313 = vmatprep.subr.mxu0 0.0
          %3314 = vmatpush1.msra.mxu0 0.0
          %3315 = vmatprep.subr.mxu0 0.0
          %3316 = vmatpush1.msra.mxu0 0.0
          %3317 = vmatprep.subr.mxu0 0.0
          %3318 = vmatpush1.msra.mxu0 0.0
          %3319 = vmatprep.mubr.f32.mxu0 0.0
          %3320 = vmatmul.mubr.f32.gmra.mrb[0].mxu0 %v3250
          %v3321 = vpop.f32.mrb[0].mxu0
          %v3322 = vadd.f32 %v3247, %v3321
          %v3323 = vpop.f32.mrb[0].mxu0
          %3324 = vmatprep.mubr.f32.mxu0 0.0
          %3325 = vmatmul.mubr.f32.gmra.mrb[0].mxu0 %v3253
          %v3326 = vpop.f32.mrb[0].mxu0
          %v3327 = vadd.f32 %v3247, %v3326
          %v3328 = vpop.f32.mrb[0].mxu0
          %3329 = vdwg.mxu0
          %3330 = vst [vmem:[%s61] sm:$0xff] %v3322
          %3331 = vst [vmem:[%s61 + $0x8] sm:$0xff] %v3327
        $region144: #{chaotic_evolution_gnn_forward.1} parent=135 // pred_fallthru
          _
        // Predicated region
        $region145: #{chaotic_evolution_gnn_forward.1} parent=135 // pred_check
          %p3332 = pneg %p751
        $region146: #{chaotic_evolution_gnn_forward.1} parent=135 // pred_check_branch
          %3334 = sbr.rel (%p3332) target = $region148
        $region147: #{chaotic_evolution_gnn_forward.1} parent=135 // pred_region
          %s3336 = ssub.s32 256, 256
          %3337 = vsyncadd [#allocation5], %s3336
          %s3338 = sshll.u32 [#allocation4], 4
          %s3339 = int_to_ptr.vmem [resolvable:$true] %s3338
          %3344 = dma.vmem_to_hbm [thread:$0]  %s3339, 256, %s59, [#allocation5], 128, 128, 8
        $region148: #{chaotic_evolution_gnn_forward.1} parent=135 // pred_fallthru
          _
        // Predicated region
        $region149: #{chaotic_evolution_gnn_forward.1} parent=135 // pred_check
          %p3345 = pneg %p772
        $region150: #{chaotic_evolution_gnn_forward.1} parent=135 // pred_check_branch
          %3347 = sbr.rel (%p3345) target = $region152
        $region151: #{chaotic_evolution_gnn_forward.1} parent=135 // pred_region
          _
        $region152: #{chaotic_evolution_gnn_forward.1} parent=135 // pred_fallthru
          _
        // Predicated region
        $region153: #{chaotic_evolution_gnn_forward.1} parent=135 // pred_check
          %p3348 = pneg %p751
        $region154: #{chaotic_evolution_gnn_forward.1} parent=135 // pred_check_branch
          %3350 = sbr.rel (%p3348) target = $region156
        $region155: #{chaotic_evolution_gnn_forward.1} parent=135 // pred_region
          %3351 = dma.done [#allocation5], 256
        $region156: #{chaotic_evolution_gnn_forward.1} parent=135 // pred_fallthru
          _
        // Predicated region
        $region157: #{chaotic_evolution_gnn_forward.1} parent=135 // pred_check
          %p3352 = pneg %p772
        $region158: #{chaotic_evolution_gnn_forward.1} parent=135 // pred_check_branch
          %3354 = sbr.rel (%p3352) target = $region160
        $region159: #{chaotic_evolution_gnn_forward.1} parent=135 // pred_region
          _
        $region160: #{chaotic_evolution_gnn_forward.1} parent=135 // pred_fallthru
          _
      $region136: #{chaotic_evolution_gnn_forward.1} parent=5 // pred_fallthru
        _
      %p3355 = scmp.le.s32.totalorder 2, %s69
      // Predicated region
      $region161: #{chaotic_evolution_gnn_forward.1} parent=5 // pred_check
        %p3356 = pneg %p3355
      $region162: #{chaotic_evolution_gnn_forward.1} parent=5 // pred_check_branch
        %3358 = sbr.rel (%p3356) target = $region164
      $region163: #{chaotic_evolution_gnn_forward.1} parent=5 // pred_region
        %s3359 = ssub.s32 %s69, 2
      $region164: #{chaotic_evolution_gnn_forward.1} parent=5 // pred_fallthru
        _
    $region6: #{chaotic_evolution_gnn_forward.1} parent=1 // loop_footer
      %s73 = sadd.s32 1, %s69
    $region7: #{chaotic_evolution_gnn_forward.1} parent=1 // loop_footer_branch
      %68 = sbr.rel target = $region3
    $region8: #{chaotic_evolution_gnn_forward.1} parent=1 // loop_exit
      _
    %3360 = vsyncpa [#allocation5], 1
    %s3361 = scalar_lea.sflag [#allocation5], 1
    %3362 = vsyncpa %s3361, 1

</llo_original>
